<compile_context>
chip_gen: v5e
topology: v5e:2x2
jax: 0.10.0
libtpu: 0.0.40
codegen_flags: <defaults>
</compile_context>

<pallas_src>
import functools

import jax
import jax.numpy as jnp
from jax.experimental import pallas as pl
from jax.experimental.pallas import tpu as pltpu


# ----------------------------------------------------------------------------
# Parameter setup glue (spectral norm, one power iteration, as in the module)
# ----------------------------------------------------------------------------
def l2normalize(v, eps=1e-4):
    return v / (jnp.linalg.norm(v) + eps)


def spectral_norm(w, u):
    # w: (out, in)  (1x1 conv weight flattened), u: (out,)
    v = l2normalize(jnp.matmul(w.T, u))
    wv = jnp.matmul(w, v)
    u_new = l2normalize(wv)
    sigma = jnp.dot(u_new, wv)
    return w / sigma


def _pad_rows(w, rows):
    pad = rows - w.shape[0]
    if pad > 0:
        w = jnp.concatenate([w, jnp.zeros((pad, w.shape[1]), w.dtype)], axis=0)
    return w


# ----------------------------------------------------------------------------
# Pallas kernel: bt batch elements per grid step, lane-concatenated.
#   lane (within block) = b*N + (2*dw+dh)*N4 + (w2*H2 + h2)
# ----------------------------------------------------------------------------
def _self_attn_kernel(x_ref, wproj_ref, wo_ref, gamma_ref, out_ref, ag_ref,
                      *, bt, n, n4, c8p, qt, exp_dtype):
    # Projection operand: cast once, do not keep the f32 block live.
    xb = x_ref[...].astype(jnp.bfloat16)                      # (C, bt*n) bf16
    wproj = wproj_ref[...]                                     # (P, C)   bf16
    gamma = gamma_ref[0]                                       # f32 scalar (SMEM)

    # One fused projection matmul for all three 1x1 convs over the whole slab.
    proj = jnp.dot(wproj, xb, preferred_element_type=jnp.float32)   # (P, bt*n)
    theta = proj[:c8p].astype(jnp.bfloat16)                    # (c8p, bt*n)
    phi_pre = proj[c8p:2 * c8p]                                # (c8p, bt*n) f32
    g_pre = proj[2 * c8p:]                                     # (C2,  bt*n) f32

    # Per-batch attention.  bt is small (<=2 here); at bt>=4 convert this to
    # lax.fori_loop(..., unroll=True) with pl.ds(pl.multiple_of(...)) slices.
    for b in range(bt):
        base = b * n

        # 2x2 max-pool = elementwise max over the 4 pool-group lane slabs.
        ph = phi_pre[:, base:base + n4]
        gg = g_pre[:, base:base + n4]
        for k in range(1, 4):
            ph = jnp.maximum(ph, phi_pre[:, base + k * n4: base + (k + 1) * n4])
            gg = jnp.maximum(gg, g_pre[:, base + k * n4: base + (k + 1) * n4])
        ph = ph.astype(jnp.bfloat16)                           # (c8p, n4)
        gg = gg.astype(jnp.bfloat16)                           # (C2,  n4)

        # Query-tiled scores/softmax/attn_g.  The softmax axis (n4, rows) is
        # fully resident per chunk, so no online softmax is required.
        for q0 in range(0, n, qt):
            th_q = theta[:, base + q0: base + q0 + qt]          # (c8p, qt)
            # scores^T : (n4, qt) -- contract the channel dim of both
            # operands; the (qt, n4) attention matrix is never transposed.
            s_t = jax.lax.dot_general(ph, th_q, (((0,), (0,)), ((), ())),
                                      preferred_element_type=jnp.float32)
            m = jnp.max(s_t, axis=0, keepdims=True)
            e = jnp.exp((s_t - m).astype(exp_dtype))            # bf16 exp on v6e/v7x
            denom = jnp.sum(e.astype(jnp.float32), axis=0, keepdims=True)
            inv = pl.reciprocal(denom, approx=True)
            attn_t = (e.astype(jnp.float32) * inv).astype(jnp.bfloat16)  # (n4, qt)
            # attn_g chunk = g_p @ attn^T : (C2, qt) -> ag scratch slab.
            ag_ref[:, base + q0: base + q0 + qt] = jnp.dot(
                gg, attn_t, preferred_element_type=jnp.float32).astype(jnp.bfloat16)

    # Hoisted o_conv + residual: one wide MXU matmul, one lane-dense store.
    o = jnp.dot(wo_ref[...], ag_ref[...],
                preferred_element_type=jnp.float32)             # (C, bt*n) f32
    out_ref[...] = gamma * o + x_ref[...]


# ----------------------------------------------------------------------------
# Wrapper
# ----------------------------------------------------------------------------
def self_attention_pallas(x_nchw, wt, wp, wg, wo, gamma, *,
                          batch_tile=2, query_tile=512):
    B, C, W, H = x_nchw.shape
    assert W % 2 == 0 and H % 2 == 0, "2x2 max-pool needs even spatial dims"
    N = W * H
    N4 = N // 4
    W2, H2 = W // 2, H // 2
    C8 = wt.shape[0]
    C2 = wg.shape[0]
    C8p = max(8, ((C8 + 7) // 8) * 8)       # pad theta/phi rows to 8-multiple

    # Batch tile: as large as allowed, but keep grid length >= 2 when B >= 2
    # so both v7x TensorCores get work from the "parallel" grid axis.
    bt = 1
    for cand in range(1, min(max(batch_tile, 1), B) + 1):
        if B % cand == 0 and (B // cand >= 2 or B == 1):
            bt = cand

    # Query tile for the score/softmax block (keeps (N4, qt) temps small).
    qt = query_tile if (N > query_tile and N % query_tile == 0) else N

    kind = ""
    try:
        kind = jax.devices()[0].device_kind.lower()
    except Exception:
        pass
    use_bf16_exp = ("v6" in kind) or ("v7" in kind)   # not on v5e (no bf16 EUP)

    # Pool-grouped channel-major layout, batch concatenated along lanes:
    #   lane = b*N + (2*dw+dh)*N4 + (w2*H2 + h2)
    # N4 should be a multiple of 128 for lane-aligned pool slabs (true for the
    # Discriminator's SelfAttention map sizes >= 32x32).
    x6 = x_nchw.reshape(B, C, W2, 2, H2, 2)             # b c w2 dw h2 dh
    x_cm = x6.transpose(1, 0, 3, 5, 2, 4).reshape(C, B * N).astype(jnp.float32)

    # Stack the three projection weights (zero-padded) -> one bf16 matmul.
    wproj = jnp.concatenate(
        [_pad_rows(wt, C8p), _pad_rows(wp, C8p), wg], axis=0).astype(jnp.bfloat16)
    P = wproj.shape[0]
    wo_b = wo.astype(jnp.bfloat16)
    gamma_arr = jnp.asarray(gamma, jnp.float32).reshape(1)

    # Explicit VMEM budget: double-buffered f32 in/out blocks + bf16 weights
    # + projection slab + ag scratch + one score/softmax chunk, with slack.
    blk = C * bt * N * 4
    est = (2 * 2 * blk
           + 2 * (P * C + C * C2) * 2
           + P * bt * N * 4
           + C2 * bt * N * 2
           + N4 * qt * 12)
    cap = (60 << 20) if "v7" in kind else (100 << 20)
    vmem_limit = int(min(cap, max(32 << 20, 2 * est)))

    kernel = functools.partial(
        _self_attn_kernel, bt=bt, n=N, n4=N4, c8p=C8p, qt=qt,
        exp_dtype=(jnp.bfloat16 if use_bf16_exp else jnp.float32))

    out_cm = pl.pallas_call(
        kernel,
        out_shape=jax.ShapeDtypeStruct((C, B * N), jnp.float32),
        grid=(B // bt,),
        in_specs=[
            pl.BlockSpec((C, bt * N), lambda i: (0, i)),          # activations
            pl.BlockSpec((P, C), lambda i: (0, 0)),               # fused proj w
            pl.BlockSpec((C, C2), lambda i: (0, 0)),              # o_conv w
            pl.BlockSpec(memory_space=pltpu.MemorySpace.SMEM),    # gamma
        ],
        out_specs=pl.BlockSpec((C, bt * N), lambda i: (0, i)),
        scratch_shapes=[pltpu.VMEM((C2, bt * N), jnp.bfloat16)],  # attn_g slab
        input_output_aliases={0: 0},
        compiler_params=pltpu.CompilerParams(
            dimension_semantics=("parallel",),
            vmem_limit_bytes=vmem_limit),
    )(x_cm, wproj, wo_b, gamma_arr)

    # Un-permute back to NCHW.
    out = out_cm.reshape(C, B, 2, 2, W2, H2).transpose(1, 0, 4, 2, 5, 3)
    return out.reshape(B, C, W, H)


# ----------------------------------------------------------------------------
# Pure-JAX f32 reference (matches the PyTorch module)
# ----------------------------------------------------------------------------
def reference(x_nchw, wt, wp, wg, wo, gamma):
    B, C, W, H = x_nchw.shape
    N = W * H
    xf = x_nchw.reshape(B, C, N)
    theta = jnp.einsum('oc,bcn->bon', wt, xf)
    phi = jnp.einsum('oc,bcwh->bowh', wp, x_nchw)
    phi = phi.reshape(B, -1, W // 2, 2, H // 2, 2).max(axis=(3, 5))
    phi = phi.reshape(B, -1, N // 4)
    g = jnp.einsum('oc,bcwh->bowh', wg, x_nchw)
    g = g.reshape(B, -1, W // 2, 2, H // 2, 2).max(axis=(3, 5))
    g = g.reshape(B, -1, N // 4)
    attn = jax.nn.softmax(jnp.einsum('bon,boj->bnj', theta, phi), axis=-1)
    attn_g = jnp.einsum('bcj,bnj->bcn', g, attn)
    out = jnp.einsum('oc,bcn->bon', wo, attn_g)
    return (gamma * out + xf).reshape(B, C, W, H)


if __name__ == "__main__":
    # SelfAttention operates at 2*chn channels and (input_size / 4) spatial in
    # the Discriminator; small config with C a multiple of 8 and N4 = 256 (so
    # every pool-group / per-batch lane slab is 128-lane aligned).
    B, C, W, H = 2, 32, 32, 32
    C8, C2 = C // 8, C // 2

    key = jax.random.PRNGKey(0)
    keys = jax.random.split(key, 5)
    x = jax.random.normal(keys[0], (B, C, W, H), jnp.float32)

    def init_conv(k, out_c, in_c):
        kw, ku = jax.random.split(k)
        bound = 1.0 / (in_c ** 0.5)     # Conv2d-style uniform init (1x1 kernel)
        w_bar = jax.random.uniform(kw, (out_c, in_c), jnp.float32, -bound, bound)
        u = l2normalize(jax.random.normal(ku, (out_c,), jnp.float32))
        return spectral_norm(w_bar, u)

    wt = init_conv(keys[1], C8, C)      # theta
    wp = init_conv(keys[2], C8, C)      # phi
    wg = init_conv(keys[3], C2, C)      # g
    wo = init_conv(keys[4], C, C2)      # o_conv

    # gamma = 0 (module init): output must equal x exactly (f32 residual path).
    y0 = jax.block_until_ready(
        self_attention_pallas(x, wt, wp, wg, wo, jnp.float32(0.0)))
    assert jnp.allclose(y0, x, atol=1e-6), float(jnp.max(jnp.abs(y0 - x)))

    # gamma = 1: full attention path vs f32 reference (bf16 MXU / bf16 exp).
    y1 = jax.block_until_ready(
        self_attention_pallas(x, wt, wp, wg, wo, jnp.float32(1.0)))
    y1_ref = reference(x, wt, wp, wg, wo, jnp.float32(1.0))
    err1 = float(jnp.max(jnp.abs(y1 - y1_ref)))
    assert err1 < 5e-2, err1

    # batch-blocked grid path: B=4 with 2 batch elements per grid step.
    xb4 = jax.random.normal(jax.random.PRNGKey(1), (4, C, W, H), jnp.float32)
    y4 = jax.block_until_ready(
        self_attention_pallas(xb4, wt, wp, wg, wo, jnp.float32(1.0),
                              batch_tile=2))
    y4_ref = reference(xb4, wt, wp, wg, wo, jnp.float32(1.0))
    err4 = float(jnp.max(jnp.abs(y4 - y4_ref)))
    assert err4 < 5e-2, err4

    print("KERNEL_OK")
</pallas_src>

<mosaic_0001>
module attributes {stable_mosaic.version = 11 : i64} {
  func.func @_self_attn_kernel(%arg0: i32, %arg1: memref<32x1024xf32, #tpu.memory_space<vmem>>, %arg2: memref<32x32xbf16, #tpu.memory_space<vmem>>, %arg3: memref<32x16xbf16, #tpu.memory_space<vmem>>, %arg4: memref<1xf32, #tpu.memory_space<smem>>, %arg5: memref<32x1024xf32, #tpu.memory_space<vmem>>, %arg6: memref<16x1024xbf16, #tpu.memory_space<vmem>>) attributes {dimension_semantics = [#tpu.dimension_semantics<parallel>], iteration_bounds = array<i64: 2>, scalar_prefetch = 0 : i64, scratch_operands = 1 : i64, tpu.core_type = #tpu.core_type<tc>, window_params = [{transform_indices = @transform_0, window_bounds = array<i64: 32, 1024>}, {pipeline_mode = #tpu.pipeline_mode<synchronous>, transform_indices = @transform_1, window_bounds = array<i64: 32, 32>}, {pipeline_mode = #tpu.pipeline_mode<synchronous>, transform_indices = @transform_2, window_bounds = array<i64: 32, 16>}, {transform_indices = @transform_3, window_bounds = array<i64: 1>}, {transform_indices = @transform_4, window_bounds = array<i64: 32, 1024>}]} {
    %c0 = arith.constant 0 : index
    %c0_0 = arith.constant 0 : index
    %0 = vector.load %arg1[%c0, %c0_0] : memref<32x1024xf32, #tpu.memory_space<vmem>>, vector<32x1024xf32>
    %1 = arith.truncf %0 : vector<32x1024xf32> to vector<32x1024xbf16>
    %c0_1 = arith.constant 0 : index
    %c0_2 = arith.constant 0 : index
    %2 = vector.load %arg2[%c0_1, %c0_2] : memref<32x32xbf16, #tpu.memory_space<vmem>>, vector<32x32xbf16>
    %c0_3 = arith.constant 0 : index
    %3 = memref.load %arg4[%c0_3] : memref<1xf32, #tpu.memory_space<smem>>
    %cst = arith.constant dense<0.000000e+00> : vector<32x1024xf32>
    %4 = tpu.matmul %2, %1, %cst {dimension_numbers = #tpu.dot_dimension_numbers<[1], [0], [0], [1], [0, 0, 1, 1], [], []>} : vector<32x32xbf16>, vector<32x1024xbf16>, vector<32x1024xf32> -> vector<32x1024xf32>
    %5 = vector.extract_strided_slice %4 {offsets = [0, 0], sizes = [8, 1024], strides = [1, 1]} : vector<32x1024xf32> to vector<8x1024xf32>
    %6 = arith.truncf %5 : vector<8x1024xf32> to vector<8x1024xbf16>
    %7 = vector.extract_strided_slice %4 {offsets = [8, 0], sizes = [8, 1024], strides = [1, 1]} : vector<32x1024xf32> to vector<8x1024xf32>
    %8 = vector.extract_strided_slice %4 {offsets = [16, 0], sizes = [16, 1024], strides = [1, 1]} : vector<32x1024xf32> to vector<16x1024xf32>
    %9 = vector.extract_strided_slice %7 {offsets = [0, 0], sizes = [8, 256], strides = [1, 1]} : vector<8x1024xf32> to vector<8x256xf32>
    %10 = vector.extract_strided_slice %8 {offsets = [0, 0], sizes = [16, 256], strides = [1, 1]} : vector<16x1024xf32> to vector<16x256xf32>
    %11 = vector.extract_strided_slice %7 {offsets = [0, 256], sizes = [8, 256], strides = [1, 1]} : vector<8x1024xf32> to vector<8x256xf32>
    %12 = arith.maximumf %9, %11 : vector<8x256xf32>
    %13 = vector.extract_strided_slice %8 {offsets = [0, 256], sizes = [16, 256], strides = [1, 1]} : vector<16x1024xf32> to vector<16x256xf32>
    %14 = arith.maximumf %10, %13 : vector<16x256xf32>
    %15 = vector.extract_strided_slice %7 {offsets = [0, 512], sizes = [8, 256], strides = [1, 1]} : vector<8x1024xf32> to vector<8x256xf32>
    %16 = arith.maximumf %12, %15 : vector<8x256xf32>
    %17 = vector.extract_strided_slice %8 {offsets = [0, 512], sizes = [16, 256], strides = [1, 1]} : vector<16x1024xf32> to vector<16x256xf32>
    %18 = arith.maximumf %14, %17 : vector<16x256xf32>
    %19 = vector.extract_strided_slice %7 {offsets = [0, 768], sizes = [8, 256], strides = [1, 1]} : vector<8x1024xf32> to vector<8x256xf32>
    %20 = arith.maximumf %16, %19 : vector<8x256xf32>
    %21 = vector.extract_strided_slice %8 {offsets = [0, 768], sizes = [16, 256], strides = [1, 1]} : vector<16x1024xf32> to vector<16x256xf32>
    %22 = arith.maximumf %18, %21 : vector<16x256xf32>
    %23 = arith.truncf %20 : vector<8x256xf32> to vector<8x256xbf16>
    %24 = arith.truncf %22 : vector<16x256xf32> to vector<16x256xbf16>
    %25 = vector.extract_strided_slice %6 {offsets = [0, 0], sizes = [8, 512], strides = [1, 1]} : vector<8x1024xbf16> to vector<8x512xbf16>
    %cst_4 = arith.constant dense<0.000000e+00> : vector<256x512xf32>
    %26 = tpu.matmul %23, %25, %cst_4 {dimension_numbers = #tpu.dot_dimension_numbers<[0], [0], [1], [1], [0, 1, 1, 1], [], []>} : vector<8x256xbf16>, vector<8x512xbf16>, vector<256x512xf32> -> vector<256x512xf32>
    %cst_5 = arith.constant dense<0xFF800000> : vector<512xf32>
    %27 = vector.multi_reduction <maximumf>, %26, %cst_5 [0] : vector<256x512xf32> to vector<512xf32>
    %28 = vector.shape_cast %27 : vector<512xf32> to vector<1x512xf32>
    %29 = vector.broadcast %28 : vector<1x512xf32> to vector<256x512xf32>
    %30 = arith.subf %26, %29 : vector<256x512xf32>
    %31 = math.exp %30 : vector<256x512xf32>
    %cst_6 = arith.constant dense<0.000000e+00> : vector<512xf32>
    %32 = vector.multi_reduction <add>, %31, %cst_6 [0] : vector<256x512xf32> to vector<512xf32>
    %33 = vector.shape_cast %32 : vector<512xf32> to vector<1x512xf32>
    %34 = tpu.reciprocal %33 {approx = true} : vector<1x512xf32> -> vector<1x512xf32>
    %35 = vector.broadcast %34 : vector<1x512xf32> to vector<256x512xf32>
    %36 = arith.mulf %31, %35 : vector<256x512xf32>
    %37 = arith.truncf %36 : vector<256x512xf32> to vector<256x512xbf16>
    %cst_7 = arith.constant dense<0.000000e+00> : vector<16x512xf32>
    %38 = tpu.matmul %24, %37, %cst_7 {dimension_numbers = #tpu.dot_dimension_numbers<[1], [0], [0], [1], [0, 0, 1, 1], [], []>} : vector<16x256xbf16>, vector<256x512xbf16>, vector<16x512xf32> -> vector<16x512xf32>
    %39 = arith.truncf %38 : vector<16x512xf32> to vector<16x512xbf16>
    %c0_8 = arith.constant 0 : index
    %c0_9 = arith.constant 0 : index
    %40 = vector.load %arg6[%c0_8, %c0_9] : memref<16x1024xbf16, #tpu.memory_space<vmem>>, vector<16x512xbf16>
    tpu.vector_store %arg6[%c0_8, %c0_9], %39 {strides = array<i32>} : memref<16x1024xbf16, #tpu.memory_space<vmem>>, vector<16x512xbf16>,
    %41 = vector.extract_strided_slice %6 {offsets = [0, 512], sizes = [8, 512], strides = [1, 1]} : vector<8x1024xbf16> to vector<8x512xbf16>
    %cst_10 = arith.constant dense<0.000000e+00> : vector<256x512xf32>
    %42 = tpu.matmul %23, %41, %cst_10 {dimension_numbers = #tpu.dot_dimension_numbers<[0], [0], [1], [1], [0, 1, 1, 1], [], []>} : vector<8x256xbf16>, vector<8x512xbf16>, vector<256x512xf32> -> vector<256x512xf32>
    %cst_11 = arith.constant dense<0xFF800000> : vector<512xf32>
    %43 = vector.multi_reduction <maximumf>, %42, %cst_11 [0] : vector<256x512xf32> to vector<512xf32>
    %44 = vector.shape_cast %43 : vector<512xf32> to vector<1x512xf32>
    %45 = vector.broadcast %44 : vector<1x512xf32> to vector<256x512xf32>
    %46 = arith.subf %42, %45 : vector<256x512xf32>
    %47 = math.exp %46 : vector<256x512xf32>
    %cst_12 = arith.constant dense<0.000000e+00> : vector<512xf32>
    %48 = vector.multi_reduction <add>, %47, %cst_12 [0] : vector<256x512xf32> to vector<512xf32>
    %49 = vector.shape_cast %48 : vector<512xf32> to vector<1x512xf32>
    %50 = tpu.reciprocal %49 {approx = true} : vector<1x512xf32> -> vector<1x512xf32>
    %51 = vector.broadcast %50 : vector<1x512xf32> to vector<256x512xf32>
    %52 = arith.mulf %47, %51 : vector<256x512xf32>
    %53 = arith.truncf %52 : vector<256x512xf32> to vector<256x512xbf16>
    %cst_13 = arith.constant dense<0.000000e+00> : vector<16x512xf32>
    %54 = tpu.matmul %24, %53, %cst_13 {dimension_numbers = #tpu.dot_dimension_numbers<[1], [0], [0], [1], [0, 0, 1, 1], [], []>} : vector<16x256xbf16>, vector<256x512xbf16>, vector<16x512xf32> -> vector<16x512xf32>
    %55 = arith.truncf %54 : vector<16x512xf32> to vector<16x512xbf16>
    %c0_14 = arith.constant 0 : index
    %c512 = arith.constant 512 : index
    %56 = vector.load %arg6[%c0_14, %c512] : memref<16x1024xbf16, #tpu.memory_space<vmem>>, vector<16x512xbf16>
    tpu.vector_store %arg6[%c0_14, %c512], %55 {strides = array<i32>} : memref<16x1024xbf16, #tpu.memory_space<vmem>>, vector<16x512xbf16>,
    %c0_15 = arith.constant 0 : index
    %c0_16 = arith.constant 0 : index
    %57 = vector.load %arg3[%c0_15, %c0_16] : memref<32x16xbf16, #tpu.memory_space<vmem>>, vector<32x16xbf16>
    %c0_17 = arith.constant 0 : index
    %c0_18 = arith.constant 0 : index
    %58 = vector.load %arg6[%c0_17, %c0_18] : memref<16x1024xbf16, #tpu.memory_space<vmem>>, vector<16x1024xbf16>
    %cst_19 = arith.constant dense<0.000000e+00> : vector<32x1024xf32>
    %59 = tpu.matmul %57, %58, %cst_19 {dimension_numbers = #tpu.dot_dimension_numbers<[1], [0], [0], [1], [0, 0, 1, 1], [], []>} : vector<32x16xbf16>, vector<16x1024xbf16>, vector<32x1024xf32> -> vector<32x1024xf32>
    %60 = vector.broadcast %3 : f32 to vector<32x1024xf32>
    %61 = arith.mulf %60, %59 : vector<32x1024xf32>
    %c0_20 = arith.constant 0 : index
    %c0_21 = arith.constant 0 : index
    %62 = vector.load %arg1[%c0_20, %c0_21] : memref<32x1024xf32, #tpu.memory_space<vmem>>, vector<32x1024xf32>
    %63 = arith.addf %61, %62 : vector<32x1024xf32>
    %c0_22 = arith.constant 0 : index
    %c0_23 = arith.constant 0 : index
    %64 = vector.load %arg5[%c0_22, %c0_23] : memref<32x1024xf32, #tpu.memory_space<vmem>>, vector<32x1024xf32>
    tpu.vector_store %arg5[%c0_22, %c0_23], %63 {strides = array<i32>} : memref<32x1024xf32, #tpu.memory_space<vmem>>, vector<32x1024xf32>,
    return
  }
  func.func @transform_0(%arg0: i32) -> (i32, i32) {
    %c0_i32 = arith.constant 0 : i32
    %c0_i32_0 = arith.constant 0 : i32
    return %c0_i32, %arg0 : i32, i32
  }
  func.func @transform_1(%arg0: i32) -> (i32, i32) {
    %c0_i32 = arith.constant 0 : i32
    %c0_i32_0 = arith.constant 0 : i32
    %c0_i32_1 = arith.constant 0 : i32
    return %c0_i32, %c0_i32_0 : i32, i32
  }
  func.func @transform_2(%arg0: i32) -> (i32, i32) {
    %c0_i32 = arith.constant 0 : i32
    %c0_i32_0 = arith.constant 0 : i32
    %c0_i32_1 = arith.constant 0 : i32
    return %c0_i32, %c0_i32_0 : i32, i32
  }
  func.func @transform_3(%arg0: i32) -> i32 {
    %c0_i32 = arith.constant 0 : i32
    %c0_i32_0 = arith.constant 0 : i32
    return %c0_i32 : i32
  }
  func.func @transform_4(%arg0: i32) -> (i32, i32) {
    %c0_i32 = arith.constant 0 : i32
    %c0_i32_0 = arith.constant 0 : i32
    return %c0_i32, %arg0 : i32, i32
  }
}

</mosaic_0001>

<llo_original>
// kernel: tpu_custom_call.1
$region0: #{tpu_custom_call.1}
  #allocation0 [shape = 'u32[]', space=smem, size = 0x4, offset = 0x4, fixed_abs, tag = 'smem constant byte address 0x4 - core index']
  #allocation1 [shape = 'u32[72,128]{1,0:T(1,128)}', space=vmem, size = 0x9000, scoped, tag = 'internal scratch']
  #allocation2 [shape = 'bf16[16,1024]{1,0:T(8,128)(2,1)}', space=vmem, size = 0x8000, scoped, tag = 'scratch operand']
  #allocation3 [shape = 'f32[1]{0:T(128)S(6)}', space=smem, size = 0x200, scoped, tag = 'scoped memory for tpu_custom_call.1']
  %s0 = inlined_call_operand.hbm [shape: f32[32,2048], index: 0, kind: input, shape index: {}, may-alias: {0,4}]
  %s1 = inlined_call_operand.vmem [shape: bf16[32,32], index: 1, kind: input, shape index: {}]
  %s2 = inlined_call_operand.vmem [shape: bf16[32,16], index: 2, kind: input, shape index: {}]
  %s3 = inlined_call_operand.<no memory space> [shape: f32[1], index: 3, kind: input, shape index: {}]
  %s4 = inlined_call_operand.hbm [shape: f32[32,2048], index: 4, kind: output, shape index: {}, may-alias: {0,4}]
  %s5 = sld [smem:[#allocation0]]
  $region53: #{tpu_custom_call.1} parent=0
    _
  %s7 = ssub.s32 1, %s5
  %s8 = scalar_select 0, %s7, %s5
  %9 = sst [smem:[#allocation3]] %s3
  $region1: #{tpu_custom_call.1} parent=0
    #allocation4 [shape = 'u8[262144]{0}', space=vmem, size = 0x40000, scoped, tag = 'input window, operand 0']
    #allocation5 [shape = 's32[2]{0}', space=sflag, size = 0x8, scoped, tag = 'scoped memory for tpu_custom_call.1']
    #allocation6 [shape = 's32[2]{0}', space=sflag, size = 0x8, scoped, tag = 'scoped memory for tpu_custom_call.1']
    #allocation7 [shape = 'u8[262144]{0}', space=vmem, size = 0x40000, scoped, tag = 'output window, operand 0']
    %10 = vsyncpa [#allocation5], 0
    %s11 = scalar_lea.sflag [#allocation5], 1
    %12 = vsyncpa %s11, 0
    %13 = vsyncpa [#allocation6], 0
    %s14 = scalar_lea.sflag [#allocation6], 1
    %15 = vsyncpa %s14, 0
    loop: start=0, step=1, limit=4
    $region2: #{tpu_custom_call.1} parent=1 // loop_pre_header
      _
    $region3: #{tpu_custom_call.1} parent=1 // loop_header
      %s17 = sphi 0, %s21
      %p18 = scmp.ge.s32.totalorder %s17, 4
      %s27 = sphi 0, %s29
      %s30 = sphi 0, %s27
      %s31 = sphi 0, %s30
      %s47 = sphi 0, %s31
      %s51 = sphi 0, %s51
      %s53 = sphi 0, %s51
      %s54 = sphi 0, %s53
      %s68 = sphi 0, %s54
      %s72 = sphi 0, %s72
      %s74 = sphi 0, %s72
      %s75 = sphi 0, %s74
      %s89 = sphi 0, %s75
      %s93 = sphi 0, %s93
      %s95 = sphi 0, %s93
      %s96 = sphi 0, %s95
      %s110 = sphi 0, %s96
      %s116 = sphi 0, %s118
      %s119 = sphi 0, %s116
      %s120 = sphi 0, %s119
      %s136 = sphi 0, %s120
    $region4: #{tpu_custom_call.1} parent=1 // loop_header_branch
      %20 = sbr.rel (%p18) target = $region8
    $region5: #{tpu_custom_call.1} parent=1 // loop_body
      %s22 = ssub.s32 %s17, 1
      %s23 = ssub.s32 %s17, 2
      %s24 = sadd.s32 %s17, 1
      %s25 = ssub.s32 %s17, %s24
      %p26 = scmp.eq.s32.totalorder %s25, 0
      %s28 = sadd.s32 %s27, 1
      %s29 = scalar_select %p26, %s27, %s28
      %p32 = pneg %p26
      %p33 = scmp.eq.s32.totalorder %s17, 1
      %p34 = por %p32, %p33
      %p35 = scmp.ne.s32.totalorder %s27, %s30
      %p36 = scmp.eq.s32.totalorder %s17, 0
      %p37 = por %p35, %p36
      %p38 = scmp.ne.s32.totalorder %s27, %s30
      %p39 = scmp.eq.s32.totalorder %s22, 1
      %p40 = por %p38, %p39
      %p41 = scmp.ne.s32.totalorder %s30, %s31
      %p42 = scmp.eq.s32.totalorder %s22, 0
      %p43 = por %p41, %p42
      %p44 = scmp.ne.s32.totalorder %s30, %s31
      %p45 = scmp.eq.s32.totalorder %s23, 1
      %p46 = por %p44, %p45
      %p48 = scmp.ne.s32.totalorder %s31, %s47
      %p49 = scmp.eq.s32.totalorder %s23, 0
      %p50 = por %p48, %p49
      %s52 = sadd.s32 %s51, 1
      %p55 = scmp.eq.s32.totalorder %s17, 1
      %p56 = scmp.ne.s32.totalorder %s51, %s53
      %p57 = scmp.eq.s32.totalorder %s17, 0
      %p58 = por %p56, %p57
      %p59 = scmp.ne.s32.totalorder %s51, %s53
      %p60 = scmp.eq.s32.totalorder %s22, 1
      %p61 = por %p59, %p60
      %p62 = scmp.ne.s32.totalorder %s53, %s54
      %p63 = scmp.eq.s32.totalorder %s22, 0
      %p64 = por %p62, %p63
      %p65 = scmp.ne.s32.totalorder %s53, %s54
      %p66 = scmp.eq.s32.totalorder %s23, 1
      %p67 = por %p65, %p66
      %p69 = scmp.ne.s32.totalorder %s54, %s68
      %p70 = scmp.eq.s32.totalorder %s23, 0
      %p71 = por %p69, %p70
      %s73 = sadd.s32 %s72, 1
      %p76 = scmp.eq.s32.totalorder %s17, 1
      %p77 = scmp.ne.s32.totalorder %s72, %s74
      %p78 = scmp.eq.s32.totalorder %s17, 0
      %p79 = por %p77, %p78
      %p80 = scmp.ne.s32.totalorder %s72, %s74
      %p81 = scmp.eq.s32.totalorder %s22, 1
      %p82 = por %p80, %p81
      %p83 = scmp.ne.s32.totalorder %s74, %s75
      %p84 = scmp.eq.s32.totalorder %s22, 0
      %p85 = por %p83, %p84
      %p86 = scmp.ne.s32.totalorder %s74, %s75
      %p87 = scmp.eq.s32.totalorder %s23, 1
      %p88 = por %p86, %p87
      %p90 = scmp.ne.s32.totalorder %s75, %s89
      %p91 = scmp.eq.s32.totalorder %s23, 0
      %p92 = por %p90, %p91
      %s94 = sadd.s32 %s93, 1
      %p97 = scmp.eq.s32.totalorder %s17, 1
      %p98 = scmp.ne.s32.totalorder %s93, %s95
      %p99 = scmp.eq.s32.totalorder %s17, 0
      %p100 = por %p98, %p99
      %p101 = scmp.ne.s32.totalorder %s93, %s95
      %p102 = scmp.eq.s32.totalorder %s22, 1
      %p103 = por %p101, %p102
      %p104 = scmp.ne.s32.totalorder %s95, %s96
      %p105 = scmp.eq.s32.totalorder %s22, 0
      %p106 = por %p104, %p105
      %p107 = scmp.ne.s32.totalorder %s95, %s96
      %p108 = scmp.eq.s32.totalorder %s23, 1
      %p109 = por %p107, %p108
      %p111 = scmp.ne.s32.totalorder %s96, %s110
      %p112 = scmp.eq.s32.totalorder %s23, 0
      %p113 = por %p111, %p112
      %s114 = ssub.s32 %s17, %s24
      %p115 = scmp.eq.s32.totalorder %s114, 0
      %s117 = sadd.s32 %s116, 1
      %s118 = scalar_select %p115, %s116, %s117
      %p121 = pneg %p115
      %p122 = scmp.eq.s32.totalorder %s17, 1
      %p123 = por %p121, %p122
      %p124 = scmp.ne.s32.totalorder %s116, %s119
      %p125 = scmp.eq.s32.totalorder %s17, 0
      %p126 = por %p124, %p125
      %p127 = scmp.ne.s32.totalorder %s116, %s119
      %p128 = scmp.eq.s32.totalorder %s22, 1
      %p129 = por %p127, %p128
      %p130 = scmp.ne.s32.totalorder %s119, %s120
      %p131 = scmp.eq.s32.totalorder %s22, 0
      %p132 = por %p130, %p131
      %p133 = scmp.ne.s32.totalorder %s119, %s120
      %p134 = scmp.eq.s32.totalorder %s23, 1
      %p135 = por %p133, %p134
      %p137 = scmp.ne.s32.totalorder %s120, %s136
      %p138 = scmp.eq.s32.totalorder %s23, 0
      %p139 = por %p137, %p138
      %p140 = scmp.le.s32.totalorder 1, %s17
      %p141 = scmp.lt.s32.totalorder %s17, 3
      %p142 = pnand %p140, %p141
      %p143 = pneg %p142
      // Predicated region
      $region9: #{tpu_custom_call.1} parent=5 // pred_check
        _
      $region10: #{tpu_custom_call.1} parent=5 // pred_check_branch
        %145 = sbr.rel (%p142) target = $region12
      $region11: #{tpu_custom_call.1} parent=5 // pred_region
        %s146 = ssub.s32 %s17, 1
        // Predicated region
        $region13: #{tpu_custom_call.1} parent=11 // pred_check
          %p147 = pneg %p64
        $region14: #{tpu_custom_call.1} parent=11 // pred_check_branch
          %149 = sbr.rel (%p147) target = $region16
        $region15: #{tpu_custom_call.1} parent=11 // pred_region
          _
        $region16: #{tpu_custom_call.1} parent=11 // pred_fallthru
          _
        // Predicated region
        $region17: #{tpu_custom_call.1} parent=11 // pred_check
          %p150 = pneg %p85
        $region18: #{tpu_custom_call.1} parent=11 // pred_check_branch
          %152 = sbr.rel (%p150) target = $region20
        $region19: #{tpu_custom_call.1} parent=11 // pred_region
          _
        $region20: #{tpu_custom_call.1} parent=11 // pred_fallthru
          _
        // Predicated region
        $region21: #{tpu_custom_call.1} parent=11 // pred_check
          %p153 = pneg %p106
        $region22: #{tpu_custom_call.1} parent=11 // pred_check_branch
          %155 = sbr.rel (%p153) target = $region24
        $region23: #{tpu_custom_call.1} parent=11 // pred_region
          _
        $region24: #{tpu_custom_call.1} parent=11 // pred_fallthru
          _
      $region12: #{tpu_custom_call.1} parent=5 // pred_fallthru
        _
      %p156 = scmp.lt.s32.totalorder %s17, 2
      // Predicated region
      $region25: #{tpu_custom_call.1} parent=5 // pred_check
        %p157 = pneg %p156
      $region26: #{tpu_custom_call.1} parent=5 // pred_check_branch
        %159 = sbr.rel (%p157) target = $region28
      $region27: #{tpu_custom_call.1} parent=5 // pred_region
        // Predicated region
        $region29: #{tpu_custom_call.1} parent=27 // pred_check
          %p160 = pneg %p37
        $region30: #{tpu_custom_call.1} parent=27 // pred_check_branch
          %162 = sbr.rel (%p160) target = $region32
        $region31: #{tpu_custom_call.1} parent=27 // pred_region
          %s163 = sand.u32 %s27, 1
          %s164 = scalar_lea.sflag [#allocation5], %s163
          %s165 = sand.u32 %s27, 1
          %s166 = smul.addr %s165, 256
          %s167 = scalar_lea.vmem [#allocation4], %s166
          %s168 = smul.u32 8, %s17
          %170 = vsyncadd %s164, 0
          %s171 = smul.addr %s168, 8
          %s172 = scalar_lea.hbm %s0, %s171
          %s173 = sshll.u32 %s172, 4
          %s174 = int_to_ptr.hbm [resolvable:$true] %s173
          %s175 = sshll.u32 %s167, 4
          %s176 = int_to_ptr.vmem [resolvable:$true] %s175
          %181 = dma.hbm_to_vmem [thread:$0]  %s174, 4096, %s176, %s164, 2048, 1024, 64
        $region32: #{tpu_custom_call.1} parent=27 // pred_fallthru
          _
      $region28: #{tpu_custom_call.1} parent=5 // pred_fallthru
        _
      %p182 = scmp.le.s32.totalorder 1, %s17
      %p183 = scmp.lt.s32.totalorder %s17, 3
      %p184 = pnand %p182, %p183
      %p185 = pneg %p184
      // Predicated region
      $region33: #{tpu_custom_call.1} parent=5 // pred_check
        _
      $region34: #{tpu_custom_call.1} parent=5 // pred_check_branch
        %187 = sbr.rel (%p184) target = $region36
      $region35: #{tpu_custom_call.1} parent=5 // pred_region
        %s188 = ssub.s32 %s17, 1
        %s189 = sand.u32 %s30, 1
        %s190 = scalar_lea.sflag [#allocation5], %s189
        %s191 = sand.u32 %s30, 1
        %s192 = smul.addr %s191, 256
        %s193 = scalar_lea.vmem [#allocation4], %s192
        // Predicated region
        $region37: #{tpu_custom_call.1} parent=35 // pred_check
          %p194 = pneg %p43
        $region38: #{tpu_custom_call.1} parent=35 // pred_check_branch
          %196 = sbr.rel (%p194) target = $region40
        $region39: #{tpu_custom_call.1} parent=35 // pred_region
          %198 = dma.done %s190, 4096
        $region40: #{tpu_custom_call.1} parent=35 // pred_fallthru
          _
        %s199 = sand.u32 %s30, 1
        %s200 = scalar_lea.sflag [#allocation5], %s199
        %s201 = sand.u32 %s30, 1
        %s202 = smul.addr %s201, 256
        %s203 = scalar_lea.vmem [#allocation4], %s202
        %p204 = pneg %p43
        %p205 = pneg %p40
        %p206 = pneg %p64
        %p207 = pneg %p61
        %p208 = pneg %p85
        %p209 = pneg %p82
        %p210 = pneg %p106
        %p211 = pneg %p103
        %p212 = pneg %p132
        %p213 = pneg %p129
        %s214 = sand.u32 %s119, 1
        %s215 = scalar_lea.sflag [#allocation6], %s214
        %s216 = sand.u32 %s119, 1
        %s217 = smul.addr %s216, 256
        %s218 = scalar_lea.vmem [#allocation7], %s217
        %s219 = smul.u32 8, %s22
        %s220 = smul.u32 8, %s22
        %v222 = vld [vmem:[%s193] sm:$0xff]
        %v223 = vld [vmem:[%s193 + $0x8] sm:$0xff]
        %v224 = vld [vmem:[%s193 + $0x10] sm:$0xff]
        %v225 = vld [vmem:[%s193 + $0x18] sm:$0xff]
        %v226 = vld [vmem:[%s193 + $0x20] sm:$0xff]
        %v227 = vld [vmem:[%s193 + $0x28] sm:$0xff]
        %v228 = vld [vmem:[%s193 + $0x30] sm:$0xff]
        %v229 = vld [vmem:[%s193 + $0x38] sm:$0xff]
        %v230 = vld [vmem:[%s193 + $0x40] sm:$0xff]
        %v231 = vld [vmem:[%s193 + $0x48] sm:$0xff]
        %v232 = vld [vmem:[%s193 + $0x50] sm:$0xff]
        %v233 = vld [vmem:[%s193 + $0x58] sm:$0xff]
        %v234 = vld [vmem:[%s193 + $0x60] sm:$0xff]
        %v235 = vld [vmem:[%s193 + $0x68] sm:$0xff]
        %v236 = vld [vmem:[%s193 + $0x70] sm:$0xff]
        %v237 = vld [vmem:[%s193 + $0x78] sm:$0xff]
        %v238 = vld [vmem:[%s193 + $0x80] sm:$0xff]
        %v239 = vld [vmem:[%s193 + $0x88] sm:$0xff]
        %v240 = vld [vmem:[%s193 + $0x90] sm:$0xff]
        %v241 = vld [vmem:[%s193 + $0x98] sm:$0xff]
        %v242 = vld [vmem:[%s193 + $0xa0] sm:$0xff]
        %v243 = vld [vmem:[%s193 + $0xa8] sm:$0xff]
        %v244 = vld [vmem:[%s193 + $0xb0] sm:$0xff]
        %v245 = vld [vmem:[%s193 + $0xb8] sm:$0xff]
        %v246 = vld [vmem:[%s193 + $0xc0] sm:$0xff]
        %v247 = vld [vmem:[%s193 + $0xc8] sm:$0xff]
        %v248 = vld [vmem:[%s193 + $0xd0] sm:$0xff]
        %v249 = vld [vmem:[%s193 + $0xd8] sm:$0xff]
        %v250 = vld [vmem:[%s193 + $0xe0] sm:$0xff]
        %v251 = vld [vmem:[%s193 + $0xe8] sm:$0xff]
        %v252 = vld [vmem:[%s193 + $0xf0] sm:$0xff]
        %v253 = vld [vmem:[%s193 + $0xf8] sm:$0xff]
        %v254 = vpack.c.bf16 %v230, %v222
        %v255 = vpack.c.bf16 %v231, %v223
        %v256 = vpack.c.bf16 %v232, %v224
        %v257 = vpack.c.bf16 %v233, %v225
        %v258 = vpack.c.bf16 %v234, %v226
        %v259 = vpack.c.bf16 %v235, %v227
        %v260 = vpack.c.bf16 %v236, %v228
        %v261 = vpack.c.bf16 %v237, %v229
        %v262 = vpack.c.bf16 %v246, %v238
        %v263 = vpack.c.bf16 %v247, %v239
        %v264 = vpack.c.bf16 %v248, %v240
        %v265 = vpack.c.bf16 %v249, %v241
        %v266 = vpack.c.bf16 %v250, %v242
        %v267 = vpack.c.bf16 %v251, %v243
        %v268 = vpack.c.bf16 %v252, %v244
        %v269 = vpack.c.bf16 %v253, %v245
        %v270 = vld [vmem:[%s1] sm:$0xf]
        %v271 = vld [vmem:[%s1 + $0x4] sm:$0xf]
        %v272 = vld [vmem:[%s1 + $0x8] sm:$0xf]
        %v273 = vld [vmem:[%s1 + $0xc] sm:$0xf]
        %s274 = sld [smem:[#allocation3]]
        %v279 = vunpack.c.l.b16 %v270
        %v280 = vunpack.c.l.b16 %v271
        %v281 = vunpack.c.l.b16 %v272
        %v282 = vunpack.c.l.b16 %v273
        %v283 = vpack.c.b16 %v280, %v279
        %v284 = vpack.c.b16 %v282, %v281
        %vm285 = vcmask 261120
        %v287 = vsel %vm285, %v283, 0
        %v290 = vsel %vm285, %v284, 0
        %292 = vmatpush.bf16.msra.mxu0 0
        %293 = vmatpush.bf16.msra.mxu0 0
        %294 = vmatpush.bf16.msra.mxu0 0
        %295 = vmatpush.bf16.msra.mxu0 0
        %296 = vmatpush.bf16.msra.mxu0 0
        %297 = vmatpush.bf16.msra.mxu0 0
        %298 = vmatpush.bf16.msra.mxu0 %v262
        %299 = vmatpush.bf16.msra.mxu0 %v254
        %300 = vmatmul.bf16.gmra.mxu0 %v287
        %v301 = vpop.f32.mrf.mxu0
        %v302 = vadd.f32 0.0, %v301
        %v303 = vpop.f32.mrf.mxu0
        %v304 = vadd.f32 0.0, %v303
        %305 = vmatmul.bf16.gmra.mxu0 %v290
        %v306 = vpop.f32.mrf.mxu0
        %v307 = vadd.f32 0.0, %v306
        %v308 = vpop.f32.mrf.mxu0
        %v309 = vadd.f32 0.0, %v308
        %310 = vdwg.mxu0
        %311 = vmatpush.bf16.msra.mxu0 0
        %312 = vmatpush.bf16.msra.mxu0 0
        %313 = vmatpush.bf16.msra.mxu0 0
        %314 = vmatpush.bf16.msra.mxu0 0
        %315 = vmatpush.bf16.msra.mxu0 0
        %316 = vmatpush.bf16.msra.mxu0 0
        %317 = vmatpush.bf16.msra.mxu0 %v263
        %318 = vmatpush.bf16.msra.mxu0 %v255
        %319 = vmatmul.bf16.gmra.mxu0 %v287
        %v320 = vpop.f32.mrf.mxu0
        %v321 = vadd.f32 0.0, %v320
        %v322 = vpop.f32.mrf.mxu0
        %v323 = vadd.f32 0.0, %v322
        %324 = vmatmul.bf16.gmra.mxu0 %v290
        %v325 = vpop.f32.mrf.mxu0
        %v326 = vadd.f32 0.0, %v325
        %v327 = vpop.f32.mrf.mxu0
        %v328 = vadd.f32 0.0, %v327
        %329 = vdwg.mxu0
        %330 = vmatpush.bf16.msra.mxu0 0
        %331 = vmatpush.bf16.msra.mxu0 0
        %332 = vmatpush.bf16.msra.mxu0 0
        %333 = vmatpush.bf16.msra.mxu0 0
        %334 = vmatpush.bf16.msra.mxu0 0
        %335 = vmatpush.bf16.msra.mxu0 0
        %336 = vmatpush.bf16.msra.mxu0 %v264
        %337 = vmatpush.bf16.msra.mxu0 %v256
        %338 = vmatmul.bf16.gmra.mxu0 %v287
        %v339 = vpop.f32.mrf.mxu0
        %v340 = vadd.f32 0.0, %v339
        %v341 = vpop.f32.mrf.mxu0
        %v342 = vadd.f32 0.0, %v341
        %343 = vmatmul.bf16.gmra.mxu0 %v290
        %v344 = vpop.f32.mrf.mxu0
        %v345 = vadd.f32 0.0, %v344
        %v346 = vpop.f32.mrf.mxu0
        %v347 = vadd.f32 0.0, %v346
        %348 = vdwg.mxu0
        %349 = vmatpush.bf16.msra.mxu0 0
        %350 = vmatpush.bf16.msra.mxu0 0
        %351 = vmatpush.bf16.msra.mxu0 0
        %352 = vmatpush.bf16.msra.mxu0 0
        %353 = vmatpush.bf16.msra.mxu0 0
        %354 = vmatpush.bf16.msra.mxu0 0
        %355 = vmatpush.bf16.msra.mxu0 %v265
        %356 = vmatpush.bf16.msra.mxu0 %v257
        %357 = vmatmul.bf16.gmra.mxu0 %v287
        %v358 = vpop.f32.mrf.mxu0
        %v359 = vadd.f32 0.0, %v358
        %v360 = vpop.f32.mrf.mxu0
        %v361 = vadd.f32 0.0, %v360
        %362 = vmatmul.bf16.gmra.mxu0 %v290
        %v363 = vpop.f32.mrf.mxu0
        %v364 = vadd.f32 0.0, %v363
        %v365 = vpop.f32.mrf.mxu0
        %v366 = vadd.f32 0.0, %v365
        %367 = vdwg.mxu0
        %368 = vmatpush.bf16.msra.mxu0 0
        %369 = vmatpush.bf16.msra.mxu0 0
        %370 = vmatpush.bf16.msra.mxu0 0
        %371 = vmatpush.bf16.msra.mxu0 0
        %372 = vmatpush.bf16.msra.mxu0 0
        %373 = vmatpush.bf16.msra.mxu0 0
        %374 = vmatpush.bf16.msra.mxu0 %v266
        %375 = vmatpush.bf16.msra.mxu0 %v258
        %376 = vmatmul.bf16.gmra.mxu0 %v287
        %v377 = vpop.f32.mrf.mxu0
        %v378 = vadd.f32 0.0, %v377
        %v379 = vpop.f32.mrf.mxu0
        %v380 = vadd.f32 0.0, %v379
        %381 = vmatmul.bf16.gmra.mxu0 %v290
        %v382 = vpop.f32.mrf.mxu0
        %v383 = vadd.f32 0.0, %v382
        %v384 = vpop.f32.mrf.mxu0
        %v385 = vadd.f32 0.0, %v384
        %386 = vdwg.mxu0
        %387 = vmatpush.bf16.msra.mxu0 0
        %388 = vmatpush.bf16.msra.mxu0 0
        %389 = vmatpush.bf16.msra.mxu0 0
        %390 = vmatpush.bf16.msra.mxu0 0
        %391 = vmatpush.bf16.msra.mxu0 0
        %392 = vmatpush.bf16.msra.mxu0 0
        %393 = vmatpush.bf16.msra.mxu0 %v267
        %394 = vmatpush.bf16.msra.mxu0 %v259
        %395 = vmatmul.bf16.gmra.mxu0 %v287
        %v396 = vpop.f32.mrf.mxu0
        %v397 = vadd.f32 0.0, %v396
        %v398 = vpop.f32.mrf.mxu0
        %v399 = vadd.f32 0.0, %v398
        %400 = vmatmul.bf16.gmra.mxu0 %v290
        %v401 = vpop.f32.mrf.mxu0
        %v402 = vadd.f32 0.0, %v401
        %v403 = vpop.f32.mrf.mxu0
        %v404 = vadd.f32 0.0, %v403
        %405 = vdwg.mxu0
        %406 = vmatpush.bf16.msra.mxu0 0
        %407 = vmatpush.bf16.msra.mxu0 0
        %408 = vmatpush.bf16.msra.mxu0 0
        %409 = vmatpush.bf16.msra.mxu0 0
        %410 = vmatpush.bf16.msra.mxu0 0
        %411 = vmatpush.bf16.msra.mxu0 0
        %412 = vmatpush.bf16.msra.mxu0 %v268
        %413 = vmatpush.bf16.msra.mxu0 %v260
        %414 = vmatmul.bf16.gmra.mxu0 %v287
        %v415 = vpop.f32.mrf.mxu0
        %v416 = vadd.f32 0.0, %v415
        %v417 = vpop.f32.mrf.mxu0
        %v418 = vadd.f32 0.0, %v417
        %419 = vmatmul.bf16.gmra.mxu0 %v290
        %v420 = vpop.f32.mrf.mxu0
        %v421 = vadd.f32 0.0, %v420
        %v422 = vpop.f32.mrf.mxu0
        %v423 = vadd.f32 0.0, %v422
        %424 = vdwg.mxu0
        %425 = vmatpush.bf16.msra.mxu0 0
        %426 = vmatpush.bf16.msra.mxu0 0
        %427 = vmatpush.bf16.msra.mxu0 0
        %428 = vmatpush.bf16.msra.mxu0 0
        %429 = vmatpush.bf16.msra.mxu0 0
        %430 = vmatpush.bf16.msra.mxu0 0
        %431 = vmatpush.bf16.msra.mxu0 %v269
        %432 = vmatpush.bf16.msra.mxu0 %v261
        %433 = vmatmul.bf16.gmra.mxu0 %v287
        %v434 = vpop.f32.mrf.mxu0
        %v435 = vadd.f32 0.0, %v434
        %v436 = vpop.f32.mrf.mxu0
        %v437 = vadd.f32 0.0, %v436
        %438 = vmatmul.bf16.gmra.mxu0 %v290
        %v439 = vpop.f32.mrf.mxu0
        %v440 = vadd.f32 0.0, %v439
        %v441 = vpop.f32.mrf.mxu0
        %v442 = vadd.f32 0.0, %v441
        %443 = vdwg.mxu0
        %v444 = vpack.c.bf16 %v321, %v302
        %v445 = vpack.c.bf16 %v359, %v340
        %v446 = vpack.c.bf16 %v397, %v378
        %v447 = vpack.c.bf16 %v435, %v416
        %v448 = vmax.f32 %v304, %v342
        %v449 = vmax.f32 %v323, %v361
        %v450 = vmax.f32 %v307, %v345
        %v451 = vmax.f32 %v326, %v364
        %v452 = vmax.f32 %v309, %v347
        %v453 = vmax.f32 %v328, %v366
        %v454 = vmax.f32 %v448, %v380
        %v455 = vmax.f32 %v449, %v399
        %v456 = vmax.f32 %v450, %v383
        %v457 = vmax.f32 %v451, %v402
        %v458 = vmax.f32 %v452, %v385
        %v459 = vmax.f32 %v453, %v404
        %v460 = vmax.f32 %v454, %v418
        %v461 = vmax.f32 %v455, %v437
        %v462 = vmax.f32 %v456, %v421
        %v463 = vmax.f32 %v457, %v440
        %v464 = vmax.f32 %v458, %v423
        %v465 = vmax.f32 %v459, %v442
        %v466 = vpack.c.bf16 %v460, %v460
        %v467 = vpack.c.bf16 %v461, %v461
        %v468 = vpack.c.bf16 %v464, %v462
        %v469 = vpack.c.bf16 %v465, %v463
        %470 = vxpose.binary.xlu0.c.b16.start [1/16] %v467, %v466, 128
        %471 = vxpose.binary.xlu0.c.b16.cont [2/16] 0, 0, 128
        %472 = vxpose.binary.xlu0.c.b16.cont [3/16] 0, 0, 128
        %473 = vxpose.binary.xlu0.c.b16.cont [4/16] 0, 0, 128
        %474 = vxpose.binary.xlu0.c.b16.cont [5/16] 0, 0, 128
        %475 = vxpose.binary.xlu0.c.b16.cont [6/16] 0, 0, 128
        %476 = vxpose.binary.xlu0.c.b16.cont [7/16] 0, 0, 128
        %477 = vxpose.binary.xlu0.c.b16.end [8/16] 0, 0, 128
        %v478 = vpop.trf.xlu0
        %v479 = vpop.trf.xlu0
        %v480 = vpop.trf.xlu0
        %v481 = vpop.trf.xlu0
        %v482 = vpop.trf.xlu0
        %v483 = vpop.trf.xlu0
        %v484 = vpop.trf.xlu0
        %v485 = vpop.trf.xlu0
        %v486 = vpop.trf.xlu0
        %v487 = vpop.trf.xlu0
        %v488 = vpop.trf.xlu0
        %v489 = vpop.trf.xlu0
        %v490 = vpop.trf.xlu0
        %v491 = vpop.trf.xlu0
        %v492 = vpop.trf.xlu0
        %v493 = vpop.trf.xlu0
        %v496 = vunpack.c.l.b16 %v444
        %v497 = vunpack.c.h.b16 %v444
        %v498 = vunpack.c.l.b16 %v445
        %v499 = vunpack.c.h.b16 %v445
        %v500 = vpack.c.b16 %v496, %v496
        %v501 = vpack.c.b16 %v497, %v497
        %v502 = vpack.c.b16 %v498, %v498
        %v503 = vpack.c.b16 %v499, %v499
        %vm504 = vcmask 64512
        %v506 = vsel %vm504, %v478, 0
        %v509 = vsel %vm504, %v480, 0
        %v512 = vsel %vm504, %v482, 0
        %v515 = vsel %vm504, %v484, 0
        %v518 = vsel %vm504, %v486, 0
        %v521 = vsel %vm504, %v488, 0
        %v524 = vsel %vm504, %v490, 0
        %v527 = vsel %vm504, %v492, 0
        %v530 = vsel %vm504, %v479, 0
        %v533 = vsel %vm504, %v481, 0
        %v536 = vsel %vm504, %v483, 0
        %v539 = vsel %vm504, %v485, 0
        %v542 = vsel %vm504, %v487, 0
        %v545 = vsel %vm504, %v489, 0
        %v548 = vsel %vm504, %v491, 0
        %v551 = vsel %vm504, %v493, 0
        %vm553 = vcmask 1043456
        %v555 = vsel %vm553, %v500, 0
        %v558 = vsel %vm553, %v501, 0
        %v561 = vsel %vm553, %v502, 0
        %v564 = vsel %vm553, %v503, 0
        %566 = vmatpush.bf16.msra.mxu0 0
        %567 = vmatpush.bf16.msra.mxu0 0
        %568 = vmatpush.bf16.msra.mxu0 0
        %569 = vmatpush.bf16.msra.mxu0 0
        %570 = vmatpush.bf16.msra.mxu0 0
        %571 = vmatpush.bf16.msra.mxu0 0
        %572 = vmatpush.bf16.msra.mxu0 0
        %573 = vmatpush.bf16.msra.mxu0 %v555
        %574 = vmatmul.bf16.gmra.mxu0 %v506
        %v575 = vpop.f32.mrf.mxu0
        %v576 = vadd.f32 0.0, %v575
        %v577 = vpop.f32.mrf.mxu0
        %v578 = vadd.f32 0.0, %v577
        %579 = vmatmul.bf16.gmra.mxu0 %v509
        %v580 = vpop.f32.mrf.mxu0
        %v581 = vadd.f32 0.0, %v580
        %v582 = vpop.f32.mrf.mxu0
        %v583 = vadd.f32 0.0, %v582
        %584 = vmatmul.bf16.gmra.mxu0 %v512
        %v585 = vpop.f32.mrf.mxu0
        %v586 = vadd.f32 0.0, %v585
        %v587 = vpop.f32.mrf.mxu0
        %v588 = vadd.f32 0.0, %v587
        %589 = vmatmul.bf16.gmra.mxu0 %v515
        %v590 = vpop.f32.mrf.mxu0
        %v591 = vadd.f32 0.0, %v590
        %v592 = vpop.f32.mrf.mxu0
        %v593 = vadd.f32 0.0, %v592
        %594 = vmatmul.bf16.gmra.mxu0 %v518
        %v595 = vpop.f32.mrf.mxu0
        %v596 = vadd.f32 0.0, %v595
        %v597 = vpop.f32.mrf.mxu0
        %v598 = vadd.f32 0.0, %v597
        %599 = vmatmul.bf16.gmra.mxu0 %v521
        %v600 = vpop.f32.mrf.mxu0
        %v601 = vadd.f32 0.0, %v600
        %v602 = vpop.f32.mrf.mxu0
        %v603 = vadd.f32 0.0, %v602
        %604 = vmatmul.bf16.gmra.mxu0 %v524
        %v605 = vpop.f32.mrf.mxu0
        %v606 = vadd.f32 0.0, %v605
        %v607 = vpop.f32.mrf.mxu0
        %v608 = vadd.f32 0.0, %v607
        %609 = vmatmul.bf16.gmra.mxu0 %v527
        %v610 = vpop.f32.mrf.mxu0
        %v611 = vadd.f32 0.0, %v610
        %v612 = vpop.f32.mrf.mxu0
        %v613 = vadd.f32 0.0, %v612
        %614 = vmatmul.bf16.gmra.mxu0 %v530
        %v615 = vpop.f32.mrf.mxu0
        %v616 = vadd.f32 0.0, %v615
        %v617 = vpop.f32.mrf.mxu0
        %v618 = vadd.f32 0.0, %v617
        %619 = vmatmul.bf16.gmra.mxu0 %v533
        %v620 = vpop.f32.mrf.mxu0
        %v621 = vadd.f32 0.0, %v620
        %v622 = vpop.f32.mrf.mxu0
        %v623 = vadd.f32 0.0, %v622
        %624 = vmatmul.bf16.gmra.mxu0 %v536
        %v625 = vpop.f32.mrf.mxu0
        %v626 = vadd.f32 0.0, %v625
        %v627 = vpop.f32.mrf.mxu0
        %v628 = vadd.f32 0.0, %v627
        %629 = vmatmul.bf16.gmra.mxu0 %v539
        %v630 = vpop.f32.mrf.mxu0
        %v631 = vadd.f32 0.0, %v630
        %v632 = vpop.f32.mrf.mxu0
        %v633 = vadd.f32 0.0, %v632
        %634 = vmatmul.bf16.gmra.mxu0 %v542
        %v635 = vpop.f32.mrf.mxu0
        %v636 = vadd.f32 0.0, %v635
        %v637 = vpop.f32.mrf.mxu0
        %v638 = vadd.f32 0.0, %v637
        %639 = vmatmul.bf16.gmra.mxu0 %v545
        %v640 = vpop.f32.mrf.mxu0
        %v641 = vadd.f32 0.0, %v640
        %v642 = vpop.f32.mrf.mxu0
        %v643 = vadd.f32 0.0, %v642
        %644 = vmatmul.bf16.gmra.mxu0 %v548
        %v645 = vpop.f32.mrf.mxu0
        %v646 = vadd.f32 0.0, %v645
        %v647 = vpop.f32.mrf.mxu0
        %v648 = vadd.f32 0.0, %v647
        %649 = vmatmul.bf16.gmra.mxu0 %v551
        %v650 = vpop.f32.mrf.mxu0
        %v651 = vadd.f32 0.0, %v650
        %v652 = vpop.f32.mrf.mxu0
        %v653 = vadd.f32 0.0, %v652
        %654 = vdwg.mxu0
        %655 = vmatpush.bf16.msra.mxu0 0
        %656 = vmatpush.bf16.msra.mxu0 0
        %657 = vmatpush.bf16.msra.mxu0 0
        %658 = vmatpush.bf16.msra.mxu0 0
        %659 = vmatpush.bf16.msra.mxu0 0
        %660 = vmatpush.bf16.msra.mxu0 0
        %661 = vmatpush.bf16.msra.mxu0 0
        %662 = vmatpush.bf16.msra.mxu0 %v558
        %663 = vmatmul.bf16.gmra.mxu0 %v506
        %v664 = vpop.f32.mrf.mxu0
        %v665 = vadd.f32 0.0, %v664
        %v666 = vpop.f32.mrf.mxu0
        %v667 = vadd.f32 0.0, %v666
        %668 = vmatmul.bf16.gmra.mxu0 %v509
        %v669 = vpop.f32.mrf.mxu0
        %v670 = vadd.f32 0.0, %v669
        %v671 = vpop.f32.mrf.mxu0
        %v672 = vadd.f32 0.0, %v671
        %673 = vmatmul.bf16.gmra.mxu0 %v512
        %v674 = vpop.f32.mrf.mxu0
        %v675 = vadd.f32 0.0, %v674
        %v676 = vpop.f32.mrf.mxu0
        %v677 = vadd.f32 0.0, %v676
        %678 = vmatmul.bf16.gmra.mxu0 %v515
        %v679 = vpop.f32.mrf.mxu0
        %v680 = vadd.f32 0.0, %v679
        %v681 = vpop.f32.mrf.mxu0
        %v682 = vadd.f32 0.0, %v681
        %683 = vmatmul.bf16.gmra.mxu0 %v518
        %v684 = vpop.f32.mrf.mxu0
        %v685 = vadd.f32 0.0, %v684
        %v686 = vpop.f32.mrf.mxu0
        %v687 = vadd.f32 0.0, %v686
        %688 = vmatmul.bf16.gmra.mxu0 %v521
        %v689 = vpop.f32.mrf.mxu0
        %v690 = vadd.f32 0.0, %v689
        %v691 = vpop.f32.mrf.mxu0
        %v692 = vadd.f32 0.0, %v691
        %693 = vmatmul.bf16.gmra.mxu0 %v524
        %v694 = vpop.f32.mrf.mxu0
        %v695 = vadd.f32 0.0, %v694
        %v696 = vpop.f32.mrf.mxu0
        %v697 = vadd.f32 0.0, %v696
        %698 = vmatmul.bf16.gmra.mxu0 %v527
        %v699 = vpop.f32.mrf.mxu0
        %v700 = vadd.f32 0.0, %v699
        %v701 = vpop.f32.mrf.mxu0
        %v702 = vadd.f32 0.0, %v701
        %703 = vmatmul.bf16.gmra.mxu0 %v530
        %v704 = vpop.f32.mrf.mxu0
        %v705 = vadd.f32 0.0, %v704
        %v706 = vpop.f32.mrf.mxu0
        %v707 = vadd.f32 0.0, %v706
        %708 = vmatmul.bf16.gmra.mxu0 %v533
        %v709 = vpop.f32.mrf.mxu0
        %v710 = vadd.f32 0.0, %v709
        %v711 = vpop.f32.mrf.mxu0
        %v712 = vadd.f32 0.0, %v711
        %713 = vmatmul.bf16.gmra.mxu0 %v536
        %v714 = vpop.f32.mrf.mxu0
        %v715 = vadd.f32 0.0, %v714
        %v716 = vpop.f32.mrf.mxu0
        %v717 = vadd.f32 0.0, %v716
        %718 = vmatmul.bf16.gmra.mxu0 %v539
        %v719 = vpop.f32.mrf.mxu0
        %v720 = vadd.f32 0.0, %v719
        %v721 = vpop.f32.mrf.mxu0
        %v722 = vadd.f32 0.0, %v721
        %723 = vmatmul.bf16.gmra.mxu0 %v542
        %v724 = vpop.f32.mrf.mxu0
        %v725 = vadd.f32 0.0, %v724
        %v726 = vpop.f32.mrf.mxu0
        %v727 = vadd.f32 0.0, %v726
        %728 = vmatmul.bf16.gmra.mxu0 %v545
        %v729 = vpop.f32.mrf.mxu0
        %v730 = vadd.f32 0.0, %v729
        %v731 = vpop.f32.mrf.mxu0
        %v732 = vadd.f32 0.0, %v731
        %733 = vmatmul.bf16.gmra.mxu0 %v548
        %v734 = vpop.f32.mrf.mxu0
        %v735 = vadd.f32 0.0, %v734
        %v736 = vpop.f32.mrf.mxu0
        %v737 = vadd.f32 0.0, %v736
        %738 = vmatmul.bf16.gmra.mxu0 %v551
        %v739 = vpop.f32.mrf.mxu0
        %v740 = vadd.f32 0.0, %v739
        %v741 = vpop.f32.mrf.mxu0
        %v742 = vadd.f32 0.0, %v741
        %743 = vdwg.mxu0
        %744 = vmatpush.bf16.msra.mxu0 0
        %745 = vmatpush.bf16.msra.mxu0 0
        %746 = vmatpush.bf16.msra.mxu0 0
        %747 = vmatpush.bf16.msra.mxu0 0
        %748 = vmatpush.bf16.msra.mxu0 0
        %749 = vmatpush.bf16.msra.mxu0 0
        %750 = vmatpush.bf16.msra.mxu0 0
        %751 = vmatpush.bf16.msra.mxu0 %v561
        %752 = vmatmul.bf16.gmra.mxu0 %v506
        %v753 = vpop.f32.mrf.mxu0
        %v754 = vadd.f32 0.0, %v753
        %v755 = vpop.f32.mrf.mxu0
        %v756 = vadd.f32 0.0, %v755
        %757 = vmatmul.bf16.gmra.mxu0 %v509
        %v758 = vpop.f32.mrf.mxu0
        %v759 = vadd.f32 0.0, %v758
        %v760 = vpop.f32.mrf.mxu0
        %v761 = vadd.f32 0.0, %v760
        %762 = vmatmul.bf16.gmra.mxu0 %v512
        %v763 = vpop.f32.mrf.mxu0
        %v764 = vadd.f32 0.0, %v763
        %v765 = vpop.f32.mrf.mxu0
        %v766 = vadd.f32 0.0, %v765
        %767 = vmatmul.bf16.gmra.mxu0 %v515
        %v768 = vpop.f32.mrf.mxu0
        %v769 = vadd.f32 0.0, %v768
        %v770 = vpop.f32.mrf.mxu0
        %v771 = vadd.f32 0.0, %v770
        %772 = vmatmul.bf16.gmra.mxu0 %v518
        %v773 = vpop.f32.mrf.mxu0
        %v774 = vadd.f32 0.0, %v773
        %v775 = vpop.f32.mrf.mxu0
        %v776 = vadd.f32 0.0, %v775
        %777 = vmatmul.bf16.gmra.mxu0 %v521
        %v778 = vpop.f32.mrf.mxu0
        %v779 = vadd.f32 0.0, %v778
        %v780 = vpop.f32.mrf.mxu0
        %v781 = vadd.f32 0.0, %v780
        %782 = vmatmul.bf16.gmra.mxu0 %v524
        %v783 = vpop.f32.mrf.mxu0
        %v784 = vadd.f32 0.0, %v783
        %v785 = vpop.f32.mrf.mxu0
        %v786 = vadd.f32 0.0, %v785
        %787 = vmatmul.bf16.gmra.mxu0 %v527
        %v788 = vpop.f32.mrf.mxu0
        %v789 = vadd.f32 0.0, %v788
        %v790 = vpop.f32.mrf.mxu0
        %v791 = vadd.f32 0.0, %v790
        %792 = vmatmul.bf16.gmra.mxu0 %v530
        %v793 = vpop.f32.mrf.mxu0
        %v794 = vadd.f32 0.0, %v793
        %v795 = vpop.f32.mrf.mxu0
        %v796 = vadd.f32 0.0, %v795
        %797 = vmatmul.bf16.gmra.mxu0 %v533
        %v798 = vpop.f32.mrf.mxu0
        %v799 = vadd.f32 0.0, %v798
        %v800 = vpop.f32.mrf.mxu0
        %v801 = vadd.f32 0.0, %v800
        %802 = vmatmul.bf16.gmra.mxu0 %v536
        %v803 = vpop.f32.mrf.mxu0
        %v804 = vadd.f32 0.0, %v803
        %v805 = vpop.f32.mrf.mxu0
        %v806 = vadd.f32 0.0, %v805
        %807 = vmatmul.bf16.gmra.mxu0 %v539
        %v808 = vpop.f32.mrf.mxu0
        %v809 = vadd.f32 0.0, %v808
        %v810 = vpop.f32.mrf.mxu0
        %v811 = vadd.f32 0.0, %v810
        %812 = vmatmul.bf16.gmra.mxu0 %v542
        %v813 = vpop.f32.mrf.mxu0
        %v814 = vadd.f32 0.0, %v813
        %v815 = vpop.f32.mrf.mxu0
        %v816 = vadd.f32 0.0, %v815
        %817 = vmatmul.bf16.gmra.mxu0 %v545
        %v818 = vpop.f32.mrf.mxu0
        %v819 = vadd.f32 0.0, %v818
        %v820 = vpop.f32.mrf.mxu0
        %v821 = vadd.f32 0.0, %v820
        %822 = vmatmul.bf16.gmra.mxu0 %v548
        %v823 = vpop.f32.mrf.mxu0
        %v824 = vadd.f32 0.0, %v823
        %v825 = vpop.f32.mrf.mxu0
        %v826 = vadd.f32 0.0, %v825
        %827 = vmatmul.bf16.gmra.mxu0 %v551
        %v828 = vpop.f32.mrf.mxu0
        %v829 = vadd.f32 0.0, %v828
        %v830 = vpop.f32.mrf.mxu0
        %v831 = vadd.f32 0.0, %v830
        %832 = vdwg.mxu0
        %833 = vmatpush.bf16.msra.mxu0 0
        %834 = vmatpush.bf16.msra.mxu0 0
        %835 = vmatpush.bf16.msra.mxu0 0
        %836 = vmatpush.bf16.msra.mxu0 0
        %837 = vmatpush.bf16.msra.mxu0 0
        %838 = vmatpush.bf16.msra.mxu0 0
        %839 = vmatpush.bf16.msra.mxu0 0
        %840 = vmatpush.bf16.msra.mxu0 %v564
        %841 = vmatmul.bf16.gmra.mxu0 %v506
        %v842 = vpop.f32.mrf.mxu0
        %v843 = vadd.f32 0.0, %v842
        %v844 = vpop.f32.mrf.mxu0
        %v845 = vadd.f32 0.0, %v844
        %846 = vmatmul.bf16.gmra.mxu0 %v509
        %v847 = vpop.f32.mrf.mxu0
        %v848 = vadd.f32 0.0, %v847
        %v849 = vpop.f32.mrf.mxu0
        %v850 = vadd.f32 0.0, %v849
        %851 = vmatmul.bf16.gmra.mxu0 %v512
        %v852 = vpop.f32.mrf.mxu0
        %v853 = vadd.f32 0.0, %v852
        %v854 = vpop.f32.mrf.mxu0
        %v855 = vadd.f32 0.0, %v854
        %856 = vmatmul.bf16.gmra.mxu0 %v515
        %v857 = vpop.f32.mrf.mxu0
        %v858 = vadd.f32 0.0, %v857
        %v859 = vpop.f32.mrf.mxu0
        %v860 = vadd.f32 0.0, %v859
        %861 = vmatmul.bf16.gmra.mxu0 %v518
        %v862 = vpop.f32.mrf.mxu0
        %v863 = vadd.f32 0.0, %v862
        %v864 = vpop.f32.mrf.mxu0
        %v865 = vadd.f32 0.0, %v864
        %866 = vmatmul.bf16.gmra.mxu0 %v521
        %v867 = vpop.f32.mrf.mxu0
        %v868 = vadd.f32 0.0, %v867
        %v869 = vpop.f32.mrf.mxu0
        %v870 = vadd.f32 0.0, %v869
        %871 = vmatmul.bf16.gmra.mxu0 %v524
        %v872 = vpop.f32.mrf.mxu0
        %v873 = vadd.f32 0.0, %v872
        %v874 = vpop.f32.mrf.mxu0
        %v875 = vadd.f32 0.0, %v874
        %876 = vmatmul.bf16.gmra.mxu0 %v527
        %v877 = vpop.f32.mrf.mxu0
        %v878 = vadd.f32 0.0, %v877
        %v879 = vpop.f32.mrf.mxu0
        %v880 = vadd.f32 0.0, %v879
        %881 = vmatmul.bf16.gmra.mxu0 %v530
        %v882 = vpop.f32.mrf.mxu0
        %v883 = vadd.f32 0.0, %v882
        %v884 = vpop.f32.mrf.mxu0
        %v885 = vadd.f32 0.0, %v884
        %886 = vmatmul.bf16.gmra.mxu0 %v533
        %v887 = vpop.f32.mrf.mxu0
        %v888 = vadd.f32 0.0, %v887
        %v889 = vpop.f32.mrf.mxu0
        %v890 = vadd.f32 0.0, %v889
        %891 = vmatmul.bf16.gmra.mxu0 %v536
        %v892 = vpop.f32.mrf.mxu0
        %v893 = vadd.f32 0.0, %v892
        %v894 = vpop.f32.mrf.mxu0
        %v895 = vadd.f32 0.0, %v894
        %896 = vmatmul.bf16.gmra.mxu0 %v539
        %v897 = vpop.f32.mrf.mxu0
        %v898 = vadd.f32 0.0, %v897
        %v899 = vpop.f32.mrf.mxu0
        %v900 = vadd.f32 0.0, %v899
        %901 = vmatmul.bf16.gmra.mxu0 %v542
        %v902 = vpop.f32.mrf.mxu0
        %v903 = vadd.f32 0.0, %v902
        %v904 = vpop.f32.mrf.mxu0
        %v905 = vadd.f32 0.0, %v904
        %906 = vmatmul.bf16.gmra.mxu0 %v545
        %v907 = vpop.f32.mrf.mxu0
        %v908 = vadd.f32 0.0, %v907
        %v909 = vpop.f32.mrf.mxu0
        %v910 = vadd.f32 0.0, %v909
        %911 = vmatmul.bf16.gmra.mxu0 %v548
        %v912 = vpop.f32.mrf.mxu0
        %v913 = vadd.f32 0.0, %v912
        %v914 = vpop.f32.mrf.mxu0
        %v915 = vadd.f32 0.0, %v914
        %916 = vmatmul.bf16.gmra.mxu0 %v551
        %v917 = vpop.f32.mrf.mxu0
        %v918 = vadd.f32 0.0, %v917
        %v919 = vpop.f32.mrf.mxu0
        %v920 = vadd.f32 0.0, %v919
        %921 = vdwg.mxu0
        %v922 = vmax.f32 %v576, %v578
        %v923 = vmax.f32 %v922, %v581
        %v924 = vmax.f32 %v923, %v583
        %v925 = vmax.f32 %v924, %v586
        %v926 = vmax.f32 %v925, %v588
        %v927 = vmax.f32 %v926, %v591
        %v928 = vmax.f32 %v927, %v593
        %v929 = vmax.f32 %v928, %v596
        %v930 = vmax.f32 %v929, %v598
        %v931 = vmax.f32 %v930, %v601
        %v932 = vmax.f32 %v931, %v603
        %v933 = vmax.f32 %v932, %v606
        %v934 = vmax.f32 %v933, %v608
        %v935 = vmax.f32 %v934, %v611
        %v936 = vmax.f32 %v935, %v613
        %v937 = vmax.f32 %v936, %v616
        %v938 = vmax.f32 %v937, %v618
        %v939 = vmax.f32 %v938, %v621
        %v940 = vmax.f32 %v939, %v623
        %v941 = vmax.f32 %v940, %v626
        %v942 = vmax.f32 %v941, %v628
        %v943 = vmax.f32 %v942, %v631
        %v944 = vmax.f32 %v943, %v633
        %v945 = vmax.f32 %v944, %v636
        %v946 = vmax.f32 %v945, %v638
        %v947 = vmax.f32 %v946, %v641
        %v948 = vmax.f32 %v947, %v643
        %v949 = vmax.f32 %v948, %v646
        %v950 = vmax.f32 %v949, %v648
        %v951 = vmax.f32 %v950, %v651
        %v952 = vmax.f32 %v951, %v653
        %v953 = vrot.slane %v952, 4
        %v954 = vmax.f32 %v952, %v953
        %v955 = vrot.slane %v954, 2
        %v956 = vmax.f32 %v954, %v955
        %v957 = vrot.slane %v956, 1
        %v958 = vmax.f32 %v956, %v957
        %v959 = vmax.f32 %v665, %v667
        %v960 = vmax.f32 %v959, %v670
        %v961 = vmax.f32 %v960, %v672
        %v962 = vmax.f32 %v961, %v675
        %v963 = vmax.f32 %v962, %v677
        %v964 = vmax.f32 %v963, %v680
        %v965 = vmax.f32 %v964, %v682
        %v966 = vmax.f32 %v965, %v685
        %v967 = vmax.f32 %v966, %v687
        %v968 = vmax.f32 %v967, %v690
        %v969 = vmax.f32 %v968, %v692
        %v970 = vmax.f32 %v969, %v695
        %v971 = vmax.f32 %v970, %v697
        %v972 = vmax.f32 %v971, %v700
        %v973 = vmax.f32 %v972, %v702
        %v974 = vmax.f32 %v973, %v705
        %v975 = vmax.f32 %v974, %v707
        %v976 = vmax.f32 %v975, %v710
        %v977 = vmax.f32 %v976, %v712
        %v978 = vmax.f32 %v977, %v715
        %v979 = vmax.f32 %v978, %v717
        %v980 = vmax.f32 %v979, %v720
        %v981 = vmax.f32 %v980, %v722
        %v982 = vmax.f32 %v981, %v725
        %v983 = vmax.f32 %v982, %v727
        %v984 = vmax.f32 %v983, %v730
        %v985 = vmax.f32 %v984, %v732
        %v986 = vmax.f32 %v985, %v735
        %v987 = vmax.f32 %v986, %v737
        %v988 = vmax.f32 %v987, %v740
        %v989 = vmax.f32 %v988, %v742
        %v990 = vrot.slane %v989, 4
        %v991 = vmax.f32 %v989, %v990
        %v992 = vrot.slane %v991, 2
        %v993 = vmax.f32 %v991, %v992
        %v994 = vrot.slane %v993, 1
        %v995 = vmax.f32 %v993, %v994
        %v996 = vmax.f32 %v754, %v756
        %v997 = vmax.f32 %v996, %v759
        %v998 = vmax.f32 %v997, %v761
        %v999 = vmax.f32 %v998, %v764
        %v1000 = vmax.f32 %v999, %v766
        %v1001 = vmax.f32 %v1000, %v769
        %v1002 = vmax.f32 %v1001, %v771
        %v1003 = vmax.f32 %v1002, %v774
        %v1004 = vmax.f32 %v1003, %v776
        %v1005 = vmax.f32 %v1004, %v779
        %v1006 = vmax.f32 %v1005, %v781
        %v1007 = vmax.f32 %v1006, %v784
        %v1008 = vmax.f32 %v1007, %v786
        %v1009 = vmax.f32 %v1008, %v789
        %v1010 = vmax.f32 %v1009, %v791
        %v1011 = vmax.f32 %v1010, %v794
        %v1012 = vmax.f32 %v1011, %v796
        %v1013 = vmax.f32 %v1012, %v799
        %v1014 = vmax.f32 %v1013, %v801
        %v1015 = vmax.f32 %v1014, %v804
        %v1016 = vmax.f32 %v1015, %v806
        %v1017 = vmax.f32 %v1016, %v809
        %v1018 = vmax.f32 %v1017, %v811
        %v1019 = vmax.f32 %v1018, %v814
        %v1020 = vmax.f32 %v1019, %v816
        %v1021 = vmax.f32 %v1020, %v819
        %v1022 = vmax.f32 %v1021, %v821
        %v1023 = vmax.f32 %v1022, %v824
        %v1024 = vmax.f32 %v1023, %v826
        %v1025 = vmax.f32 %v1024, %v829
        %v1026 = vmax.f32 %v1025, %v831
        %v1027 = vrot.slane %v1026, 4
        %v1028 = vmax.f32 %v1026, %v1027
        %v1029 = vrot.slane %v1028, 2
        %v1030 = vmax.f32 %v1028, %v1029
        %v1031 = vrot.slane %v1030, 1
        %v1032 = vmax.f32 %v1030, %v1031
        %v1033 = vmax.f32 %v843, %v845
        %v1034 = vmax.f32 %v1033, %v848
        %v1035 = vmax.f32 %v1034, %v850
        %v1036 = vmax.f32 %v1035, %v853
        %v1037 = vmax.f32 %v1036, %v855
        %v1038 = vmax.f32 %v1037, %v858
        %v1039 = vmax.f32 %v1038, %v860
        %v1040 = vmax.f32 %v1039, %v863
        %v1041 = vmax.f32 %v1040, %v865
        %v1042 = vmax.f32 %v1041, %v868
        %v1043 = vmax.f32 %v1042, %v870
        %v1044 = vmax.f32 %v1043, %v873
        %v1045 = vmax.f32 %v1044, %v875
        %v1046 = vmax.f32 %v1045, %v878
        %v1047 = vmax.f32 %v1046, %v880
        %v1048 = vmax.f32 %v1047, %v883
        %v1049 = vmax.f32 %v1048, %v885
        %v1050 = vmax.f32 %v1049, %v888
        %v1051 = vmax.f32 %v1050, %v890
        %v1052 = vmax.f32 %v1051, %v893
        %v1053 = vmax.f32 %v1052, %v895
        %v1054 = vmax.f32 %v1053, %v898
        %v1055 = vmax.f32 %v1054, %v900
        %v1056 = vmax.f32 %v1055, %v903
        %v1057 = vmax.f32 %v1056, %v905
        %v1058 = vmax.f32 %v1057, %v908
        %v1059 = vmax.f32 %v1058, %v910
        %v1060 = vmax.f32 %v1059, %v913
        %v1061 = vmax.f32 %v1060, %v915
        %v1062 = vmax.f32 %v1061, %v918
        %v1063 = vmax.f32 %v1062, %v920
        %v1064 = vrot.slane %v1063, 4
        %v1065 = vmax.f32 %v1063, %v1064
        %v1066 = vrot.slane %v1065, 2
        %v1067 = vmax.f32 %v1065, %v1066
        %v1068 = vrot.slane %v1067, 1
        %v1069 = vmax.f32 %v1067, %v1068
        %v1070 = vsub.f32 %v576, %v958
        %v1071 = vsub.f32 %v665, %v995
        %v1072 = vsub.f32 %v754, %v1032
        %v1073 = vsub.f32 %v843, %v1069
        %v1074 = vsub.f32 %v578, %v958
        %v1075 = vsub.f32 %v667, %v995
        %v1076 = vsub.f32 %v756, %v1032
        %v1077 = vsub.f32 %v845, %v1069
        %v1078 = vsub.f32 %v581, %v958
        %v1079 = vsub.f32 %v670, %v995
        %v1080 = vsub.f32 %v759, %v1032
        %v1081 = vsub.f32 %v848, %v1069
        %v1082 = vsub.f32 %v583, %v958
        %v1083 = vsub.f32 %v672, %v995
        %v1084 = vsub.f32 %v761, %v1032
        %v1085 = vsub.f32 %v850, %v1069
        %v1086 = vsub.f32 %v586, %v958
        %v1087 = vsub.f32 %v675, %v995
        %v1088 = vsub.f32 %v764, %v1032
        %v1089 = vsub.f32 %v853, %v1069
        %v1090 = vsub.f32 %v588, %v958
        %v1091 = vsub.f32 %v677, %v995
        %v1092 = vsub.f32 %v766, %v1032
        %v1093 = vsub.f32 %v855, %v1069
        %v1094 = vsub.f32 %v591, %v958
        %v1095 = vsub.f32 %v680, %v995
        %v1096 = vsub.f32 %v769, %v1032
        %v1097 = vsub.f32 %v858, %v1069
        %v1098 = vsub.f32 %v593, %v958
        %v1099 = vsub.f32 %v682, %v995
        %v1100 = vsub.f32 %v771, %v1032
        %v1101 = vsub.f32 %v860, %v1069
        %v1102 = vsub.f32 %v596, %v958
        %v1103 = vsub.f32 %v685, %v995
        %v1104 = vsub.f32 %v774, %v1032
        %v1105 = vsub.f32 %v863, %v1069
        %v1106 = vsub.f32 %v598, %v958
        %v1107 = vsub.f32 %v687, %v995
        %v1108 = vsub.f32 %v776, %v1032
        %v1109 = vsub.f32 %v865, %v1069
        %v1110 = vsub.f32 %v601, %v958
        %v1111 = vsub.f32 %v690, %v995
        %v1112 = vsub.f32 %v779, %v1032
        %v1113 = vsub.f32 %v868, %v1069
        %v1114 = vsub.f32 %v603, %v958
        %v1115 = vsub.f32 %v692, %v995
        %v1116 = vsub.f32 %v781, %v1032
        %v1117 = vsub.f32 %v870, %v1069
        %v1118 = vsub.f32 %v606, %v958
        %v1119 = vsub.f32 %v695, %v995
        %v1120 = vsub.f32 %v784, %v1032
        %v1121 = vsub.f32 %v873, %v1069
        %v1122 = vsub.f32 %v608, %v958
        %v1123 = vsub.f32 %v697, %v995
        %v1124 = vsub.f32 %v786, %v1032
        %v1125 = vsub.f32 %v875, %v1069
        %v1126 = vsub.f32 %v611, %v958
        %v1127 = vsub.f32 %v700, %v995
        %v1128 = vsub.f32 %v789, %v1032
        %v1129 = vsub.f32 %v878, %v1069
        %v1130 = vsub.f32 %v613, %v958
        %v1131 = vsub.f32 %v702, %v995
        %v1132 = vsub.f32 %v791, %v1032
        %v1133 = vsub.f32 %v880, %v1069
        %v1134 = vsub.f32 %v616, %v958
        %v1135 = vsub.f32 %v705, %v995
        %v1136 = vsub.f32 %v794, %v1032
        %v1137 = vsub.f32 %v883, %v1069
        %v1138 = vsub.f32 %v618, %v958
        %v1139 = vsub.f32 %v707, %v995
        %v1140 = vsub.f32 %v796, %v1032
        %v1141 = vsub.f32 %v885, %v1069
        %v1142 = vsub.f32 %v621, %v958
        %v1143 = vsub.f32 %v710, %v995
        %v1144 = vsub.f32 %v799, %v1032
        %v1145 = vsub.f32 %v888, %v1069
        %v1146 = vsub.f32 %v623, %v958
        %v1147 = vsub.f32 %v712, %v995
        %v1148 = vsub.f32 %v801, %v1032
        %v1149 = vsub.f32 %v890, %v1069
        %v1150 = vsub.f32 %v626, %v958
        %v1151 = vsub.f32 %v715, %v995
        %v1152 = vsub.f32 %v804, %v1032
        %v1153 = vsub.f32 %v893, %v1069
        %v1154 = vsub.f32 %v628, %v958
        %v1155 = vsub.f32 %v717, %v995
        %v1156 = vsub.f32 %v806, %v1032
        %v1157 = vsub.f32 %v895, %v1069
        %v1158 = vsub.f32 %v631, %v958
        %v1159 = vsub.f32 %v720, %v995
        %v1160 = vsub.f32 %v809, %v1032
        %v1161 = vsub.f32 %v898, %v1069
        %v1162 = vsub.f32 %v633, %v958
        %v1163 = vsub.f32 %v722, %v995
        %v1164 = vsub.f32 %v811, %v1032
        %v1165 = vsub.f32 %v900, %v1069
        %v1166 = vsub.f32 %v636, %v958
        %v1167 = vsub.f32 %v725, %v995
        %v1168 = vsub.f32 %v814, %v1032
        %v1169 = vsub.f32 %v903, %v1069
        %v1170 = vsub.f32 %v638, %v958
        %v1171 = vsub.f32 %v727, %v995
        %v1172 = vsub.f32 %v816, %v1032
        %v1173 = vsub.f32 %v905, %v1069
        %v1174 = vsub.f32 %v641, %v958
        %v1175 = vsub.f32 %v730, %v995
        %v1176 = vsub.f32 %v819, %v1032
        %v1177 = vsub.f32 %v908, %v1069
        %v1178 = vsub.f32 %v643, %v958
        %v1179 = vsub.f32 %v732, %v995
        %v1180 = vsub.f32 %v821, %v1032
        %v1181 = vsub.f32 %v910, %v1069
        %v1182 = vsub.f32 %v646, %v958
        %v1183 = vsub.f32 %v735, %v995
        %v1184 = vsub.f32 %v824, %v1032
        %v1185 = vsub.f32 %v913, %v1069
        %v1186 = vsub.f32 %v648, %v958
        %v1187 = vsub.f32 %v737, %v995
        %v1188 = vsub.f32 %v826, %v1032
        %v1189 = vsub.f32 %v915, %v1069
        %v1190 = vsub.f32 %v651, %v958
        %v1191 = vsub.f32 %v740, %v995
        %v1192 = vsub.f32 %v829, %v1032
        %v1193 = vsub.f32 %v918, %v1069
        %v1194 = vsub.f32 %v653, %v958
        %v1195 = vsub.f32 %v742, %v995
        %v1196 = vsub.f32 %v831, %v1032
        %v1197 = vsub.f32 %v920, %v1069
        %v1198 = vmul.f32 %v1070, 1.442695
        %v1199 = vpow.pop %v1198
        %v1200 = vmul.f32 %v1071, 1.442695
        %v1201 = vpow.pop %v1200
        %v1202 = vmul.f32 %v1072, 1.442695
        %v1203 = vpow.pop %v1202
        %v1204 = vmul.f32 %v1073, 1.442695
        %v1205 = vpow.pop %v1204
        %v1206 = vmul.f32 %v1074, 1.442695
        %v1207 = vpow.pop %v1206
        %v1208 = vmul.f32 %v1075, 1.442695
        %v1209 = vpow.pop %v1208
        %v1210 = vmul.f32 %v1076, 1.442695
        %v1211 = vpow.pop %v1210
        %v1212 = vmul.f32 %v1077, 1.442695
        %v1213 = vpow.pop %v1212
        %v1214 = vmul.f32 %v1078, 1.442695
        %v1215 = vpow.pop %v1214
        %v1216 = vmul.f32 %v1079, 1.442695
        %v1217 = vpow.pop %v1216
        %v1218 = vmul.f32 %v1080, 1.442695
        %v1219 = vpow.pop %v1218
        %v1220 = vmul.f32 %v1081, 1.442695
        %v1221 = vpow.pop %v1220
        %v1222 = vmul.f32 %v1082, 1.442695
        %v1223 = vpow.pop %v1222
        %v1224 = vmul.f32 %v1083, 1.442695
        %v1225 = vpow.pop %v1224
        %v1226 = vmul.f32 %v1084, 1.442695
        %v1227 = vpow.pop %v1226
        %v1228 = vmul.f32 %v1085, 1.442695
        %v1229 = vpow.pop %v1228
        %v1230 = vmul.f32 %v1086, 1.442695
        %v1231 = vpow.pop %v1230
        %v1232 = vmul.f32 %v1087, 1.442695
        %v1233 = vpow.pop %v1232
        %v1234 = vmul.f32 %v1088, 1.442695
        %v1235 = vpow.pop %v1234
        %v1236 = vmul.f32 %v1089, 1.442695
        %v1237 = vpow.pop %v1236
        %v1238 = vmul.f32 %v1090, 1.442695
        %v1239 = vpow.pop %v1238
        %v1240 = vmul.f32 %v1091, 1.442695
        %v1241 = vpow.pop %v1240
        %v1242 = vmul.f32 %v1092, 1.442695
        %v1243 = vpow.pop %v1242
        %v1244 = vmul.f32 %v1093, 1.442695
        %v1245 = vpow.pop %v1244
        %v1246 = vmul.f32 %v1094, 1.442695
        %v1247 = vpow.pop %v1246
        %v1248 = vmul.f32 %v1095, 1.442695
        %v1249 = vpow.pop %v1248
        %v1250 = vmul.f32 %v1096, 1.442695
        %v1251 = vpow.pop %v1250
        %v1252 = vmul.f32 %v1097, 1.442695
        %v1253 = vpow.pop %v1252
        %v1254 = vmul.f32 %v1098, 1.442695
        %v1255 = vpow.pop %v1254
        %v1256 = vmul.f32 %v1099, 1.442695
        %v1257 = vpow.pop %v1256
        %v1258 = vmul.f32 %v1100, 1.442695
        %v1259 = vpow.pop %v1258
        %v1260 = vmul.f32 %v1101, 1.442695
        %v1261 = vpow.pop %v1260
        %v1262 = vmul.f32 %v1102, 1.442695
        %v1263 = vpow.pop %v1262
        %v1264 = vmul.f32 %v1103, 1.442695
        %v1265 = vpow.pop %v1264
        %v1266 = vmul.f32 %v1104, 1.442695
        %v1267 = vpow.pop %v1266
        %v1268 = vmul.f32 %v1105, 1.442695
        %v1269 = vpow.pop %v1268
        %v1270 = vmul.f32 %v1106, 1.442695
        %v1271 = vpow.pop %v1270
        %v1272 = vmul.f32 %v1107, 1.442695
        %v1273 = vpow.pop %v1272
        %v1274 = vmul.f32 %v1108, 1.442695
        %v1275 = vpow.pop %v1274
        %v1276 = vmul.f32 %v1109, 1.442695
        %v1277 = vpow.pop %v1276
        %v1278 = vmul.f32 %v1110, 1.442695
        %v1279 = vpow.pop %v1278
        %v1280 = vmul.f32 %v1111, 1.442695
        %v1281 = vpow.pop %v1280
        %v1282 = vmul.f32 %v1112, 1.442695
        %v1283 = vpow.pop %v1282
        %v1284 = vmul.f32 %v1113, 1.442695
        %v1285 = vpow.pop %v1284
        %v1286 = vmul.f32 %v1114, 1.442695
        %v1287 = vpow.pop %v1286
        %v1288 = vmul.f32 %v1115, 1.442695
        %v1289 = vpow.pop %v1288
        %v1290 = vmul.f32 %v1116, 1.442695
        %v1291 = vpow.pop %v1290
        %v1292 = vmul.f32 %v1117, 1.442695
        %v1293 = vpow.pop %v1292
        %v1294 = vmul.f32 %v1118, 1.442695
        %v1295 = vpow.pop %v1294
        %v1296 = vmul.f32 %v1119, 1.442695
        %v1297 = vpow.pop %v1296
        %v1298 = vmul.f32 %v1120, 1.442695
        %v1299 = vpow.pop %v1298
        %v1300 = vmul.f32 %v1121, 1.442695
        %v1301 = vpow.pop %v1300
        %v1302 = vmul.f32 %v1122, 1.442695
        %v1303 = vpow.pop %v1302
        %v1304 = vmul.f32 %v1123, 1.442695
        %v1305 = vpow.pop %v1304
        %v1306 = vmul.f32 %v1124, 1.442695
        %v1307 = vpow.pop %v1306
        %v1308 = vmul.f32 %v1125, 1.442695
        %v1309 = vpow.pop %v1308
        %v1310 = vmul.f32 %v1126, 1.442695
        %v1311 = vpow.pop %v1310
        %v1312 = vmul.f32 %v1127, 1.442695
        %v1313 = vpow.pop %v1312
        %v1314 = vmul.f32 %v1128, 1.442695
        %v1315 = vpow.pop %v1314
        %v1316 = vmul.f32 %v1129, 1.442695
        %v1317 = vpow.pop %v1316
        %v1318 = vmul.f32 %v1130, 1.442695
        %v1319 = vpow.pop %v1318
        %v1320 = vmul.f32 %v1131, 1.442695
        %v1321 = vpow.pop %v1320
        %v1322 = vmul.f32 %v1132, 1.442695
        %v1323 = vpow.pop %v1322
        %v1324 = vmul.f32 %v1133, 1.442695
        %v1325 = vpow.pop %v1324
        %v1326 = vmul.f32 %v1134, 1.442695
        %v1327 = vpow.pop %v1326
        %v1328 = vmul.f32 %v1135, 1.442695
        %v1329 = vpow.pop %v1328
        %v1330 = vmul.f32 %v1136, 1.442695
        %v1331 = vpow.pop %v1330
        %v1332 = vmul.f32 %v1137, 1.442695
        %v1333 = vpow.pop %v1332
        %v1334 = vmul.f32 %v1138, 1.442695
        %v1335 = vpow.pop %v1334
        %v1336 = vmul.f32 %v1139, 1.442695
        %v1337 = vpow.pop %v1336
        %v1338 = vmul.f32 %v1140, 1.442695
        %v1339 = vpow.pop %v1338
        %v1340 = vmul.f32 %v1141, 1.442695
        %v1341 = vpow.pop %v1340
        %v1342 = vmul.f32 %v1142, 1.442695
        %v1343 = vpow.pop %v1342
        %v1344 = vmul.f32 %v1143, 1.442695
        %v1345 = vpow.pop %v1344
        %v1346 = vmul.f32 %v1144, 1.442695
        %v1347 = vpow.pop %v1346
        %v1348 = vmul.f32 %v1145, 1.442695
        %v1349 = vpow.pop %v1348
        %v1350 = vmul.f32 %v1146, 1.442695
        %v1351 = vpow.pop %v1350
        %v1352 = vmul.f32 %v1147, 1.442695
        %v1353 = vpow.pop %v1352
        %v1354 = vmul.f32 %v1148, 1.442695
        %v1355 = vpow.pop %v1354
        %v1356 = vmul.f32 %v1149, 1.442695
        %v1357 = vpow.pop %v1356
        %v1358 = vmul.f32 %v1150, 1.442695
        %v1359 = vpow.pop %v1358
        %v1360 = vmul.f32 %v1151, 1.442695
        %v1361 = vpow.pop %v1360
        %v1362 = vmul.f32 %v1152, 1.442695
        %v1363 = vpow.pop %v1362
        %v1364 = vmul.f32 %v1153, 1.442695
        %v1365 = vpow.pop %v1364
        %v1366 = vmul.f32 %v1154, 1.442695
        %v1367 = vpow.pop %v1366
        %v1368 = vmul.f32 %v1155, 1.442695
        %v1369 = vpow.pop %v1368
        %v1370 = vmul.f32 %v1156, 1.442695
        %v1371 = vpow.pop %v1370
        %v1372 = vmul.f32 %v1157, 1.442695
        %v1373 = vpow.pop %v1372
        %v1374 = vmul.f32 %v1158, 1.442695
        %v1375 = vpow.pop %v1374
        %v1376 = vmul.f32 %v1159, 1.442695
        %v1377 = vpow.pop %v1376
        %v1378 = vmul.f32 %v1160, 1.442695
        %v1379 = vpow.pop %v1378
        %v1380 = vmul.f32 %v1161, 1.442695
        %v1381 = vpow.pop %v1380
        %v1382 = vmul.f32 %v1162, 1.442695
        %v1383 = vpow.pop %v1382
        %v1384 = vmul.f32 %v1163, 1.442695
        %v1385 = vpow.pop %v1384
        %v1386 = vmul.f32 %v1164, 1.442695
        %v1387 = vpow.pop %v1386
        %v1388 = vmul.f32 %v1165, 1.442695
        %v1389 = vpow.pop %v1388
        %v1390 = vmul.f32 %v1166, 1.442695
        %v1391 = vpow.pop %v1390
        %v1392 = vmul.f32 %v1167, 1.442695
        %v1393 = vpow.pop %v1392
        %v1394 = vmul.f32 %v1168, 1.442695
        %v1395 = vpow.pop %v1394
        %v1396 = vmul.f32 %v1169, 1.442695
        %v1397 = vpow.pop %v1396
        %v1398 = vmul.f32 %v1170, 1.442695
        %v1399 = vpow.pop %v1398
        %v1400 = vmul.f32 %v1171, 1.442695
        %v1401 = vpow.pop %v1400
        %v1402 = vmul.f32 %v1172, 1.442695
        %v1403 = vpow.pop %v1402
        %v1404 = vmul.f32 %v1173, 1.442695
        %v1405 = vpow.pop %v1404
        %v1406 = vmul.f32 %v1174, 1.442695
        %v1407 = vpow.pop %v1406
        %v1408 = vmul.f32 %v1175, 1.442695
        %v1409 = vpow.pop %v1408
        %v1410 = vmul.f32 %v1176, 1.442695
        %v1411 = vpow.pop %v1410
        %v1412 = vmul.f32 %v1177, 1.442695
        %v1413 = vpow.pop %v1412
        %v1414 = vmul.f32 %v1178, 1.442695
        %v1415 = vpow.pop %v1414
        %v1416 = vmul.f32 %v1179, 1.442695
        %v1417 = vpow.pop %v1416
        %v1418 = vmul.f32 %v1180, 1.442695
        %v1419 = vpow.pop %v1418
        %v1420 = vmul.f32 %v1181, 1.442695
        %v1421 = vpow.pop %v1420
        %v1422 = vmul.f32 %v1182, 1.442695
        %v1423 = vpow.pop %v1422
        %v1424 = vmul.f32 %v1183, 1.442695
        %v1425 = vpow.pop %v1424
        %v1426 = vmul.f32 %v1184, 1.442695
        %v1427 = vpow.pop %v1426
        %v1428 = vmul.f32 %v1185, 1.442695
        %v1429 = vpow.pop %v1428
        %v1430 = vmul.f32 %v1186, 1.442695
        %v1431 = vpow.pop %v1430
        %v1432 = vmul.f32 %v1187, 1.442695
        %v1433 = vpow.pop %v1432
        %v1434 = vmul.f32 %v1188, 1.442695
        %v1435 = vpow.pop %v1434
        %v1436 = vmul.f32 %v1189, 1.442695
        %v1437 = vpow.pop %v1436
        %v1438 = vmul.f32 %v1190, 1.442695
        %v1439 = vpow.pop %v1438
        %v1440 = vmul.f32 %v1191, 1.442695
        %v1441 = vpow.pop %v1440
        %v1442 = vmul.f32 %v1192, 1.442695
        %v1443 = vpow.pop %v1442
        %v1444 = vmul.f32 %v1193, 1.442695
        %v1445 = vpow.pop %v1444
        %v1446 = vmul.f32 %v1194, 1.442695
        %v1447 = vpow.pop %v1446
        %v1448 = vmul.f32 %v1195, 1.442695
        %v1449 = vpow.pop %v1448
        %v1450 = vmul.f32 %v1196, 1.442695
        %v1451 = vpow.pop %v1450
        %v1452 = vmul.f32 %v1197, 1.442695
        %v1453 = vpow.pop %v1452
        %v1454 = vadd.f32 %v1199, %v1207
        %v1455 = vadd.f32 %v1454, %v1215
        %v1456 = vadd.f32 %v1455, %v1223
        %v1457 = vadd.f32 %v1456, %v1231
        %v1458 = vadd.f32 %v1457, %v1239
        %v1459 = vadd.f32 %v1458, %v1247
        %v1460 = vadd.f32 %v1459, %v1255
        %v1461 = vadd.f32 %v1460, %v1263
        %v1462 = vadd.f32 %v1461, %v1271
        %v1463 = vadd.f32 %v1462, %v1279
        %v1464 = vadd.f32 %v1463, %v1287
        %v1465 = vadd.f32 %v1464, %v1295
        %v1466 = vadd.f32 %v1465, %v1303
        %v1467 = vadd.f32 %v1466, %v1311
        %v1468 = vadd.f32 %v1467, %v1319
        %v1469 = vadd.f32 %v1468, %v1327
        %v1470 = vadd.f32 %v1469, %v1335
        %v1471 = vadd.f32 %v1470, %v1343
        %v1472 = vadd.f32 %v1471, %v1351
        %v1473 = vadd.f32 %v1472, %v1359
        %v1474 = vadd.f32 %v1473, %v1367
        %v1475 = vadd.f32 %v1474, %v1375
        %v1476 = vadd.f32 %v1475, %v1383
        %v1477 = vadd.f32 %v1476, %v1391
        %v1478 = vadd.f32 %v1477, %v1399
        %v1479 = vadd.f32 %v1478, %v1407
        %v1480 = vadd.f32 %v1479, %v1415
        %v1481 = vadd.f32 %v1480, %v1423
        %v1482 = vadd.f32 %v1481, %v1431
        %v1483 = vadd.f32 %v1482, %v1439
        %v1484 = vadd.f32 %v1483, %v1447
        %v1485 = vrot.slane %v1484, 4
        %v1486 = vadd.f32 %v1484, %v1485
        %v1487 = vrot.slane %v1486, 2
        %v1488 = vadd.f32 %v1486, %v1487
        %v1489 = vrot.slane %v1488, 1
        %v1490 = vadd.f32 %v1488, %v1489
        %v1491 = vadd.f32 %v1201, %v1209
        %v1492 = vadd.f32 %v1491, %v1217
        %v1493 = vadd.f32 %v1492, %v1225
        %v1494 = vadd.f32 %v1493, %v1233
        %v1495 = vadd.f32 %v1494, %v1241
        %v1496 = vadd.f32 %v1495, %v1249
        %v1497 = vadd.f32 %v1496, %v1257
        %v1498 = vadd.f32 %v1497, %v1265
        %v1499 = vadd.f32 %v1498, %v1273
        %v1500 = vadd.f32 %v1499, %v1281
        %v1501 = vadd.f32 %v1500, %v1289
        %v1502 = vadd.f32 %v1501, %v1297
        %v1503 = vadd.f32 %v1502, %v1305
        %v1504 = vadd.f32 %v1503, %v1313
        %v1505 = vadd.f32 %v1504, %v1321
        %v1506 = vadd.f32 %v1505, %v1329
        %v1507 = vadd.f32 %v1506, %v1337
        %v1508 = vadd.f32 %v1507, %v1345
        %v1509 = vadd.f32 %v1508, %v1353
        %v1510 = vadd.f32 %v1509, %v1361
        %v1511 = vadd.f32 %v1510, %v1369
        %v1512 = vadd.f32 %v1511, %v1377
        %v1513 = vadd.f32 %v1512, %v1385
        %v1514 = vadd.f32 %v1513, %v1393
        %v1515 = vadd.f32 %v1514, %v1401
        %v1516 = vadd.f32 %v1515, %v1409
        %v1517 = vadd.f32 %v1516, %v1417
        %v1518 = vadd.f32 %v1517, %v1425
        %v1519 = vadd.f32 %v1518, %v1433
        %v1520 = vadd.f32 %v1519, %v1441
        %v1521 = vadd.f32 %v1520, %v1449
        %v1522 = vrot.slane %v1521, 4
        %v1523 = vadd.f32 %v1521, %v1522
        %v1524 = vrot.slane %v1523, 2
        %v1525 = vadd.f32 %v1523, %v1524
        %v1526 = vrot.slane %v1525, 1
        %v1527 = vadd.f32 %v1525, %v1526
        %v1528 = vadd.f32 %v1203, %v1211
        %v1529 = vadd.f32 %v1528, %v1219
        %v1530 = vadd.f32 %v1529, %v1227
        %v1531 = vadd.f32 %v1530, %v1235
        %v1532 = vadd.f32 %v1531, %v1243
        %v1533 = vadd.f32 %v1532, %v1251
        %v1534 = vadd.f32 %v1533, %v1259
        %v1535 = vadd.f32 %v1534, %v1267
        %v1536 = vadd.f32 %v1535, %v1275
        %v1537 = vadd.f32 %v1536, %v1283
        %v1538 = vadd.f32 %v1537, %v1291
        %v1539 = vadd.f32 %v1538, %v1299
        %v1540 = vadd.f32 %v1539, %v1307
        %v1541 = vadd.f32 %v1540, %v1315
        %v1542 = vadd.f32 %v1541, %v1323
        %v1543 = vadd.f32 %v1542, %v1331
        %v1544 = vadd.f32 %v1543, %v1339
        %v1545 = vadd.f32 %v1544, %v1347
        %v1546 = vadd.f32 %v1545, %v1355
        %v1547 = vadd.f32 %v1546, %v1363
        %v1548 = vadd.f32 %v1547, %v1371
        %v1549 = vadd.f32 %v1548, %v1379
        %v1550 = vadd.f32 %v1549, %v1387
        %v1551 = vadd.f32 %v1550, %v1395
        %v1552 = vadd.f32 %v1551, %v1403
        %v1553 = vadd.f32 %v1552, %v1411
        %v1554 = vadd.f32 %v1553, %v1419
        %v1555 = vadd.f32 %v1554, %v1427
        %v1556 = vadd.f32 %v1555, %v1435
        %v1557 = vadd.f32 %v1556, %v1443
        %v1558 = vadd.f32 %v1557, %v1451
        %v1559 = vrot.slane %v1558, 4
        %v1560 = vadd.f32 %v1558, %v1559
        %v1561 = vrot.slane %v1560, 2
        %v1562 = vadd.f32 %v1560, %v1561
        %v1563 = vrot.slane %v1562, 1
        %v1564 = vadd.f32 %v1562, %v1563
        %v1565 = vadd.f32 %v1205, %v1213
        %v1566 = vadd.f32 %v1565, %v1221
        %v1567 = vadd.f32 %v1566, %v1229
        %v1568 = vadd.f32 %v1567, %v1237
        %v1569 = vadd.f32 %v1568, %v1245
        %v1570 = vadd.f32 %v1569, %v1253
        %v1571 = vadd.f32 %v1570, %v1261
        %v1572 = vadd.f32 %v1571, %v1269
        %v1573 = vadd.f32 %v1572, %v1277
        %v1574 = vadd.f32 %v1573, %v1285
        %v1575 = vadd.f32 %v1574, %v1293
        %v1576 = vadd.f32 %v1575, %v1301
        %v1577 = vadd.f32 %v1576, %v1309
        %v1578 = vadd.f32 %v1577, %v1317
        %v1579 = vadd.f32 %v1578, %v1325
        %v1580 = vadd.f32 %v1579, %v1333
        %v1581 = vadd.f32 %v1580, %v1341
        %v1582 = vadd.f32 %v1581, %v1349
        %v1583 = vadd.f32 %v1582, %v1357
        %v1584 = vadd.f32 %v1583, %v1365
        %v1585 = vadd.f32 %v1584, %v1373
        %v1586 = vadd.f32 %v1585, %v1381
        %v1587 = vadd.f32 %v1586, %v1389
        %v1588 = vadd.f32 %v1587, %v1397
        %v1589 = vadd.f32 %v1588, %v1405
        %v1590 = vadd.f32 %v1589, %v1413
        %v1591 = vadd.f32 %v1590, %v1421
        %v1592 = vadd.f32 %v1591, %v1429
        %v1593 = vadd.f32 %v1592, %v1437
        %v1594 = vadd.f32 %v1593, %v1445
        %v1595 = vadd.f32 %v1594, %v1453
        %v1596 = vrot.slane %v1595, 4
        %v1597 = vadd.f32 %v1595, %v1596
        %v1598 = vrot.slane %v1597, 2
        %v1599 = vadd.f32 %v1597, %v1598
        %v1600 = vrot.slane %v1599, 1
        %v1601 = vadd.f32 %v1599, %v1600
        %v1602 = vrcp.pop %v1490
        %v1603 = vrcp.pop %v1527
        %v1604 = vrcp.pop %v1564
        %v1605 = vrcp.pop %v1601
        %v1606 = vmul.f32 %v1199, %v1602
        %v1607 = vmul.f32 %v1201, %v1603
        %v1608 = vmul.f32 %v1203, %v1604
        %v1609 = vmul.f32 %v1205, %v1605
        %v1610 = vmul.f32 %v1207, %v1602
        %v1611 = vmul.f32 %v1209, %v1603
        %v1612 = vmul.f32 %v1211, %v1604
        %v1613 = vmul.f32 %v1213, %v1605
        %v1614 = vmul.f32 %v1215, %v1602
        %v1615 = vmul.f32 %v1217, %v1603
        %v1616 = vmul.f32 %v1219, %v1604
        %v1617 = vmul.f32 %v1221, %v1605
        %v1618 = vmul.f32 %v1223, %v1602
        %v1619 = vmul.f32 %v1225, %v1603
        %v1620 = vmul.f32 %v1227, %v1604
        %v1621 = vmul.f32 %v1229, %v1605
        %v1622 = vmul.f32 %v1231, %v1602
        %v1623 = vmul.f32 %v1233, %v1603
        %v1624 = vmul.f32 %v1235, %v1604
        %v1625 = vmul.f32 %v1237, %v1605
        %v1626 = vmul.f32 %v1239, %v1602
        %v1627 = vmul.f32 %v1241, %v1603
        %v1628 = vmul.f32 %v1243, %v1604
        %v1629 = vmul.f32 %v1245, %v1605
        %v1630 = vmul.f32 %v1247, %v1602
        %v1631 = vmul.f32 %v1249, %v1603
        %v1632 = vmul.f32 %v1251, %v1604
        %v1633 = vmul.f32 %v1253, %v1605
        %v1634 = vmul.f32 %v1255, %v1602
        %v1635 = vmul.f32 %v1257, %v1603
        %v1636 = vmul.f32 %v1259, %v1604
        %v1637 = vmul.f32 %v1261, %v1605
        %v1638 = vmul.f32 %v1263, %v1602
        %v1639 = vmul.f32 %v1265, %v1603
        %v1640 = vmul.f32 %v1267, %v1604
        %v1641 = vmul.f32 %v1269, %v1605
        %v1642 = vmul.f32 %v1271, %v1602
        %v1643 = vmul.f32 %v1273, %v1603
        %v1644 = vmul.f32 %v1275, %v1604
        %v1645 = vmul.f32 %v1277, %v1605
        %v1646 = vmul.f32 %v1279, %v1602
        %v1647 = vmul.f32 %v1281, %v1603
        %v1648 = vmul.f32 %v1283, %v1604
        %v1649 = vmul.f32 %v1285, %v1605
        %v1650 = vmul.f32 %v1287, %v1602
        %v1651 = vmul.f32 %v1289, %v1603
        %v1652 = vmul.f32 %v1291, %v1604
        %v1653 = vmul.f32 %v1293, %v1605
        %v1654 = vmul.f32 %v1295, %v1602
        %v1655 = vmul.f32 %v1297, %v1603
        %v1656 = vmul.f32 %v1299, %v1604
        %v1657 = vmul.f32 %v1301, %v1605
        %v1658 = vmul.f32 %v1303, %v1602
        %v1659 = vmul.f32 %v1305, %v1603
        %v1660 = vmul.f32 %v1307, %v1604
        %v1661 = vmul.f32 %v1309, %v1605
        %v1662 = vmul.f32 %v1311, %v1602
        %v1663 = vmul.f32 %v1313, %v1603
        %v1664 = vmul.f32 %v1315, %v1604
        %v1665 = vmul.f32 %v1317, %v1605
        %v1666 = vmul.f32 %v1319, %v1602
        %v1667 = vmul.f32 %v1321, %v1603
        %v1668 = vmul.f32 %v1323, %v1604
        %v1669 = vmul.f32 %v1325, %v1605
        %v1670 = vmul.f32 %v1327, %v1602
        %v1671 = vmul.f32 %v1329, %v1603
        %v1672 = vmul.f32 %v1331, %v1604
        %v1673 = vmul.f32 %v1333, %v1605
        %v1674 = vmul.f32 %v1335, %v1602
        %v1675 = vmul.f32 %v1337, %v1603
        %v1676 = vmul.f32 %v1339, %v1604
        %v1677 = vmul.f32 %v1341, %v1605
        %v1678 = vmul.f32 %v1343, %v1602
        %v1679 = vmul.f32 %v1345, %v1603
        %v1680 = vmul.f32 %v1347, %v1604
        %v1681 = vmul.f32 %v1349, %v1605
        %v1682 = vmul.f32 %v1351, %v1602
        %v1683 = vmul.f32 %v1353, %v1603
        %v1684 = vmul.f32 %v1355, %v1604
        %v1685 = vmul.f32 %v1357, %v1605
        %v1686 = vmul.f32 %v1359, %v1602
        %v1687 = vmul.f32 %v1361, %v1603
        %v1688 = vmul.f32 %v1363, %v1604
        %v1689 = vmul.f32 %v1365, %v1605
        %v1690 = vmul.f32 %v1367, %v1602
        %v1691 = vmul.f32 %v1369, %v1603
        %v1692 = vmul.f32 %v1371, %v1604
        %v1693 = vmul.f32 %v1373, %v1605
        %v1694 = vmul.f32 %v1375, %v1602
        %v1695 = vmul.f32 %v1377, %v1603
        %v1696 = vmul.f32 %v1379, %v1604
        %v1697 = vmul.f32 %v1381, %v1605
        %v1698 = vmul.f32 %v1383, %v1602
        %v1699 = vmul.f32 %v1385, %v1603
        %v1700 = vmul.f32 %v1387, %v1604
        %v1701 = vmul.f32 %v1389, %v1605
        %v1702 = vmul.f32 %v1391, %v1602
        %v1703 = vmul.f32 %v1393, %v1603
        %v1704 = vmul.f32 %v1395, %v1604
        %v1705 = vmul.f32 %v1397, %v1605
        %v1706 = vmul.f32 %v1399, %v1602
        %v1707 = vmul.f32 %v1401, %v1603
        %v1708 = vmul.f32 %v1403, %v1604
        %v1709 = vmul.f32 %v1405, %v1605
        %v1710 = vmul.f32 %v1407, %v1602
        %v1711 = vmul.f32 %v1409, %v1603
        %v1712 = vmul.f32 %v1411, %v1604
        %v1713 = vmul.f32 %v1413, %v1605
        %v1714 = vmul.f32 %v1415, %v1602
        %v1715 = vmul.f32 %v1417, %v1603
        %v1716 = vmul.f32 %v1419, %v1604
        %v1717 = vmul.f32 %v1421, %v1605
        %v1718 = vmul.f32 %v1423, %v1602
        %v1719 = vmul.f32 %v1425, %v1603
        %v1720 = vmul.f32 %v1427, %v1604
        %v1721 = vmul.f32 %v1429, %v1605
        %v1722 = vmul.f32 %v1431, %v1602
        %v1723 = vmul.f32 %v1433, %v1603
        %v1724 = vmul.f32 %v1435, %v1604
        %v1725 = vmul.f32 %v1437, %v1605
        %v1726 = vmul.f32 %v1439, %v1602
        %v1727 = vmul.f32 %v1441, %v1603
        %v1728 = vmul.f32 %v1443, %v1604
        %v1729 = vmul.f32 %v1445, %v1605
        %v1730 = vmul.f32 %v1447, %v1602
        %v1731 = vmul.f32 %v1449, %v1603
        %v1732 = vmul.f32 %v1451, %v1604
        %v1733 = vmul.f32 %v1453, %v1605
        %v1734 = vpack.c.bf16 %v1610, %v1606
        %v1735 = vpack.c.bf16 %v1611, %v1607
        %v1736 = vpack.c.bf16 %v1612, %v1608
        %v1737 = vpack.c.bf16 %v1613, %v1609
        %v1738 = vpack.c.bf16 %v1618, %v1614
        %v1739 = vpack.c.bf16 %v1619, %v1615
        %v1740 = vpack.c.bf16 %v1620, %v1616
        %v1741 = vpack.c.bf16 %v1621, %v1617
        %v1742 = vpack.c.bf16 %v1626, %v1622
        %v1743 = vpack.c.bf16 %v1627, %v1623
        %v1744 = vpack.c.bf16 %v1628, %v1624
        %v1745 = vpack.c.bf16 %v1629, %v1625
        %v1746 = vpack.c.bf16 %v1634, %v1630
        %v1747 = vpack.c.bf16 %v1635, %v1631
        %v1748 = vpack.c.bf16 %v1636, %v1632
        %v1749 = vpack.c.bf16 %v1637, %v1633
        %v1750 = vpack.c.bf16 %v1642, %v1638
        %v1751 = vpack.c.bf16 %v1643, %v1639
        %v1752 = vpack.c.bf16 %v1644, %v1640
        %v1753 = vpack.c.bf16 %v1645, %v1641
        %v1754 = vpack.c.bf16 %v1650, %v1646
        %v1755 = vpack.c.bf16 %v1651, %v1647
        %v1756 = vpack.c.bf16 %v1652, %v1648
        %v1757 = vpack.c.bf16 %v1653, %v1649
        %v1758 = vpack.c.bf16 %v1658, %v1654
        %v1759 = vpack.c.bf16 %v1659, %v1655
        %v1760 = vpack.c.bf16 %v1660, %v1656
        %v1761 = vpack.c.bf16 %v1661, %v1657
        %v1762 = vpack.c.bf16 %v1666, %v1662
        %v1763 = vpack.c.bf16 %v1667, %v1663
        %v1764 = vpack.c.bf16 %v1668, %v1664
        %v1765 = vpack.c.bf16 %v1669, %v1665
        %v1766 = vpack.c.bf16 %v1674, %v1670
        %v1767 = vpack.c.bf16 %v1675, %v1671
        %v1768 = vpack.c.bf16 %v1676, %v1672
        %v1769 = vpack.c.bf16 %v1677, %v1673
        %v1770 = vpack.c.bf16 %v1682, %v1678
        %v1771 = vpack.c.bf16 %v1683, %v1679
        %v1772 = vpack.c.bf16 %v1684, %v1680
        %v1773 = vpack.c.bf16 %v1685, %v1681
        %v1774 = vpack.c.bf16 %v1690, %v1686
        %v1775 = vpack.c.bf16 %v1691, %v1687
        %v1776 = vpack.c.bf16 %v1692, %v1688
        %v1777 = vpack.c.bf16 %v1693, %v1689
        %v1778 = vpack.c.bf16 %v1698, %v1694
        %v1779 = vpack.c.bf16 %v1699, %v1695
        %v1780 = vpack.c.bf16 %v1700, %v1696
        %v1781 = vpack.c.bf16 %v1701, %v1697
        %v1782 = vpack.c.bf16 %v1706, %v1702
        %v1783 = vpack.c.bf16 %v1707, %v1703
        %v1784 = vpack.c.bf16 %v1708, %v1704
        %v1785 = vpack.c.bf16 %v1709, %v1705
        %v1786 = vpack.c.bf16 %v1714, %v1710
        %v1787 = vpack.c.bf16 %v1715, %v1711
        %v1788 = vpack.c.bf16 %v1716, %v1712
        %v1789 = vpack.c.bf16 %v1717, %v1713
        %v1790 = vpack.c.bf16 %v1722, %v1718
        %v1791 = vpack.c.bf16 %v1723, %v1719
        %v1792 = vpack.c.bf16 %v1724, %v1720
        %v1793 = vpack.c.bf16 %v1725, %v1721
        %v1794 = vpack.c.bf16 %v1730, %v1726
        %v1795 = vpack.c.bf16 %v1731, %v1727
        %v1796 = vpack.c.bf16 %v1732, %v1728
        %v1797 = vpack.c.bf16 %v1733, %v1729
        %1798 = vmatpush.bf16.msra.mxu0 %v1762
        %1799 = vmatpush.bf16.msra.mxu0 %v1758
        %1800 = vmatpush.bf16.msra.mxu0 %v1754
        %1801 = vmatpush.bf16.msra.mxu0 %v1750
        %1802 = vmatpush.bf16.msra.mxu0 %v1746
        %1803 = vmatpush.bf16.msra.mxu0 %v1742
        %1804 = vmatpush.bf16.msra.mxu0 %v1738
        %1805 = vmatpush.bf16.msra.mxu0 %v1734
        %1806 = vmatmul.bf16.gmra.mxu0 %v468
        %v1807 = vpop.f32.mrf.mxu0
        %v1808 = vadd.f32 0.0, %v1807
        %v1809 = vpop.f32.mrf.mxu0
        %v1810 = vadd.f32 0.0, %v1809
        %1811 = vdwg.mxu0
        %1812 = vmatpush.bf16.msra.mxu0 %v1794
        %1813 = vmatpush.bf16.msra.mxu0 %v1790
        %1814 = vmatpush.bf16.msra.mxu0 %v1786
        %1815 = vmatpush.bf16.msra.mxu0 %v1782
        %1816 = vmatpush.bf16.msra.mxu0 %v1778
        %1817 = vmatpush.bf16.msra.mxu0 %v1774
        %1818 = vmatpush.bf16.msra.mxu0 %v1770
        %1819 = vmatpush.bf16.msra.mxu0 %v1766
        %1820 = vmatmul.bf16.gmra.mxu0 %v469
        %v1821 = vpop.f32.mrf.mxu0
        %v1822 = vadd.f32 %v1808, %v1821
        %v1823 = vpop.f32.mrf.mxu0
        %v1824 = vadd.f32 %v1810, %v1823
        %1825 = vdwg.mxu0
        %1826 = vmatpush.bf16.msra.mxu0 %v1763
        %1827 = vmatpush.bf16.msra.mxu0 %v1759
        %1828 = vmatpush.bf16.msra.mxu0 %v1755
        %1829 = vmatpush.bf16.msra.mxu0 %v1751
        %1830 = vmatpush.bf16.msra.mxu0 %v1747
        %1831 = vmatpush.bf16.msra.mxu0 %v1743
        %1832 = vmatpush.bf16.msra.mxu0 %v1739
        %1833 = vmatpush.bf16.msra.mxu0 %v1735
        %1834 = vmatmul.bf16.gmra.mxu0 %v468
        %v1835 = vpop.f32.mrf.mxu0
        %v1836 = vadd.f32 0.0, %v1835
        %v1837 = vpop.f32.mrf.mxu0
        %v1838 = vadd.f32 0.0, %v1837
        %1839 = vdwg.mxu0
        %1840 = vmatpush.bf16.msra.mxu0 %v1795
        %1841 = vmatpush.bf16.msra.mxu0 %v1791
        %1842 = vmatpush.bf16.msra.mxu0 %v1787
        %1843 = vmatpush.bf16.msra.mxu0 %v1783
        %1844 = vmatpush.bf16.msra.mxu0 %v1779
        %1845 = vmatpush.bf16.msra.mxu0 %v1775
        %1846 = vmatpush.bf16.msra.mxu0 %v1771
        %1847 = vmatpush.bf16.msra.mxu0 %v1767
        %1848 = vmatmul.bf16.gmra.mxu0 %v469
        %v1849 = vpop.f32.mrf.mxu0
        %v1850 = vadd.f32 %v1836, %v1849
        %v1851 = vpop.f32.mrf.mxu0
        %v1852 = vadd.f32 %v1838, %v1851
        %1853 = vdwg.mxu0
        %1854 = vmatpush.bf16.msra.mxu0 %v1764
        %1855 = vmatpush.bf16.msra.mxu0 %v1760
        %1856 = vmatpush.bf16.msra.mxu0 %v1756
        %1857 = vmatpush.bf16.msra.mxu0 %v1752
        %1858 = vmatpush.bf16.msra.mxu0 %v1748
        %1859 = vmatpush.bf16.msra.mxu0 %v1744
        %1860 = vmatpush.bf16.msra.mxu0 %v1740
        %1861 = vmatpush.bf16.msra.mxu0 %v1736
        %1862 = vmatmul.bf16.gmra.mxu0 %v468
        %v1863 = vpop.f32.mrf.mxu0
        %v1864 = vadd.f32 0.0, %v1863
        %v1865 = vpop.f32.mrf.mxu0
        %v1866 = vadd.f32 0.0, %v1865
        %1867 = vdwg.mxu0
        %1868 = vmatpush.bf16.msra.mxu0 %v1796
        %1869 = vmatpush.bf16.msra.mxu0 %v1792
        %1870 = vmatpush.bf16.msra.mxu0 %v1788
        %1871 = vmatpush.bf16.msra.mxu0 %v1784
        %1872 = vmatpush.bf16.msra.mxu0 %v1780
        %1873 = vmatpush.bf16.msra.mxu0 %v1776
        %1874 = vmatpush.bf16.msra.mxu0 %v1772
        %1875 = vmatpush.bf16.msra.mxu0 %v1768
        %1876 = vmatmul.bf16.gmra.mxu0 %v469
        %v1877 = vpop.f32.mrf.mxu0
        %v1878 = vadd.f32 %v1864, %v1877
        %v1879 = vpop.f32.mrf.mxu0
        %v1880 = vadd.f32 %v1866, %v1879
        %1881 = vdwg.mxu0
        %1882 = vmatpush.bf16.msra.mxu0 %v1765
        %1883 = vmatpush.bf16.msra.mxu0 %v1761
        %1884 = vmatpush.bf16.msra.mxu0 %v1757
        %1885 = vmatpush.bf16.msra.mxu0 %v1753
        %1886 = vmatpush.bf16.msra.mxu0 %v1749
        %1887 = vmatpush.bf16.msra.mxu0 %v1745
        %1888 = vmatpush.bf16.msra.mxu0 %v1741
        %1889 = vmatpush.bf16.msra.mxu0 %v1737
        %1890 = vmatmul.bf16.gmra.mxu0 %v468
        %v1891 = vpop.f32.mrf.mxu0
        %v1892 = vadd.f32 0.0, %v1891
        %v1893 = vpop.f32.mrf.mxu0
        %v1894 = vadd.f32 0.0, %v1893
        %1895 = vdwg.mxu0
        %1896 = vmatpush.bf16.msra.mxu0 %v1797
        %1897 = vmatpush.bf16.msra.mxu0 %v1793
        %1898 = vmatpush.bf16.msra.mxu0 %v1789
        %1899 = vmatpush.bf16.msra.mxu0 %v1785
        %1900 = vmatpush.bf16.msra.mxu0 %v1781
        %1901 = vmatpush.bf16.msra.mxu0 %v1777
        %1902 = vmatpush.bf16.msra.mxu0 %v1773
        %1903 = vmatpush.bf16.msra.mxu0 %v1769
        %1904 = vmatmul.bf16.gmra.mxu0 %v469
        %v1905 = vpop.f32.mrf.mxu0
        %v1906 = vadd.f32 %v1892, %v1905
        %v1907 = vpop.f32.mrf.mxu0
        %v1908 = vadd.f32 %v1894, %v1907
        %1909 = vdwg.mxu0
        %v1910 = vpack.c.bf16 %v1850, %v1822
        %v1911 = vpack.c.bf16 %v1906, %v1878
        %v1912 = vpack.c.bf16 %v1852, %v1824
        %v1913 = vpack.c.bf16 %v1908, %v1880
        %1914 = vst [vmem:[#allocation2] sm:$0xff] %v1910
        %1915 = vst [vmem:[#allocation2 + $0x8] sm:$0xff] %v1911
        %1916 = vst [vmem:[#allocation2 + $0x20] sm:$0xff] %v1912
        %1917 = vst [vmem:[#allocation2 + $0x28] sm:$0xff] %v1913
        %v1920 = vunpack.c.l.b16 %v446
        %v1921 = vunpack.c.h.b16 %v446
        %v1922 = vunpack.c.l.b16 %v447
        %v1923 = vunpack.c.h.b16 %v447
        %v1924 = vpack.c.b16 %v1920, %v1920
        %v1925 = vpack.c.b16 %v1921, %v1921
        %v1926 = vpack.c.b16 %v1922, %v1922
        %v1927 = vpack.c.b16 %v1923, %v1923
        %v1929 = vsel %vm553, %v1924, 0
        %v1932 = vsel %vm553, %v1925, 0
        %v1935 = vsel %vm553, %v1926, 0
        %v1938 = vsel %vm553, %v1927, 0
        %1940 = vmatpush.bf16.msra.mxu0 0
        %1941 = vmatpush.bf16.msra.mxu0 0
        %1942 = vmatpush.bf16.msra.mxu0 0
        %1943 = vmatpush.bf16.msra.mxu0 0
        %1944 = vmatpush.bf16.msra.mxu0 0
        %1945 = vmatpush.bf16.msra.mxu0 0
        %1946 = vmatpush.bf16.msra.mxu0 0
        %1947 = vmatpush.bf16.msra.mxu0 %v1929
        %1948 = vmatmul.bf16.gmra.mxu0 %v506
        %v1949 = vpop.f32.mrf.mxu0
        %v1950 = vadd.f32 0.0, %v1949
        %v1951 = vpop.f32.mrf.mxu0
        %v1952 = vadd.f32 0.0, %v1951
        %1953 = vmatmul.bf16.gmra.mxu0 %v509
        %v1954 = vpop.f32.mrf.mxu0
        %v1955 = vadd.f32 0.0, %v1954
        %v1956 = vpop.f32.mrf.mxu0
        %v1957 = vadd.f32 0.0, %v1956
        %1958 = vmatmul.bf16.gmra.mxu0 %v512
        %v1959 = vpop.f32.mrf.mxu0
        %v1960 = vadd.f32 0.0, %v1959
        %v1961 = vpop.f32.mrf.mxu0
        %v1962 = vadd.f32 0.0, %v1961
        %1963 = vmatmul.bf16.gmra.mxu0 %v515
        %v1964 = vpop.f32.mrf.mxu0
        %v1965 = vadd.f32 0.0, %v1964
        %v1966 = vpop.f32.mrf.mxu0
        %v1967 = vadd.f32 0.0, %v1966
        %1968 = vmatmul.bf16.gmra.mxu0 %v518
        %v1969 = vpop.f32.mrf.mxu0
        %v1970 = vadd.f32 0.0, %v1969
        %v1971 = vpop.f32.mrf.mxu0
        %v1972 = vadd.f32 0.0, %v1971
        %1973 = vmatmul.bf16.gmra.mxu0 %v521
        %v1974 = vpop.f32.mrf.mxu0
        %v1975 = vadd.f32 0.0, %v1974
        %v1976 = vpop.f32.mrf.mxu0
        %v1977 = vadd.f32 0.0, %v1976
        %1978 = vmatmul.bf16.gmra.mxu0 %v524
        %v1979 = vpop.f32.mrf.mxu0
        %v1980 = vadd.f32 0.0, %v1979
        %v1981 = vpop.f32.mrf.mxu0
        %v1982 = vadd.f32 0.0, %v1981
        %1983 = vmatmul.bf16.gmra.mxu0 %v527
        %v1984 = vpop.f32.mrf.mxu0
        %v1985 = vadd.f32 0.0, %v1984
        %v1986 = vpop.f32.mrf.mxu0
        %v1987 = vadd.f32 0.0, %v1986
        %1988 = vmatmul.bf16.gmra.mxu0 %v530
        %v1989 = vpop.f32.mrf.mxu0
        %v1990 = vadd.f32 0.0, %v1989
        %v1991 = vpop.f32.mrf.mxu0
        %v1992 = vadd.f32 0.0, %v1991
        %1993 = vmatmul.bf16.gmra.mxu0 %v533
        %v1994 = vpop.f32.mrf.mxu0
        %v1995 = vadd.f32 0.0, %v1994
        %v1996 = vpop.f32.mrf.mxu0
        %v1997 = vadd.f32 0.0, %v1996
        %1998 = vmatmul.bf16.gmra.mxu0 %v536
        %v1999 = vpop.f32.mrf.mxu0
        %v2000 = vadd.f32 0.0, %v1999
        %v2001 = vpop.f32.mrf.mxu0
        %v2002 = vadd.f32 0.0, %v2001
        %2003 = vmatmul.bf16.gmra.mxu0 %v539
        %v2004 = vpop.f32.mrf.mxu0
        %v2005 = vadd.f32 0.0, %v2004
        %v2006 = vpop.f32.mrf.mxu0
        %v2007 = vadd.f32 0.0, %v2006
        %2008 = vmatmul.bf16.gmra.mxu0 %v542
        %v2009 = vpop.f32.mrf.mxu0
        %v2010 = vadd.f32 0.0, %v2009
        %v2011 = vpop.f32.mrf.mxu0
        %v2012 = vadd.f32 0.0, %v2011
        %2013 = vmatmul.bf16.gmra.mxu0 %v545
        %v2014 = vpop.f32.mrf.mxu0
        %v2015 = vadd.f32 0.0, %v2014
        %v2016 = vpop.f32.mrf.mxu0
        %v2017 = vadd.f32 0.0, %v2016
        %2018 = vmatmul.bf16.gmra.mxu0 %v548
        %v2019 = vpop.f32.mrf.mxu0
        %v2020 = vadd.f32 0.0, %v2019
        %v2021 = vpop.f32.mrf.mxu0
        %v2022 = vadd.f32 0.0, %v2021
        %2023 = vmatmul.bf16.gmra.mxu0 %v551
        %v2024 = vpop.f32.mrf.mxu0
        %v2025 = vadd.f32 0.0, %v2024
        %v2026 = vpop.f32.mrf.mxu0
        %v2027 = vadd.f32 0.0, %v2026
        %2028 = vdwg.mxu0
        %2029 = vmatpush.bf16.msra.mxu0 0
        %2030 = vmatpush.bf16.msra.mxu0 0
        %2031 = vmatpush.bf16.msra.mxu0 0
        %2032 = vmatpush.bf16.msra.mxu0 0
        %2033 = vmatpush.bf16.msra.mxu0 0
        %2034 = vmatpush.bf16.msra.mxu0 0
        %2035 = vmatpush.bf16.msra.mxu0 0
        %2036 = vmatpush.bf16.msra.mxu0 %v1932
        %2037 = vmatmul.bf16.gmra.mxu0 %v506
        %v2038 = vpop.f32.mrf.mxu0
        %v2039 = vadd.f32 0.0, %v2038
        %v2040 = vpop.f32.mrf.mxu0
        %v2041 = vadd.f32 0.0, %v2040
        %2042 = vmatmul.bf16.gmra.mxu0 %v509
        %v2043 = vpop.f32.mrf.mxu0
        %v2044 = vadd.f32 0.0, %v2043
        %v2045 = vpop.f32.mrf.mxu0
        %v2046 = vadd.f32 0.0, %v2045
        %2047 = vmatmul.bf16.gmra.mxu0 %v512
        %v2048 = vpop.f32.mrf.mxu0
        %v2049 = vadd.f32 0.0, %v2048
        %v2050 = vpop.f32.mrf.mxu0
        %v2051 = vadd.f32 0.0, %v2050
        %2052 = vmatmul.bf16.gmra.mxu0 %v515
        %v2053 = vpop.f32.mrf.mxu0
        %v2054 = vadd.f32 0.0, %v2053
        %v2055 = vpop.f32.mrf.mxu0
        %v2056 = vadd.f32 0.0, %v2055
        %2057 = vmatmul.bf16.gmra.mxu0 %v518
        %v2058 = vpop.f32.mrf.mxu0
        %v2059 = vadd.f32 0.0, %v2058
        %v2060 = vpop.f32.mrf.mxu0
        %v2061 = vadd.f32 0.0, %v2060
        %2062 = vmatmul.bf16.gmra.mxu0 %v521
        %v2063 = vpop.f32.mrf.mxu0
        %v2064 = vadd.f32 0.0, %v2063
        %v2065 = vpop.f32.mrf.mxu0
        %v2066 = vadd.f32 0.0, %v2065
        %2067 = vmatmul.bf16.gmra.mxu0 %v524
        %v2068 = vpop.f32.mrf.mxu0
        %v2069 = vadd.f32 0.0, %v2068
        %v2070 = vpop.f32.mrf.mxu0
        %v2071 = vadd.f32 0.0, %v2070
        %2072 = vmatmul.bf16.gmra.mxu0 %v527
        %v2073 = vpop.f32.mrf.mxu0
        %v2074 = vadd.f32 0.0, %v2073
        %v2075 = vpop.f32.mrf.mxu0
        %v2076 = vadd.f32 0.0, %v2075
        %2077 = vmatmul.bf16.gmra.mxu0 %v530
        %v2078 = vpop.f32.mrf.mxu0
        %v2079 = vadd.f32 0.0, %v2078
        %v2080 = vpop.f32.mrf.mxu0
        %v2081 = vadd.f32 0.0, %v2080
        %2082 = vmatmul.bf16.gmra.mxu0 %v533
        %v2083 = vpop.f32.mrf.mxu0
        %v2084 = vadd.f32 0.0, %v2083
        %v2085 = vpop.f32.mrf.mxu0
        %v2086 = vadd.f32 0.0, %v2085
        %2087 = vmatmul.bf16.gmra.mxu0 %v536
        %v2088 = vpop.f32.mrf.mxu0
        %v2089 = vadd.f32 0.0, %v2088
        %v2090 = vpop.f32.mrf.mxu0
        %v2091 = vadd.f32 0.0, %v2090
        %2092 = vmatmul.bf16.gmra.mxu0 %v539
        %v2093 = vpop.f32.mrf.mxu0
        %v2094 = vadd.f32 0.0, %v2093
        %v2095 = vpop.f32.mrf.mxu0
        %v2096 = vadd.f32 0.0, %v2095
        %2097 = vmatmul.bf16.gmra.mxu0 %v542
        %v2098 = vpop.f32.mrf.mxu0
        %v2099 = vadd.f32 0.0, %v2098
        %v2100 = vpop.f32.mrf.mxu0
        %v2101 = vadd.f32 0.0, %v2100
        %2102 = vmatmul.bf16.gmra.mxu0 %v545
        %v2103 = vpop.f32.mrf.mxu0
        %v2104 = vadd.f32 0.0, %v2103
        %v2105 = vpop.f32.mrf.mxu0
        %v2106 = vadd.f32 0.0, %v2105
        %2107 = vmatmul.bf16.gmra.mxu0 %v548
        %v2108 = vpop.f32.mrf.mxu0
        %v2109 = vadd.f32 0.0, %v2108
        %v2110 = vpop.f32.mrf.mxu0
        %v2111 = vadd.f32 0.0, %v2110
        %2112 = vmatmul.bf16.gmra.mxu0 %v551
        %v2113 = vpop.f32.mrf.mxu0
        %v2114 = vadd.f32 0.0, %v2113
        %v2115 = vpop.f32.mrf.mxu0
        %v2116 = vadd.f32 0.0, %v2115
        %2117 = vdwg.mxu0
        %2118 = vmatpush.bf16.msra.mxu0 0
        %2119 = vmatpush.bf16.msra.mxu0 0
        %2120 = vmatpush.bf16.msra.mxu0 0
        %2121 = vmatpush.bf16.msra.mxu0 0
        %2122 = vmatpush.bf16.msra.mxu0 0
        %2123 = vmatpush.bf16.msra.mxu0 0
        %2124 = vmatpush.bf16.msra.mxu0 0
        %2125 = vmatpush.bf16.msra.mxu0 %v1935
        %2126 = vmatmul.bf16.gmra.mxu0 %v506
        %v2127 = vpop.f32.mrf.mxu0
        %v2128 = vadd.f32 0.0, %v2127
        %v2129 = vpop.f32.mrf.mxu0
        %v2130 = vadd.f32 0.0, %v2129
        %2131 = vmatmul.bf16.gmra.mxu0 %v509
        %v2132 = vpop.f32.mrf.mxu0
        %v2133 = vadd.f32 0.0, %v2132
        %v2134 = vpop.f32.mrf.mxu0
        %v2135 = vadd.f32 0.0, %v2134
        %2136 = vmatmul.bf16.gmra.mxu0 %v512
        %v2137 = vpop.f32.mrf.mxu0
        %v2138 = vadd.f32 0.0, %v2137
        %v2139 = vpop.f32.mrf.mxu0
        %v2140 = vadd.f32 0.0, %v2139
        %2141 = vmatmul.bf16.gmra.mxu0 %v515
        %v2142 = vpop.f32.mrf.mxu0
        %v2143 = vadd.f32 0.0, %v2142
        %v2144 = vpop.f32.mrf.mxu0
        %v2145 = vadd.f32 0.0, %v2144
        %2146 = vmatmul.bf16.gmra.mxu0 %v518
        %v2147 = vpop.f32.mrf.mxu0
        %v2148 = vadd.f32 0.0, %v2147
        %v2149 = vpop.f32.mrf.mxu0
        %v2150 = vadd.f32 0.0, %v2149
        %2151 = vmatmul.bf16.gmra.mxu0 %v521
        %v2152 = vpop.f32.mrf.mxu0
        %v2153 = vadd.f32 0.0, %v2152
        %v2154 = vpop.f32.mrf.mxu0
        %v2155 = vadd.f32 0.0, %v2154
        %2156 = vmatmul.bf16.gmra.mxu0 %v524
        %v2157 = vpop.f32.mrf.mxu0
        %v2158 = vadd.f32 0.0, %v2157
        %v2159 = vpop.f32.mrf.mxu0
        %v2160 = vadd.f32 0.0, %v2159
        %2161 = vmatmul.bf16.gmra.mxu0 %v527
        %v2162 = vpop.f32.mrf.mxu0
        %v2163 = vadd.f32 0.0, %v2162
        %v2164 = vpop.f32.mrf.mxu0
        %v2165 = vadd.f32 0.0, %v2164
        %2166 = vmatmul.bf16.gmra.mxu0 %v530
        %v2167 = vpop.f32.mrf.mxu0
        %v2168 = vadd.f32 0.0, %v2167
        %v2169 = vpop.f32.mrf.mxu0
        %v2170 = vadd.f32 0.0, %v2169
        %2171 = vmatmul.bf16.gmra.mxu0 %v533
        %v2172 = vpop.f32.mrf.mxu0
        %v2173 = vadd.f32 0.0, %v2172
        %v2174 = vpop.f32.mrf.mxu0
        %v2175 = vadd.f32 0.0, %v2174
        %2176 = vmatmul.bf16.gmra.mxu0 %v536
        %v2177 = vpop.f32.mrf.mxu0
        %v2178 = vadd.f32 0.0, %v2177
        %v2179 = vpop.f32.mrf.mxu0
        %v2180 = vadd.f32 0.0, %v2179
        %2181 = vmatmul.bf16.gmra.mxu0 %v539
        %v2182 = vpop.f32.mrf.mxu0
        %v2183 = vadd.f32 0.0, %v2182
        %v2184 = vpop.f32.mrf.mxu0
        %v2185 = vadd.f32 0.0, %v2184
        %2186 = vmatmul.bf16.gmra.mxu0 %v542
        %v2187 = vpop.f32.mrf.mxu0
        %v2188 = vadd.f32 0.0, %v2187
        %v2189 = vpop.f32.mrf.mxu0
        %v2190 = vadd.f32 0.0, %v2189
        %2191 = vmatmul.bf16.gmra.mxu0 %v545
        %v2192 = vpop.f32.mrf.mxu0
        %v2193 = vadd.f32 0.0, %v2192
        %v2194 = vpop.f32.mrf.mxu0
        %v2195 = vadd.f32 0.0, %v2194
        %2196 = vmatmul.bf16.gmra.mxu0 %v548
        %v2197 = vpop.f32.mrf.mxu0
        %v2198 = vadd.f32 0.0, %v2197
        %v2199 = vpop.f32.mrf.mxu0
        %v2200 = vadd.f32 0.0, %v2199
        %2201 = vmatmul.bf16.gmra.mxu0 %v551
        %v2202 = vpop.f32.mrf.mxu0
        %v2203 = vadd.f32 0.0, %v2202
        %v2204 = vpop.f32.mrf.mxu0
        %v2205 = vadd.f32 0.0, %v2204
        %2206 = vdwg.mxu0
        %2207 = vmatpush.bf16.msra.mxu0 0
        %2208 = vmatpush.bf16.msra.mxu0 0
        %2209 = vmatpush.bf16.msra.mxu0 0
        %2210 = vmatpush.bf16.msra.mxu0 0
        %2211 = vmatpush.bf16.msra.mxu0 0
        %2212 = vmatpush.bf16.msra.mxu0 0
        %2213 = vmatpush.bf16.msra.mxu0 0
        %2214 = vmatpush.bf16.msra.mxu0 %v1938
        %2215 = vmatmul.bf16.gmra.mxu0 %v506
        %v2216 = vpop.f32.mrf.mxu0
        %v2217 = vadd.f32 0.0, %v2216
        %v2218 = vpop.f32.mrf.mxu0
        %v2219 = vadd.f32 0.0, %v2218
        %2220 = vmatmul.bf16.gmra.mxu0 %v509
        %v2221 = vpop.f32.mrf.mxu0
        %v2222 = vadd.f32 0.0, %v2221
        %v2223 = vpop.f32.mrf.mxu0
        %v2224 = vadd.f32 0.0, %v2223
        %2225 = vmatmul.bf16.gmra.mxu0 %v512
        %v2226 = vpop.f32.mrf.mxu0
        %v2227 = vadd.f32 0.0, %v2226
        %v2228 = vpop.f32.mrf.mxu0
        %v2229 = vadd.f32 0.0, %v2228
        %2230 = vmatmul.bf16.gmra.mxu0 %v515
        %v2231 = vpop.f32.mrf.mxu0
        %v2232 = vadd.f32 0.0, %v2231
        %v2233 = vpop.f32.mrf.mxu0
        %v2234 = vadd.f32 0.0, %v2233
        %2235 = vmatmul.bf16.gmra.mxu0 %v518
        %v2236 = vpop.f32.mrf.mxu0
        %v2237 = vadd.f32 0.0, %v2236
        %v2238 = vpop.f32.mrf.mxu0
        %v2239 = vadd.f32 0.0, %v2238
        %2240 = vmatmul.bf16.gmra.mxu0 %v521
        %v2241 = vpop.f32.mrf.mxu0
        %v2242 = vadd.f32 0.0, %v2241
        %v2243 = vpop.f32.mrf.mxu0
        %v2244 = vadd.f32 0.0, %v2243
        %2245 = vmatmul.bf16.gmra.mxu0 %v524
        %v2246 = vpop.f32.mrf.mxu0
        %v2247 = vadd.f32 0.0, %v2246
        %v2248 = vpop.f32.mrf.mxu0
        %v2249 = vadd.f32 0.0, %v2248
        %2250 = vmatmul.bf16.gmra.mxu0 %v527
        %v2251 = vpop.f32.mrf.mxu0
        %v2252 = vadd.f32 0.0, %v2251
        %v2253 = vpop.f32.mrf.mxu0
        %v2254 = vadd.f32 0.0, %v2253
        %2255 = vmatmul.bf16.gmra.mxu0 %v530
        %v2256 = vpop.f32.mrf.mxu0
        %v2257 = vadd.f32 0.0, %v2256
        %v2258 = vpop.f32.mrf.mxu0
        %v2259 = vadd.f32 0.0, %v2258
        %2260 = vmatmul.bf16.gmra.mxu0 %v533
        %v2261 = vpop.f32.mrf.mxu0
        %v2262 = vadd.f32 0.0, %v2261
        %v2263 = vpop.f32.mrf.mxu0
        %v2264 = vadd.f32 0.0, %v2263
        %2265 = vmatmul.bf16.gmra.mxu0 %v536
        %v2266 = vpop.f32.mrf.mxu0
        %v2267 = vadd.f32 0.0, %v2266
        %v2268 = vpop.f32.mrf.mxu0
        %v2269 = vadd.f32 0.0, %v2268
        %2270 = vmatmul.bf16.gmra.mxu0 %v539
        %v2271 = vpop.f32.mrf.mxu0
        %v2272 = vadd.f32 0.0, %v2271
        %v2273 = vpop.f32.mrf.mxu0
        %v2274 = vadd.f32 0.0, %v2273
        %2275 = vmatmul.bf16.gmra.mxu0 %v542
        %v2276 = vpop.f32.mrf.mxu0
        %v2277 = vadd.f32 0.0, %v2276
        %v2278 = vpop.f32.mrf.mxu0
        %v2279 = vadd.f32 0.0, %v2278
        %2280 = vmatmul.bf16.gmra.mxu0 %v545
        %v2281 = vpop.f32.mrf.mxu0
        %v2282 = vadd.f32 0.0, %v2281
        %v2283 = vpop.f32.mrf.mxu0
        %v2284 = vadd.f32 0.0, %v2283
        %2285 = vmatmul.bf16.gmra.mxu0 %v548
        %v2286 = vpop.f32.mrf.mxu0
        %v2287 = vadd.f32 0.0, %v2286
        %v2288 = vpop.f32.mrf.mxu0
        %v2289 = vadd.f32 0.0, %v2288
        %2290 = vmatmul.bf16.gmra.mxu0 %v551
        %v2291 = vpop.f32.mrf.mxu0
        %v2292 = vadd.f32 0.0, %v2291
        %v2293 = vpop.f32.mrf.mxu0
        %v2294 = vadd.f32 0.0, %v2293
        %2295 = vdwg.mxu0
        %v2296 = vmax.f32 %v1950, %v1952
        %v2297 = vmax.f32 %v2296, %v1955
        %v2298 = vmax.f32 %v2297, %v1957
        %v2299 = vmax.f32 %v2298, %v1960
        %v2300 = vmax.f32 %v2299, %v1962
        %v2301 = vmax.f32 %v2300, %v1965
        %v2302 = vmax.f32 %v2301, %v1967
        %v2303 = vmax.f32 %v2302, %v1970
        %v2304 = vmax.f32 %v2303, %v1972
        %v2305 = vmax.f32 %v2304, %v1975
        %v2306 = vmax.f32 %v2305, %v1977
        %v2307 = vmax.f32 %v2306, %v1980
        %v2308 = vmax.f32 %v2307, %v1982
        %v2309 = vmax.f32 %v2308, %v1985
        %v2310 = vmax.f32 %v2309, %v1987
        %v2311 = vmax.f32 %v2310, %v1990
        %v2312 = vmax.f32 %v2311, %v1992
        %v2313 = vmax.f32 %v2312, %v1995
        %v2314 = vmax.f32 %v2313, %v1997
        %v2315 = vmax.f32 %v2314, %v2000
        %v2316 = vmax.f32 %v2315, %v2002
        %v2317 = vmax.f32 %v2316, %v2005
        %v2318 = vmax.f32 %v2317, %v2007
        %v2319 = vmax.f32 %v2318, %v2010
        %v2320 = vmax.f32 %v2319, %v2012
        %v2321 = vmax.f32 %v2320, %v2015
        %v2322 = vmax.f32 %v2321, %v2017
        %v2323 = vmax.f32 %v2322, %v2020
        %v2324 = vmax.f32 %v2323, %v2022
        %v2325 = vmax.f32 %v2324, %v2025
        %v2326 = vmax.f32 %v2325, %v2027
        %v2327 = vrot.slane %v2326, 4
        %v2328 = vmax.f32 %v2326, %v2327
        %v2329 = vrot.slane %v2328, 2
        %v2330 = vmax.f32 %v2328, %v2329
        %v2331 = vrot.slane %v2330, 1
        %v2332 = vmax.f32 %v2330, %v2331
        %v2333 = vmax.f32 %v2039, %v2041
        %v2334 = vmax.f32 %v2333, %v2044
        %v2335 = vmax.f32 %v2334, %v2046
        %v2336 = vmax.f32 %v2335, %v2049
        %v2337 = vmax.f32 %v2336, %v2051
        %v2338 = vmax.f32 %v2337, %v2054
        %v2339 = vmax.f32 %v2338, %v2056
        %v2340 = vmax.f32 %v2339, %v2059
        %v2341 = vmax.f32 %v2340, %v2061
        %v2342 = vmax.f32 %v2341, %v2064
        %v2343 = vmax.f32 %v2342, %v2066
        %v2344 = vmax.f32 %v2343, %v2069
        %v2345 = vmax.f32 %v2344, %v2071
        %v2346 = vmax.f32 %v2345, %v2074
        %v2347 = vmax.f32 %v2346, %v2076
        %v2348 = vmax.f32 %v2347, %v2079
        %v2349 = vmax.f32 %v2348, %v2081
        %v2350 = vmax.f32 %v2349, %v2084
        %v2351 = vmax.f32 %v2350, %v2086
        %v2352 = vmax.f32 %v2351, %v2089
        %v2353 = vmax.f32 %v2352, %v2091
        %v2354 = vmax.f32 %v2353, %v2094
        %v2355 = vmax.f32 %v2354, %v2096
        %v2356 = vmax.f32 %v2355, %v2099
        %v2357 = vmax.f32 %v2356, %v2101
        %v2358 = vmax.f32 %v2357, %v2104
        %v2359 = vmax.f32 %v2358, %v2106
        %v2360 = vmax.f32 %v2359, %v2109
        %v2361 = vmax.f32 %v2360, %v2111
        %v2362 = vmax.f32 %v2361, %v2114
        %v2363 = vmax.f32 %v2362, %v2116
        %v2364 = vrot.slane %v2363, 4
        %v2365 = vmax.f32 %v2363, %v2364
        %v2366 = vrot.slane %v2365, 2
        %v2367 = vmax.f32 %v2365, %v2366
        %v2368 = vrot.slane %v2367, 1
        %v2369 = vmax.f32 %v2367, %v2368
        %v2370 = vmax.f32 %v2128, %v2130
        %v2371 = vmax.f32 %v2370, %v2133
        %v2372 = vmax.f32 %v2371, %v2135
        %v2373 = vmax.f32 %v2372, %v2138
        %v2374 = vmax.f32 %v2373, %v2140
        %v2375 = vmax.f32 %v2374, %v2143
        %v2376 = vmax.f32 %v2375, %v2145
        %v2377 = vmax.f32 %v2376, %v2148
        %v2378 = vmax.f32 %v2377, %v2150
        %v2379 = vmax.f32 %v2378, %v2153
        %v2380 = vmax.f32 %v2379, %v2155
        %v2381 = vmax.f32 %v2380, %v2158
        %v2382 = vmax.f32 %v2381, %v2160
        %v2383 = vmax.f32 %v2382, %v2163
        %v2384 = vmax.f32 %v2383, %v2165
        %v2385 = vmax.f32 %v2384, %v2168
        %v2386 = vmax.f32 %v2385, %v2170
        %v2387 = vmax.f32 %v2386, %v2173
        %v2388 = vmax.f32 %v2387, %v2175
        %v2389 = vmax.f32 %v2388, %v2178
        %v2390 = vmax.f32 %v2389, %v2180
        %v2391 = vmax.f32 %v2390, %v2183
        %v2392 = vmax.f32 %v2391, %v2185
        %v2393 = vmax.f32 %v2392, %v2188
        %v2394 = vmax.f32 %v2393, %v2190
        %v2395 = vmax.f32 %v2394, %v2193
        %v2396 = vmax.f32 %v2395, %v2195
        %v2397 = vmax.f32 %v2396, %v2198
        %v2398 = vmax.f32 %v2397, %v2200
        %v2399 = vmax.f32 %v2398, %v2203
        %v2400 = vmax.f32 %v2399, %v2205
        %v2401 = vrot.slane %v2400, 4
        %v2402 = vmax.f32 %v2400, %v2401
        %v2403 = vrot.slane %v2402, 2
        %v2404 = vmax.f32 %v2402, %v2403
        %v2405 = vrot.slane %v2404, 1
        %v2406 = vmax.f32 %v2404, %v2405
        %v2407 = vmax.f32 %v2217, %v2219
        %v2408 = vmax.f32 %v2407, %v2222
        %v2409 = vmax.f32 %v2408, %v2224
        %v2410 = vmax.f32 %v2409, %v2227
        %v2411 = vmax.f32 %v2410, %v2229
        %v2412 = vmax.f32 %v2411, %v2232
        %v2413 = vmax.f32 %v2412, %v2234
        %v2414 = vmax.f32 %v2413, %v2237
        %v2415 = vmax.f32 %v2414, %v2239
        %v2416 = vmax.f32 %v2415, %v2242
        %v2417 = vmax.f32 %v2416, %v2244
        %v2418 = vmax.f32 %v2417, %v2247
        %v2419 = vmax.f32 %v2418, %v2249
        %v2420 = vmax.f32 %v2419, %v2252
        %v2421 = vmax.f32 %v2420, %v2254
        %v2422 = vmax.f32 %v2421, %v2257
        %v2423 = vmax.f32 %v2422, %v2259
        %v2424 = vmax.f32 %v2423, %v2262
        %v2425 = vmax.f32 %v2424, %v2264
        %v2426 = vmax.f32 %v2425, %v2267
        %v2427 = vmax.f32 %v2426, %v2269
        %v2428 = vmax.f32 %v2427, %v2272
        %v2429 = vmax.f32 %v2428, %v2274
        %v2430 = vmax.f32 %v2429, %v2277
        %v2431 = vmax.f32 %v2430, %v2279
        %v2432 = vmax.f32 %v2431, %v2282
        %v2433 = vmax.f32 %v2432, %v2284
        %v2434 = vmax.f32 %v2433, %v2287
        %v2435 = vmax.f32 %v2434, %v2289
        %v2436 = vmax.f32 %v2435, %v2292
        %v2437 = vmax.f32 %v2436, %v2294
        %v2438 = vrot.slane %v2437, 4
        %v2439 = vmax.f32 %v2437, %v2438
        %v2440 = vrot.slane %v2439, 2
        %v2441 = vmax.f32 %v2439, %v2440
        %v2442 = vrot.slane %v2441, 1
        %v2443 = vmax.f32 %v2441, %v2442
        %v2444 = vsub.f32 %v1950, %v2332
        %v2445 = vsub.f32 %v2039, %v2369
        %v2446 = vsub.f32 %v2128, %v2406
        %v2447 = vsub.f32 %v2217, %v2443
        %v2448 = vsub.f32 %v1952, %v2332
        %v2449 = vsub.f32 %v2041, %v2369
        %v2450 = vsub.f32 %v2130, %v2406
        %v2451 = vsub.f32 %v2219, %v2443
        %v2452 = vsub.f32 %v1955, %v2332
        %v2453 = vsub.f32 %v2044, %v2369
        %v2454 = vsub.f32 %v2133, %v2406
        %v2455 = vsub.f32 %v2222, %v2443
        %v2456 = vsub.f32 %v1957, %v2332
        %v2457 = vsub.f32 %v2046, %v2369
        %v2458 = vsub.f32 %v2135, %v2406
        %v2459 = vsub.f32 %v2224, %v2443
        %v2460 = vsub.f32 %v1960, %v2332
        %v2461 = vsub.f32 %v2049, %v2369
        %v2462 = vsub.f32 %v2138, %v2406
        %v2463 = vsub.f32 %v2227, %v2443
        %v2464 = vsub.f32 %v1962, %v2332
        %v2465 = vsub.f32 %v2051, %v2369
        %v2466 = vsub.f32 %v2140, %v2406
        %v2467 = vsub.f32 %v2229, %v2443
        %v2468 = vsub.f32 %v1965, %v2332
        %v2469 = vsub.f32 %v2054, %v2369
        %v2470 = vsub.f32 %v2143, %v2406
        %v2471 = vsub.f32 %v2232, %v2443
        %v2472 = vsub.f32 %v1967, %v2332
        %v2473 = vsub.f32 %v2056, %v2369
        %v2474 = vsub.f32 %v2145, %v2406
        %v2475 = vsub.f32 %v2234, %v2443
        %v2476 = vsub.f32 %v1970, %v2332
        %v2477 = vsub.f32 %v2059, %v2369
        %v2478 = vsub.f32 %v2148, %v2406
        %v2479 = vsub.f32 %v2237, %v2443
        %v2480 = vsub.f32 %v1972, %v2332
        %v2481 = vsub.f32 %v2061, %v2369
        %v2482 = vsub.f32 %v2150, %v2406
        %v2483 = vsub.f32 %v2239, %v2443
        %v2484 = vsub.f32 %v1975, %v2332
        %v2485 = vsub.f32 %v2064, %v2369
        %v2486 = vsub.f32 %v2153, %v2406
        %v2487 = vsub.f32 %v2242, %v2443
        %v2488 = vsub.f32 %v1977, %v2332
        %v2489 = vsub.f32 %v2066, %v2369
        %v2490 = vsub.f32 %v2155, %v2406
        %v2491 = vsub.f32 %v2244, %v2443
        %v2492 = vsub.f32 %v1980, %v2332
        %v2493 = vsub.f32 %v2069, %v2369
        %v2494 = vsub.f32 %v2158, %v2406
        %v2495 = vsub.f32 %v2247, %v2443
        %v2496 = vsub.f32 %v1982, %v2332
        %v2497 = vsub.f32 %v2071, %v2369
        %v2498 = vsub.f32 %v2160, %v2406
        %v2499 = vsub.f32 %v2249, %v2443
        %v2500 = vsub.f32 %v1985, %v2332
        %v2501 = vsub.f32 %v2074, %v2369
        %v2502 = vsub.f32 %v2163, %v2406
        %v2503 = vsub.f32 %v2252, %v2443
        %v2504 = vsub.f32 %v1987, %v2332
        %v2505 = vsub.f32 %v2076, %v2369
        %v2506 = vsub.f32 %v2165, %v2406
        %v2507 = vsub.f32 %v2254, %v2443
        %v2508 = vsub.f32 %v1990, %v2332
        %v2509 = vsub.f32 %v2079, %v2369
        %v2510 = vsub.f32 %v2168, %v2406
        %v2511 = vsub.f32 %v2257, %v2443
        %v2512 = vsub.f32 %v1992, %v2332
        %v2513 = vsub.f32 %v2081, %v2369
        %v2514 = vsub.f32 %v2170, %v2406
        %v2515 = vsub.f32 %v2259, %v2443
        %v2516 = vsub.f32 %v1995, %v2332
        %v2517 = vsub.f32 %v2084, %v2369
        %v2518 = vsub.f32 %v2173, %v2406
        %v2519 = vsub.f32 %v2262, %v2443
        %v2520 = vsub.f32 %v1997, %v2332
        %v2521 = vsub.f32 %v2086, %v2369
        %v2522 = vsub.f32 %v2175, %v2406
        %v2523 = vsub.f32 %v2264, %v2443
        %v2524 = vsub.f32 %v2000, %v2332
        %v2525 = vsub.f32 %v2089, %v2369
        %v2526 = vsub.f32 %v2178, %v2406
        %v2527 = vsub.f32 %v2267, %v2443
        %v2528 = vsub.f32 %v2002, %v2332
        %v2529 = vsub.f32 %v2091, %v2369
        %v2530 = vsub.f32 %v2180, %v2406
        %v2531 = vsub.f32 %v2269, %v2443
        %v2532 = vsub.f32 %v2005, %v2332
        %v2533 = vsub.f32 %v2094, %v2369
        %v2534 = vsub.f32 %v2183, %v2406
        %v2535 = vsub.f32 %v2272, %v2443
        %v2536 = vsub.f32 %v2007, %v2332
        %v2537 = vsub.f32 %v2096, %v2369
        %v2538 = vsub.f32 %v2185, %v2406
        %v2539 = vsub.f32 %v2274, %v2443
        %v2540 = vsub.f32 %v2010, %v2332
        %v2541 = vsub.f32 %v2099, %v2369
        %v2542 = vsub.f32 %v2188, %v2406
        %v2543 = vsub.f32 %v2277, %v2443
        %v2544 = vsub.f32 %v2012, %v2332
        %v2545 = vsub.f32 %v2101, %v2369
        %v2546 = vsub.f32 %v2190, %v2406
        %v2547 = vsub.f32 %v2279, %v2443
        %v2548 = vsub.f32 %v2015, %v2332
        %v2549 = vsub.f32 %v2104, %v2369
        %v2550 = vsub.f32 %v2193, %v2406
        %v2551 = vsub.f32 %v2282, %v2443
        %v2552 = vsub.f32 %v2017, %v2332
        %v2553 = vsub.f32 %v2106, %v2369
        %v2554 = vsub.f32 %v2195, %v2406
        %v2555 = vsub.f32 %v2284, %v2443
        %v2556 = vsub.f32 %v2020, %v2332
        %v2557 = vsub.f32 %v2109, %v2369
        %v2558 = vsub.f32 %v2198, %v2406
        %v2559 = vsub.f32 %v2287, %v2443
        %v2560 = vsub.f32 %v2022, %v2332
        %v2561 = vsub.f32 %v2111, %v2369
        %v2562 = vsub.f32 %v2200, %v2406
        %v2563 = vsub.f32 %v2289, %v2443
        %v2564 = vsub.f32 %v2025, %v2332
        %v2565 = vsub.f32 %v2114, %v2369
        %v2566 = vsub.f32 %v2203, %v2406
        %v2567 = vsub.f32 %v2292, %v2443
        %v2568 = vsub.f32 %v2027, %v2332
        %v2569 = vsub.f32 %v2116, %v2369
        %v2570 = vsub.f32 %v2205, %v2406
        %v2571 = vsub.f32 %v2294, %v2443
        %v2572 = vmul.f32 %v2444, 1.442695
        %v2573 = vpow.pop %v2572
        %v2574 = vmul.f32 %v2445, 1.442695
        %v2575 = vpow.pop %v2574
        %v2576 = vmul.f32 %v2446, 1.442695
        %v2577 = vpow.pop %v2576
        %v2578 = vmul.f32 %v2447, 1.442695
        %v2579 = vpow.pop %v2578
        %v2580 = vmul.f32 %v2448, 1.442695
        %v2581 = vpow.pop %v2580
        %v2582 = vmul.f32 %v2449, 1.442695
        %v2583 = vpow.pop %v2582
        %v2584 = vmul.f32 %v2450, 1.442695
        %v2585 = vpow.pop %v2584
        %v2586 = vmul.f32 %v2451, 1.442695
        %v2587 = vpow.pop %v2586
        %v2588 = vmul.f32 %v2452, 1.442695
        %v2589 = vpow.pop %v2588
        %v2590 = vmul.f32 %v2453, 1.442695
        %v2591 = vpow.pop %v2590
        %v2592 = vmul.f32 %v2454, 1.442695
        %v2593 = vpow.pop %v2592
        %v2594 = vmul.f32 %v2455, 1.442695
        %v2595 = vpow.pop %v2594
        %v2596 = vmul.f32 %v2456, 1.442695
        %v2597 = vpow.pop %v2596
        %v2598 = vmul.f32 %v2457, 1.442695
        %v2599 = vpow.pop %v2598
        %v2600 = vmul.f32 %v2458, 1.442695
        %v2601 = vpow.pop %v2600
        %v2602 = vmul.f32 %v2459, 1.442695
        %v2603 = vpow.pop %v2602
        %v2604 = vmul.f32 %v2460, 1.442695
        %v2605 = vpow.pop %v2604
        %v2606 = vmul.f32 %v2461, 1.442695
        %v2607 = vpow.pop %v2606
        %v2608 = vmul.f32 %v2462, 1.442695
        %v2609 = vpow.pop %v2608
        %v2610 = vmul.f32 %v2463, 1.442695
        %v2611 = vpow.pop %v2610
        %v2612 = vmul.f32 %v2464, 1.442695
        %v2613 = vpow.pop %v2612
        %v2614 = vmul.f32 %v2465, 1.442695
        %v2615 = vpow.pop %v2614
        %v2616 = vmul.f32 %v2466, 1.442695
        %v2617 = vpow.pop %v2616
        %v2618 = vmul.f32 %v2467, 1.442695
        %v2619 = vpow.pop %v2618
        %v2620 = vmul.f32 %v2468, 1.442695
        %v2621 = vpow.pop %v2620
        %v2622 = vmul.f32 %v2469, 1.442695
        %v2623 = vpow.pop %v2622
        %v2624 = vmul.f32 %v2470, 1.442695
        %v2625 = vpow.pop %v2624
        %v2626 = vmul.f32 %v2471, 1.442695
        %v2627 = vpow.pop %v2626
        %v2628 = vmul.f32 %v2472, 1.442695
        %v2629 = vpow.pop %v2628
        %v2630 = vmul.f32 %v2473, 1.442695
        %v2631 = vpow.pop %v2630
        %v2632 = vmul.f32 %v2474, 1.442695
        %v2633 = vpow.pop %v2632
        %v2634 = vmul.f32 %v2475, 1.442695
        %v2635 = vpow.pop %v2634
        %v2636 = vmul.f32 %v2476, 1.442695
        %v2637 = vpow.pop %v2636
        %v2638 = vmul.f32 %v2477, 1.442695
        %v2639 = vpow.pop %v2638
        %v2640 = vmul.f32 %v2478, 1.442695
        %v2641 = vpow.pop %v2640
        %v2642 = vmul.f32 %v2479, 1.442695
        %v2643 = vpow.pop %v2642
        %v2644 = vmul.f32 %v2480, 1.442695
        %v2645 = vpow.pop %v2644
        %v2646 = vmul.f32 %v2481, 1.442695
        %v2647 = vpow.pop %v2646
        %v2648 = vmul.f32 %v2482, 1.442695
        %v2649 = vpow.pop %v2648
        %v2650 = vmul.f32 %v2483, 1.442695
        %v2651 = vpow.pop %v2650
        %v2652 = vmul.f32 %v2484, 1.442695
        %v2653 = vpow.pop %v2652
        %v2654 = vmul.f32 %v2485, 1.442695
        %v2655 = vpow.pop %v2654
        %v2656 = vmul.f32 %v2486, 1.442695
        %v2657 = vpow.pop %v2656
        %v2658 = vmul.f32 %v2487, 1.442695
        %v2659 = vpow.pop %v2658
        %v2660 = vmul.f32 %v2488, 1.442695
        %v2661 = vpow.pop %v2660
        %v2662 = vmul.f32 %v2489, 1.442695
        %v2663 = vpow.pop %v2662
        %v2664 = vmul.f32 %v2490, 1.442695
        %v2665 = vpow.pop %v2664
        %v2666 = vmul.f32 %v2491, 1.442695
        %v2667 = vpow.pop %v2666
        %v2668 = vmul.f32 %v2492, 1.442695
        %v2669 = vpow.pop %v2668
        %v2670 = vmul.f32 %v2493, 1.442695
        %v2671 = vpow.pop %v2670
        %v2672 = vmul.f32 %v2494, 1.442695
        %v2673 = vpow.pop %v2672
        %v2674 = vmul.f32 %v2495, 1.442695
        %v2675 = vpow.pop %v2674
        %v2676 = vmul.f32 %v2496, 1.442695
        %v2677 = vpow.pop %v2676
        %v2678 = vmul.f32 %v2497, 1.442695
        %v2679 = vpow.pop %v2678
        %v2680 = vmul.f32 %v2498, 1.442695
        %v2681 = vpow.pop %v2680
        %v2682 = vmul.f32 %v2499, 1.442695
        %v2683 = vpow.pop %v2682
        %v2684 = vmul.f32 %v2500, 1.442695
        %v2685 = vpow.pop %v2684
        %v2686 = vmul.f32 %v2501, 1.442695
        %v2687 = vpow.pop %v2686
        %v2688 = vmul.f32 %v2502, 1.442695
        %v2689 = vpow.pop %v2688
        %v2690 = vmul.f32 %v2503, 1.442695
        %v2691 = vpow.pop %v2690
        %v2692 = vmul.f32 %v2504, 1.442695
        %v2693 = vpow.pop %v2692
        %v2694 = vmul.f32 %v2505, 1.442695
        %v2695 = vpow.pop %v2694
        %v2696 = vmul.f32 %v2506, 1.442695
        %v2697 = vpow.pop %v2696
        %v2698 = vmul.f32 %v2507, 1.442695
        %v2699 = vpow.pop %v2698
        %v2700 = vmul.f32 %v2508, 1.442695
        %v2701 = vpow.pop %v2700
        %v2702 = vmul.f32 %v2509, 1.442695
        %v2703 = vpow.pop %v2702
        %v2704 = vmul.f32 %v2510, 1.442695
        %v2705 = vpow.pop %v2704
        %v2706 = vmul.f32 %v2511, 1.442695
        %v2707 = vpow.pop %v2706
        %v2708 = vmul.f32 %v2512, 1.442695
        %v2709 = vpow.pop %v2708
        %v2710 = vmul.f32 %v2513, 1.442695
        %v2711 = vpow.pop %v2710
        %v2712 = vmul.f32 %v2514, 1.442695
        %v2713 = vpow.pop %v2712
        %v2714 = vmul.f32 %v2515, 1.442695
        %v2715 = vpow.pop %v2714
        %v2716 = vmul.f32 %v2516, 1.442695
        %v2717 = vpow.pop %v2716
        %v2718 = vmul.f32 %v2517, 1.442695
        %v2719 = vpow.pop %v2718
        %v2720 = vmul.f32 %v2518, 1.442695
        %v2721 = vpow.pop %v2720
        %v2722 = vmul.f32 %v2519, 1.442695
        %v2723 = vpow.pop %v2722
        %v2724 = vmul.f32 %v2520, 1.442695
        %v2725 = vpow.pop %v2724
        %v2726 = vmul.f32 %v2521, 1.442695
        %v2727 = vpow.pop %v2726
        %v2728 = vmul.f32 %v2522, 1.442695
        %v2729 = vpow.pop %v2728
        %v2730 = vmul.f32 %v2523, 1.442695
        %v2731 = vpow.pop %v2730
        %v2732 = vmul.f32 %v2524, 1.442695
        %v2733 = vpow.pop %v2732
        %v2734 = vmul.f32 %v2525, 1.442695
        %v2735 = vpow.pop %v2734
        %v2736 = vmul.f32 %v2526, 1.442695
        %v2737 = vpow.pop %v2736
        %v2738 = vmul.f32 %v2527, 1.442695
        %v2739 = vpow.pop %v2738
        %v2740 = vmul.f32 %v2528, 1.442695
        %v2741 = vpow.pop %v2740
        %v2742 = vmul.f32 %v2529, 1.442695
        %v2743 = vpow.pop %v2742
        %v2744 = vmul.f32 %v2530, 1.442695
        %v2745 = vpow.pop %v2744
        %v2746 = vmul.f32 %v2531, 1.442695
        %v2747 = vpow.pop %v2746
        %v2748 = vmul.f32 %v2532, 1.442695
        %v2749 = vpow.pop %v2748
        %v2750 = vmul.f32 %v2533, 1.442695
        %v2751 = vpow.pop %v2750
        %v2752 = vmul.f32 %v2534, 1.442695
        %v2753 = vpow.pop %v2752
        %v2754 = vmul.f32 %v2535, 1.442695
        %v2755 = vpow.pop %v2754
        %v2756 = vmul.f32 %v2536, 1.442695
        %v2757 = vpow.pop %v2756
        %v2758 = vmul.f32 %v2537, 1.442695
        %v2759 = vpow.pop %v2758
        %v2760 = vmul.f32 %v2538, 1.442695
        %v2761 = vpow.pop %v2760
        %v2762 = vmul.f32 %v2539, 1.442695
        %v2763 = vpow.pop %v2762
        %v2764 = vmul.f32 %v2540, 1.442695
        %v2765 = vpow.pop %v2764
        %v2766 = vmul.f32 %v2541, 1.442695
        %v2767 = vpow.pop %v2766
        %v2768 = vmul.f32 %v2542, 1.442695
        %v2769 = vpow.pop %v2768
        %v2770 = vmul.f32 %v2543, 1.442695
        %v2771 = vpow.pop %v2770
        %v2772 = vmul.f32 %v2544, 1.442695
        %v2773 = vpow.pop %v2772
        %v2774 = vmul.f32 %v2545, 1.442695
        %v2775 = vpow.pop %v2774
        %v2776 = vmul.f32 %v2546, 1.442695
        %v2777 = vpow.pop %v2776
        %v2778 = vmul.f32 %v2547, 1.442695
        %v2779 = vpow.pop %v2778
        %v2780 = vmul.f32 %v2548, 1.442695
        %v2781 = vpow.pop %v2780
        %v2782 = vmul.f32 %v2549, 1.442695
        %v2783 = vpow.pop %v2782
        %v2784 = vmul.f32 %v2550, 1.442695
        %v2785 = vpow.pop %v2784
        %v2786 = vmul.f32 %v2551, 1.442695
        %v2787 = vpow.pop %v2786
        %v2788 = vmul.f32 %v2552, 1.442695
        %v2789 = vpow.pop %v2788
        %v2790 = vmul.f32 %v2553, 1.442695
        %v2791 = vpow.pop %v2790
        %v2792 = vmul.f32 %v2554, 1.442695
        %v2793 = vpow.pop %v2792
        %v2794 = vmul.f32 %v2555, 1.442695
        %v2795 = vpow.pop %v2794
        %v2796 = vmul.f32 %v2556, 1.442695
        %v2797 = vpow.pop %v2796
        %v2798 = vmul.f32 %v2557, 1.442695
        %v2799 = vpow.pop %v2798
        %v2800 = vmul.f32 %v2558, 1.442695
        %v2801 = vpow.pop %v2800
        %v2802 = vmul.f32 %v2559, 1.442695
        %v2803 = vpow.pop %v2802
        %v2804 = vmul.f32 %v2560, 1.442695
        %v2805 = vpow.pop %v2804
        %v2806 = vmul.f32 %v2561, 1.442695
        %v2807 = vpow.pop %v2806
        %v2808 = vmul.f32 %v2562, 1.442695
        %v2809 = vpow.pop %v2808
        %v2810 = vmul.f32 %v2563, 1.442695
        %v2811 = vpow.pop %v2810
        %v2812 = vmul.f32 %v2564, 1.442695
        %v2813 = vpow.pop %v2812
        %v2814 = vmul.f32 %v2565, 1.442695
        %v2815 = vpow.pop %v2814
        %v2816 = vmul.f32 %v2566, 1.442695
        %v2817 = vpow.pop %v2816
        %v2818 = vmul.f32 %v2567, 1.442695
        %v2819 = vpow.pop %v2818
        %v2820 = vmul.f32 %v2568, 1.442695
        %v2821 = vpow.pop %v2820
        %v2822 = vmul.f32 %v2569, 1.442695
        %v2823 = vpow.pop %v2822
        %v2824 = vmul.f32 %v2570, 1.442695
        %v2825 = vpow.pop %v2824
        %v2826 = vmul.f32 %v2571, 1.442695
        %v2827 = vpow.pop %v2826
        %v2828 = vadd.f32 %v2573, %v2581
        %v2829 = vadd.f32 %v2828, %v2589
        %v2830 = vadd.f32 %v2829, %v2597
        %v2831 = vadd.f32 %v2830, %v2605
        %v2832 = vadd.f32 %v2831, %v2613
        %v2833 = vadd.f32 %v2832, %v2621
        %v2834 = vadd.f32 %v2833, %v2629
        %v2835 = vadd.f32 %v2834, %v2637
        %v2836 = vadd.f32 %v2835, %v2645
        %v2837 = vadd.f32 %v2836, %v2653
        %v2838 = vadd.f32 %v2837, %v2661
        %v2839 = vadd.f32 %v2838, %v2669
        %v2840 = vadd.f32 %v2839, %v2677
        %v2841 = vadd.f32 %v2840, %v2685
        %v2842 = vadd.f32 %v2841, %v2693
        %v2843 = vadd.f32 %v2842, %v2701
        %v2844 = vadd.f32 %v2843, %v2709
        %v2845 = vadd.f32 %v2844, %v2717
        %v2846 = vadd.f32 %v2845, %v2725
        %v2847 = vadd.f32 %v2846, %v2733
        %v2848 = vadd.f32 %v2847, %v2741
        %v2849 = vadd.f32 %v2848, %v2749
        %v2850 = vadd.f32 %v2849, %v2757
        %v2851 = vadd.f32 %v2850, %v2765
        %v2852 = vadd.f32 %v2851, %v2773
        %v2853 = vadd.f32 %v2852, %v2781
        %v2854 = vadd.f32 %v2853, %v2789
        %v2855 = vadd.f32 %v2854, %v2797
        %v2856 = vadd.f32 %v2855, %v2805
        %v2857 = vadd.f32 %v2856, %v2813
        %v2858 = vadd.f32 %v2857, %v2821
        %v2859 = vrot.slane %v2858, 4
        %v2860 = vadd.f32 %v2858, %v2859
        %v2861 = vrot.slane %v2860, 2
        %v2862 = vadd.f32 %v2860, %v2861
        %v2863 = vrot.slane %v2862, 1
        %v2864 = vadd.f32 %v2862, %v2863
        %v2865 = vadd.f32 %v2575, %v2583
        %v2866 = vadd.f32 %v2865, %v2591
        %v2867 = vadd.f32 %v2866, %v2599
        %v2868 = vadd.f32 %v2867, %v2607
        %v2869 = vadd.f32 %v2868, %v2615
        %v2870 = vadd.f32 %v2869, %v2623
        %v2871 = vadd.f32 %v2870, %v2631
        %v2872 = vadd.f32 %v2871, %v2639
        %v2873 = vadd.f32 %v2872, %v2647
        %v2874 = vadd.f32 %v2873, %v2655
        %v2875 = vadd.f32 %v2874, %v2663
        %v2876 = vadd.f32 %v2875, %v2671
        %v2877 = vadd.f32 %v2876, %v2679
        %v2878 = vadd.f32 %v2877, %v2687
        %v2879 = vadd.f32 %v2878, %v2695
        %v2880 = vadd.f32 %v2879, %v2703
        %v2881 = vadd.f32 %v2880, %v2711
        %v2882 = vadd.f32 %v2881, %v2719
        %v2883 = vadd.f32 %v2882, %v2727
        %v2884 = vadd.f32 %v2883, %v2735
        %v2885 = vadd.f32 %v2884, %v2743
        %v2886 = vadd.f32 %v2885, %v2751
        %v2887 = vadd.f32 %v2886, %v2759
        %v2888 = vadd.f32 %v2887, %v2767
        %v2889 = vadd.f32 %v2888, %v2775
        %v2890 = vadd.f32 %v2889, %v2783
        %v2891 = vadd.f32 %v2890, %v2791
        %v2892 = vadd.f32 %v2891, %v2799
        %v2893 = vadd.f32 %v2892, %v2807
        %v2894 = vadd.f32 %v2893, %v2815
        %v2895 = vadd.f32 %v2894, %v2823
        %v2896 = vrot.slane %v2895, 4
        %v2897 = vadd.f32 %v2895, %v2896
        %v2898 = vrot.slane %v2897, 2
        %v2899 = vadd.f32 %v2897, %v2898
        %v2900 = vrot.slane %v2899, 1
        %v2901 = vadd.f32 %v2899, %v2900
        %v2902 = vadd.f32 %v2577, %v2585
        %v2903 = vadd.f32 %v2902, %v2593
        %v2904 = vadd.f32 %v2903, %v2601
        %v2905 = vadd.f32 %v2904, %v2609
        %v2906 = vadd.f32 %v2905, %v2617
        %v2907 = vadd.f32 %v2906, %v2625
        %v2908 = vadd.f32 %v2907, %v2633
        %v2909 = vadd.f32 %v2908, %v2641
        %v2910 = vadd.f32 %v2909, %v2649
        %v2911 = vadd.f32 %v2910, %v2657
        %v2912 = vadd.f32 %v2911, %v2665
        %v2913 = vadd.f32 %v2912, %v2673
        %v2914 = vadd.f32 %v2913, %v2681
        %v2915 = vadd.f32 %v2914, %v2689
        %v2916 = vadd.f32 %v2915, %v2697
        %v2917 = vadd.f32 %v2916, %v2705
        %v2918 = vadd.f32 %v2917, %v2713
        %v2919 = vadd.f32 %v2918, %v2721
        %v2920 = vadd.f32 %v2919, %v2729
        %v2921 = vadd.f32 %v2920, %v2737
        %v2922 = vadd.f32 %v2921, %v2745
        %v2923 = vadd.f32 %v2922, %v2753
        %v2924 = vadd.f32 %v2923, %v2761
        %v2925 = vadd.f32 %v2924, %v2769
        %v2926 = vadd.f32 %v2925, %v2777
        %v2927 = vadd.f32 %v2926, %v2785
        %v2928 = vadd.f32 %v2927, %v2793
        %v2929 = vadd.f32 %v2928, %v2801
        %v2930 = vadd.f32 %v2929, %v2809
        %v2931 = vadd.f32 %v2930, %v2817
        %v2932 = vadd.f32 %v2931, %v2825
        %v2933 = vrot.slane %v2932, 4
        %v2934 = vadd.f32 %v2932, %v2933
        %v2935 = vrot.slane %v2934, 2
        %v2936 = vadd.f32 %v2934, %v2935
        %v2937 = vrot.slane %v2936, 1
        %v2938 = vadd.f32 %v2936, %v2937
        %v2939 = vadd.f32 %v2579, %v2587
        %v2940 = vadd.f32 %v2939, %v2595
        %v2941 = vadd.f32 %v2940, %v2603
        %v2942 = vadd.f32 %v2941, %v2611
        %v2943 = vadd.f32 %v2942, %v2619
        %v2944 = vadd.f32 %v2943, %v2627
        %v2945 = vadd.f32 %v2944, %v2635
        %v2946 = vadd.f32 %v2945, %v2643
        %v2947 = vadd.f32 %v2946, %v2651
        %v2948 = vadd.f32 %v2947, %v2659
        %v2949 = vadd.f32 %v2948, %v2667
        %v2950 = vadd.f32 %v2949, %v2675
        %v2951 = vadd.f32 %v2950, %v2683
        %v2952 = vadd.f32 %v2951, %v2691
        %v2953 = vadd.f32 %v2952, %v2699
        %v2954 = vadd.f32 %v2953, %v2707
        %v2955 = vadd.f32 %v2954, %v2715
        %v2956 = vadd.f32 %v2955, %v2723
        %v2957 = vadd.f32 %v2956, %v2731
        %v2958 = vadd.f32 %v2957, %v2739
        %v2959 = vadd.f32 %v2958, %v2747
        %v2960 = vadd.f32 %v2959, %v2755
        %v2961 = vadd.f32 %v2960, %v2763
        %v2962 = vadd.f32 %v2961, %v2771
        %v2963 = vadd.f32 %v2962, %v2779
        %v2964 = vadd.f32 %v2963, %v2787
        %v2965 = vadd.f32 %v2964, %v2795
        %v2966 = vadd.f32 %v2965, %v2803
        %v2967 = vadd.f32 %v2966, %v2811
        %v2968 = vadd.f32 %v2967, %v2819
        %v2969 = vadd.f32 %v2968, %v2827
        %v2970 = vrot.slane %v2969, 4
        %v2971 = vadd.f32 %v2969, %v2970
        %v2972 = vrot.slane %v2971, 2
        %v2973 = vadd.f32 %v2971, %v2972
        %v2974 = vrot.slane %v2973, 1
        %v2975 = vadd.f32 %v2973, %v2974
        %v2976 = vrcp.pop %v2864
        %v2977 = vrcp.pop %v2901
        %v2978 = vrcp.pop %v2938
        %v2979 = vrcp.pop %v2975
        %v2980 = vmul.f32 %v2573, %v2976
        %v2981 = vmul.f32 %v2575, %v2977
        %v2982 = vmul.f32 %v2577, %v2978
        %v2983 = vmul.f32 %v2579, %v2979
        %v2984 = vmul.f32 %v2581, %v2976
        %v2985 = vmul.f32 %v2583, %v2977
        %v2986 = vmul.f32 %v2585, %v2978
        %v2987 = vmul.f32 %v2587, %v2979
        %v2988 = vmul.f32 %v2589, %v2976
        %v2989 = vmul.f32 %v2591, %v2977
        %v2990 = vmul.f32 %v2593, %v2978
        %v2991 = vmul.f32 %v2595, %v2979
        %v2992 = vmul.f32 %v2597, %v2976
        %v2993 = vmul.f32 %v2599, %v2977
        %v2994 = vmul.f32 %v2601, %v2978
        %v2995 = vmul.f32 %v2603, %v2979
        %v2996 = vmul.f32 %v2605, %v2976
        %v2997 = vmul.f32 %v2607, %v2977
        %v2998 = vmul.f32 %v2609, %v2978
        %v2999 = vmul.f32 %v2611, %v2979
        %v3000 = vmul.f32 %v2613, %v2976
        %v3001 = vmul.f32 %v2615, %v2977
        %v3002 = vmul.f32 %v2617, %v2978
        %v3003 = vmul.f32 %v2619, %v2979
        %v3004 = vmul.f32 %v2621, %v2976
        %v3005 = vmul.f32 %v2623, %v2977
        %v3006 = vmul.f32 %v2625, %v2978
        %v3007 = vmul.f32 %v2627, %v2979
        %v3008 = vmul.f32 %v2629, %v2976
        %v3009 = vmul.f32 %v2631, %v2977
        %v3010 = vmul.f32 %v2633, %v2978
        %v3011 = vmul.f32 %v2635, %v2979
        %v3012 = vmul.f32 %v2637, %v2976
        %v3013 = vmul.f32 %v2639, %v2977
        %v3014 = vmul.f32 %v2641, %v2978
        %v3015 = vmul.f32 %v2643, %v2979
        %v3016 = vmul.f32 %v2645, %v2976
        %v3017 = vmul.f32 %v2647, %v2977
        %v3018 = vmul.f32 %v2649, %v2978
        %v3019 = vmul.f32 %v2651, %v2979
        %v3020 = vmul.f32 %v2653, %v2976
        %v3021 = vmul.f32 %v2655, %v2977
        %v3022 = vmul.f32 %v2657, %v2978
        %v3023 = vmul.f32 %v2659, %v2979
        %v3024 = vmul.f32 %v2661, %v2976
        %v3025 = vmul.f32 %v2663, %v2977
        %v3026 = vmul.f32 %v2665, %v2978
        %v3027 = vmul.f32 %v2667, %v2979
        %v3028 = vmul.f32 %v2669, %v2976
        %v3029 = vmul.f32 %v2671, %v2977
        %v3030 = vmul.f32 %v2673, %v2978
        %v3031 = vmul.f32 %v2675, %v2979
        %v3032 = vmul.f32 %v2677, %v2976
        %v3033 = vmul.f32 %v2679, %v2977
        %v3034 = vmul.f32 %v2681, %v2978
        %v3035 = vmul.f32 %v2683, %v2979
        %v3036 = vmul.f32 %v2685, %v2976
        %v3037 = vmul.f32 %v2687, %v2977
        %v3038 = vmul.f32 %v2689, %v2978
        %v3039 = vmul.f32 %v2691, %v2979
        %v3040 = vmul.f32 %v2693, %v2976
        %v3041 = vmul.f32 %v2695, %v2977
        %v3042 = vmul.f32 %v2697, %v2978
        %v3043 = vmul.f32 %v2699, %v2979
        %v3044 = vmul.f32 %v2701, %v2976
        %v3045 = vmul.f32 %v2703, %v2977
        %v3046 = vmul.f32 %v2705, %v2978
        %v3047 = vmul.f32 %v2707, %v2979
        %v3048 = vmul.f32 %v2709, %v2976
        %v3049 = vmul.f32 %v2711, %v2977
        %v3050 = vmul.f32 %v2713, %v2978
        %v3051 = vmul.f32 %v2715, %v2979
        %v3052 = vmul.f32 %v2717, %v2976
        %v3053 = vmul.f32 %v2719, %v2977
        %v3054 = vmul.f32 %v2721, %v2978
        %v3055 = vmul.f32 %v2723, %v2979
        %v3056 = vmul.f32 %v2725, %v2976
        %v3057 = vmul.f32 %v2727, %v2977
        %v3058 = vmul.f32 %v2729, %v2978
        %v3059 = vmul.f32 %v2731, %v2979
        %v3060 = vmul.f32 %v2733, %v2976
        %v3061 = vmul.f32 %v2735, %v2977
        %v3062 = vmul.f32 %v2737, %v2978
        %v3063 = vmul.f32 %v2739, %v2979
        %v3064 = vmul.f32 %v2741, %v2976
        %v3065 = vmul.f32 %v2743, %v2977
        %v3066 = vmul.f32 %v2745, %v2978
        %v3067 = vmul.f32 %v2747, %v2979
        %v3068 = vmul.f32 %v2749, %v2976
        %v3069 = vmul.f32 %v2751, %v2977
        %v3070 = vmul.f32 %v2753, %v2978
        %v3071 = vmul.f32 %v2755, %v2979
        %v3072 = vmul.f32 %v2757, %v2976
        %v3073 = vmul.f32 %v2759, %v2977
        %v3074 = vmul.f32 %v2761, %v2978
        %v3075 = vmul.f32 %v2763, %v2979
        %v3076 = vmul.f32 %v2765, %v2976
        %v3077 = vmul.f32 %v2767, %v2977
        %v3078 = vmul.f32 %v2769, %v2978
        %v3079 = vmul.f32 %v2771, %v2979
        %v3080 = vmul.f32 %v2773, %v2976
        %v3081 = vmul.f32 %v2775, %v2977
        %v3082 = vmul.f32 %v2777, %v2978
        %v3083 = vmul.f32 %v2779, %v2979
        %v3084 = vmul.f32 %v2781, %v2976
        %v3085 = vmul.f32 %v2783, %v2977
        %v3086 = vmul.f32 %v2785, %v2978
        %v3087 = vmul.f32 %v2787, %v2979
        %v3088 = vmul.f32 %v2789, %v2976
        %v3089 = vmul.f32 %v2791, %v2977
        %v3090 = vmul.f32 %v2793, %v2978
        %v3091 = vmul.f32 %v2795, %v2979
        %v3092 = vmul.f32 %v2797, %v2976
        %v3093 = vmul.f32 %v2799, %v2977
        %v3094 = vmul.f32 %v2801, %v2978
        %v3095 = vmul.f32 %v2803, %v2979
        %v3096 = vmul.f32 %v2805, %v2976
        %v3097 = vmul.f32 %v2807, %v2977
        %v3098 = vmul.f32 %v2809, %v2978
        %v3099 = vmul.f32 %v2811, %v2979
        %v3100 = vmul.f32 %v2813, %v2976
        %v3101 = vmul.f32 %v2815, %v2977
        %v3102 = vmul.f32 %v2817, %v2978
        %v3103 = vmul.f32 %v2819, %v2979
        %v3104 = vmul.f32 %v2821, %v2976
        %v3105 = vmul.f32 %v2823, %v2977
        %v3106 = vmul.f32 %v2825, %v2978
        %v3107 = vmul.f32 %v2827, %v2979
        %v3108 = vpack.c.bf16 %v2984, %v2980
        %v3109 = vpack.c.bf16 %v2985, %v2981
        %v3110 = vpack.c.bf16 %v2986, %v2982
        %v3111 = vpack.c.bf16 %v2987, %v2983
        %v3112 = vpack.c.bf16 %v2992, %v2988
        %v3113 = vpack.c.bf16 %v2993, %v2989
        %v3114 = vpack.c.bf16 %v2994, %v2990
        %v3115 = vpack.c.bf16 %v2995, %v2991
        %v3116 = vpack.c.bf16 %v3000, %v2996
        %v3117 = vpack.c.bf16 %v3001, %v2997
        %v3118 = vpack.c.bf16 %v3002, %v2998
        %v3119 = vpack.c.bf16 %v3003, %v2999
        %v3120 = vpack.c.bf16 %v3008, %v3004
        %v3121 = vpack.c.bf16 %v3009, %v3005
        %v3122 = vpack.c.bf16 %v3010, %v3006
        %v3123 = vpack.c.bf16 %v3011, %v3007
        %v3124 = vpack.c.bf16 %v3016, %v3012
        %v3125 = vpack.c.bf16 %v3017, %v3013
        %v3126 = vpack.c.bf16 %v3018, %v3014
        %v3127 = vpack.c.bf16 %v3019, %v3015
        %v3128 = vpack.c.bf16 %v3024, %v3020
        %v3129 = vpack.c.bf16 %v3025, %v3021
        %v3130 = vpack.c.bf16 %v3026, %v3022
        %v3131 = vpack.c.bf16 %v3027, %v3023
        %v3132 = vpack.c.bf16 %v3032, %v3028
        %v3133 = vpack.c.bf16 %v3033, %v3029
        %v3134 = vpack.c.bf16 %v3034, %v3030
        %v3135 = vpack.c.bf16 %v3035, %v3031
        %v3136 = vpack.c.bf16 %v3040, %v3036
        %v3137 = vpack.c.bf16 %v3041, %v3037
        %v3138 = vpack.c.bf16 %v3042, %v3038
        %v3139 = vpack.c.bf16 %v3043, %v3039
        %v3140 = vpack.c.bf16 %v3048, %v3044
        %v3141 = vpack.c.bf16 %v3049, %v3045
        %v3142 = vpack.c.bf16 %v3050, %v3046
        %v3143 = vpack.c.bf16 %v3051, %v3047
        %v3144 = vpack.c.bf16 %v3056, %v3052
        %v3145 = vpack.c.bf16 %v3057, %v3053
        %v3146 = vpack.c.bf16 %v3058, %v3054
        %v3147 = vpack.c.bf16 %v3059, %v3055
        %v3148 = vpack.c.bf16 %v3064, %v3060
        %v3149 = vpack.c.bf16 %v3065, %v3061
        %v3150 = vpack.c.bf16 %v3066, %v3062
        %v3151 = vpack.c.bf16 %v3067, %v3063
        %v3152 = vpack.c.bf16 %v3072, %v3068
        %v3153 = vpack.c.bf16 %v3073, %v3069
        %v3154 = vpack.c.bf16 %v3074, %v3070
        %v3155 = vpack.c.bf16 %v3075, %v3071
        %v3156 = vpack.c.bf16 %v3080, %v3076
        %v3157 = vpack.c.bf16 %v3081, %v3077
        %v3158 = vpack.c.bf16 %v3082, %v3078
        %v3159 = vpack.c.bf16 %v3083, %v3079
        %v3160 = vpack.c.bf16 %v3088, %v3084
        %v3161 = vpack.c.bf16 %v3089, %v3085
        %v3162 = vpack.c.bf16 %v3090, %v3086
        %v3163 = vpack.c.bf16 %v3091, %v3087
        %v3164 = vpack.c.bf16 %v3096, %v3092
        %v3165 = vpack.c.bf16 %v3097, %v3093
        %v3166 = vpack.c.bf16 %v3098, %v3094
        %v3167 = vpack.c.bf16 %v3099, %v3095
        %v3168 = vpack.c.bf16 %v3104, %v3100
        %v3169 = vpack.c.bf16 %v3105, %v3101
        %v3170 = vpack.c.bf16 %v3106, %v3102
        %v3171 = vpack.c.bf16 %v3107, %v3103
        %3172 = vmatpush.bf16.msra.mxu0 %v3136
        %3173 = vmatpush.bf16.msra.mxu0 %v3132
        %3174 = vmatpush.bf16.msra.mxu0 %v3128
        %3175 = vmatpush.bf16.msra.mxu0 %v3124
        %3176 = vmatpush.bf16.msra.mxu0 %v3120
        %3177 = vmatpush.bf16.msra.mxu0 %v3116
        %3178 = vmatpush.bf16.msra.mxu0 %v3112
        %3179 = vmatpush.bf16.msra.mxu0 %v3108
        %3180 = vmatmul.bf16.gmra.mxu0 %v468
        %v3181 = vpop.f32.mrf.mxu0
        %v3182 = vadd.f32 0.0, %v3181
        %v3183 = vpop.f32.mrf.mxu0
        %v3184 = vadd.f32 0.0, %v3183
        %3185 = vdwg.mxu0
        %3186 = vmatpush.bf16.msra.mxu0 %v3168
        %3187 = vmatpush.bf16.msra.mxu0 %v3164
        %3188 = vmatpush.bf16.msra.mxu0 %v3160
        %3189 = vmatpush.bf16.msra.mxu0 %v3156
        %3190 = vmatpush.bf16.msra.mxu0 %v3152
        %3191 = vmatpush.bf16.msra.mxu0 %v3148
        %3192 = vmatpush.bf16.msra.mxu0 %v3144
        %3193 = vmatpush.bf16.msra.mxu0 %v3140
        %3194 = vmatmul.bf16.gmra.mxu0 %v469
        %v3195 = vpop.f32.mrf.mxu0
        %v3196 = vadd.f32 %v3182, %v3195
        %v3197 = vpop.f32.mrf.mxu0
        %v3198 = vadd.f32 %v3184, %v3197
        %3199 = vdwg.mxu0
        %3200 = vmatpush.bf16.msra.mxu0 %v3137
        %3201 = vmatpush.bf16.msra.mxu0 %v3133
        %3202 = vmatpush.bf16.msra.mxu0 %v3129
        %3203 = vmatpush.bf16.msra.mxu0 %v3125
        %3204 = vmatpush.bf16.msra.mxu0 %v3121
        %3205 = vmatpush.bf16.msra.mxu0 %v3117
        %3206 = vmatpush.bf16.msra.mxu0 %v3113
        %3207 = vmatpush.bf16.msra.mxu0 %v3109
        %3208 = vmatmul.bf16.gmra.mxu0 %v468
        %v3209 = vpop.f32.mrf.mxu0
        %v3210 = vadd.f32 0.0, %v3209
        %v3211 = vpop.f32.mrf.mxu0
        %v3212 = vadd.f32 0.0, %v3211
        %3213 = vdwg.mxu0
        %3214 = vmatpush.bf16.msra.mxu0 %v3169
        %3215 = vmatpush.bf16.msra.mxu0 %v3165
        %3216 = vmatpush.bf16.msra.mxu0 %v3161
        %3217 = vmatpush.bf16.msra.mxu0 %v3157
        %3218 = vmatpush.bf16.msra.mxu0 %v3153
        %3219 = vmatpush.bf16.msra.mxu0 %v3149
        %3220 = vmatpush.bf16.msra.mxu0 %v3145
        %3221 = vmatpush.bf16.msra.mxu0 %v3141
        %3222 = vmatmul.bf16.gmra.mxu0 %v469
        %v3223 = vpop.f32.mrf.mxu0
        %v3224 = vadd.f32 %v3210, %v3223
        %v3225 = vpop.f32.mrf.mxu0
        %v3226 = vadd.f32 %v3212, %v3225
        %3227 = vdwg.mxu0
        %3228 = vmatpush.bf16.msra.mxu0 %v3138
        %3229 = vmatpush.bf16.msra.mxu0 %v3134
        %3230 = vmatpush.bf16.msra.mxu0 %v3130
        %3231 = vmatpush.bf16.msra.mxu0 %v3126
        %3232 = vmatpush.bf16.msra.mxu0 %v3122
        %3233 = vmatpush.bf16.msra.mxu0 %v3118
        %3234 = vmatpush.bf16.msra.mxu0 %v3114
        %3235 = vmatpush.bf16.msra.mxu0 %v3110
        %3236 = vmatmul.bf16.gmra.mxu0 %v468
        %v3237 = vpop.f32.mrf.mxu0
        %v3238 = vadd.f32 0.0, %v3237
        %v3239 = vpop.f32.mrf.mxu0
        %v3240 = vadd.f32 0.0, %v3239
        %3241 = vdwg.mxu0
        %3242 = vmatpush.bf16.msra.mxu0 %v3170
        %3243 = vmatpush.bf16.msra.mxu0 %v3166
        %3244 = vmatpush.bf16.msra.mxu0 %v3162
        %3245 = vmatpush.bf16.msra.mxu0 %v3158
        %3246 = vmatpush.bf16.msra.mxu0 %v3154
        %3247 = vmatpush.bf16.msra.mxu0 %v3150
        %3248 = vmatpush.bf16.msra.mxu0 %v3146
        %3249 = vmatpush.bf16.msra.mxu0 %v3142
        %3250 = vmatmul.bf16.gmra.mxu0 %v469
        %v3251 = vpop.f32.mrf.mxu0
        %v3252 = vadd.f32 %v3238, %v3251
        %v3253 = vpop.f32.mrf.mxu0
        %v3254 = vadd.f32 %v3240, %v3253
        %3255 = vdwg.mxu0
        %3256 = vmatpush.bf16.msra.mxu0 %v3139
        %3257 = vmatpush.bf16.msra.mxu0 %v3135
        %3258 = vmatpush.bf16.msra.mxu0 %v3131
        %3259 = vmatpush.bf16.msra.mxu0 %v3127
        %3260 = vmatpush.bf16.msra.mxu0 %v3123
        %3261 = vmatpush.bf16.msra.mxu0 %v3119
        %3262 = vmatpush.bf16.msra.mxu0 %v3115
        %3263 = vmatpush.bf16.msra.mxu0 %v3111
        %3264 = vmatmul.bf16.gmra.mxu0 %v468
        %v3265 = vpop.f32.mrf.mxu0
        %v3266 = vadd.f32 0.0, %v3265
        %v3267 = vpop.f32.mrf.mxu0
        %v3268 = vadd.f32 0.0, %v3267
        %3269 = vdwg.mxu0
        %3270 = vmatpush.bf16.msra.mxu0 %v3171
        %3271 = vmatpush.bf16.msra.mxu0 %v3167
        %3272 = vmatpush.bf16.msra.mxu0 %v3163
        %3273 = vmatpush.bf16.msra.mxu0 %v3159
        %3274 = vmatpush.bf16.msra.mxu0 %v3155
        %3275 = vmatpush.bf16.msra.mxu0 %v3151
        %3276 = vmatpush.bf16.msra.mxu0 %v3147
        %3277 = vmatpush.bf16.msra.mxu0 %v3143
        %3278 = vmatmul.bf16.gmra.mxu0 %v469
        %v3279 = vpop.f32.mrf.mxu0
        %v3280 = vadd.f32 %v3266, %v3279
        %v3281 = vpop.f32.mrf.mxu0
        %v3282 = vadd.f32 %v3268, %v3281
        %3283 = vdwg.mxu0
        %v3284 = vpack.c.bf16 %v3224, %v3196
        %v3285 = vpack.c.bf16 %v3280, %v3252
        %v3286 = vpack.c.bf16 %v3226, %v3198
        %v3287 = vpack.c.bf16 %v3282, %v3254
        %3288 = vst [vmem:[#allocation2 + $0x10] sm:$0xff] %v3284
        %3289 = vst [vmem:[#allocation2 + $0x18] sm:$0xff] %v3285
        %3290 = vst [vmem:[#allocation2 + $0x30] sm:$0xff] %v3286
        %3291 = vst [vmem:[#allocation2 + $0x38] sm:$0xff] %v3287
        %v3292 = vld [vmem:[%s2] sm:$0xf]
        %v3293 = vld [vmem:[%s2 + $0x4] sm:$0xf]
        %v3294 = vld [vmem:[%s2 + $0x8] sm:$0xf]
        %v3295 = vld [vmem:[%s2 + $0xc] sm:$0xf]
        %v3296 = vld [vmem:[#allocation2] sm:$0xff]
        %v3297 = vld [vmem:[#allocation2 + $0x8] sm:$0xff]
        %v3298 = vld [vmem:[#allocation2 + $0x10] sm:$0xff]
        %v3299 = vld [vmem:[#allocation2 + $0x18] sm:$0xff]
        %v3300 = vld [vmem:[#allocation2 + $0x20] sm:$0xff]
        %v3301 = vld [vmem:[#allocation2 + $0x28] sm:$0xff]
        %v3302 = vld [vmem:[#allocation2 + $0x30] sm:$0xff]
        %v3303 = vld [vmem:[#allocation2 + $0x38] sm:$0xff]
        %v3308 = vunpack.c.l.b16 %v3292
        %v3309 = vunpack.c.l.b16 %v3293
        %v3310 = vunpack.c.l.b16 %v3294
        %v3311 = vunpack.c.l.b16 %v3295
        %v3312 = vpack.c.b16 %v3309, %v3308
        %v3313 = vpack.c.b16 %v3311, %v3310
        %v3322 = vunpack.c.l.b16 %v3296
        %v3323 = vunpack.c.h.b16 %v3296
        %v3324 = vunpack.c.l.b16 %v3297
        %v3325 = vunpack.c.h.b16 %v3297
        %v3326 = vunpack.c.l.b16 %v3298
        %v3327 = vunpack.c.h.b16 %v3298
        %v3328 = vunpack.c.l.b16 %v3299
        %v3329 = vunpack.c.h.b16 %v3299
        %v3330 = vunpack.c.l.b16 %v3300
        %v3331 = vunpack.c.h.b16 %v3300
        %v3332 = vunpack.c.l.b16 %v3301
        %v3333 = vunpack.c.h.b16 %v3301
        %v3334 = vunpack.c.l.b16 %v3302
        %v3335 = vunpack.c.h.b16 %v3302
        %v3336 = vunpack.c.l.b16 %v3303
        %v3337 = vunpack.c.h.b16 %v3303
        %v3338 = vpack.c.b16 %v3330, %v3322
        %v3339 = vpack.c.b16 %v3331, %v3323
        %v3340 = vpack.c.b16 %v3332, %v3324
        %v3341 = vpack.c.b16 %v3333, %v3325
        %v3342 = vpack.c.b16 %v3334, %v3326
        %v3343 = vpack.c.b16 %v3335, %v3327
        %v3344 = vpack.c.b16 %v3336, %v3328
        %v3345 = vpack.c.b16 %v3337, %v3329
        %vm3354 = vcmask 130048
        %v3356 = vsel %vm3354, %v3312, 0
        %v3359 = vsel %vm3354, %v3313, 0
        %3361 = vmatpush.bf16.msra.mxu0 0
        %3362 = vmatpush.bf16.msra.mxu0 0
        %3363 = vmatpush.bf16.msra.mxu0 0
        %3364 = vmatpush.bf16.msra.mxu0 0
        %3365 = vmatpush.bf16.msra.mxu0 0
        %3366 = vmatpush.bf16.msra.mxu0 0
        %3367 = vmatpush.bf16.msra.mxu0 0
        %3368 = vmatpush.bf16.msra.mxu0 %v3338
        %3369 = vmatmul.bf16.gmra.mxu0 %v3356
        %v3370 = vpop.f32.mrf.mxu0
        %v3371 = vadd.f32 0.0, %v3370
        %v3372 = vpop.f32.mrf.mxu0
        %v3373 = vadd.f32 0.0, %v3372
        %3374 = vmatmul.bf16.gmra.mxu0 %v3359
        %v3375 = vpop.f32.mrf.mxu0
        %v3376 = vadd.f32 0.0, %v3375
        %v3377 = vpop.f32.mrf.mxu0
        %v3378 = vadd.f32 0.0, %v3377
        %3379 = vdwg.mxu0
        %3380 = vmatpush.bf16.msra.mxu0 0
        %3381 = vmatpush.bf16.msra.mxu0 0
        %3382 = vmatpush.bf16.msra.mxu0 0
        %3383 = vmatpush.bf16.msra.mxu0 0
        %3384 = vmatpush.bf16.msra.mxu0 0
        %3385 = vmatpush.bf16.msra.mxu0 0
        %3386 = vmatpush.bf16.msra.mxu0 0
        %3387 = vmatpush.bf16.msra.mxu0 %v3339
        %3388 = vmatmul.bf16.gmra.mxu0 %v3356
        %v3389 = vpop.f32.mrf.mxu0
        %v3390 = vadd.f32 0.0, %v3389
        %v3391 = vpop.f32.mrf.mxu0
        %v3392 = vadd.f32 0.0, %v3391
        %3393 = vmatmul.bf16.gmra.mxu0 %v3359
        %v3394 = vpop.f32.mrf.mxu0
        %v3395 = vadd.f32 0.0, %v3394
        %v3396 = vpop.f32.mrf.mxu0
        %v3397 = vadd.f32 0.0, %v3396
        %3398 = vdwg.mxu0
        %3399 = vmatpush.bf16.msra.mxu0 0
        %3400 = vmatpush.bf16.msra.mxu0 0
        %3401 = vmatpush.bf16.msra.mxu0 0
        %3402 = vmatpush.bf16.msra.mxu0 0
        %3403 = vmatpush.bf16.msra.mxu0 0
        %3404 = vmatpush.bf16.msra.mxu0 0
        %3405 = vmatpush.bf16.msra.mxu0 0
        %3406 = vmatpush.bf16.msra.mxu0 %v3340
        %3407 = vmatmul.bf16.gmra.mxu0 %v3356
        %v3408 = vpop.f32.mrf.mxu0
        %v3409 = vadd.f32 0.0, %v3408
        %v3410 = vpop.f32.mrf.mxu0
        %v3411 = vadd.f32 0.0, %v3410
        %3412 = vmatmul.bf16.gmra.mxu0 %v3359
        %v3413 = vpop.f32.mrf.mxu0
        %v3414 = vadd.f32 0.0, %v3413
        %v3415 = vpop.f32.mrf.mxu0
        %v3416 = vadd.f32 0.0, %v3415
        %3417 = vdwg.mxu0
        %3418 = vmatpush.bf16.msra.mxu0 0
        %3419 = vmatpush.bf16.msra.mxu0 0
        %3420 = vmatpush.bf16.msra.mxu0 0
        %3421 = vmatpush.bf16.msra.mxu0 0
        %3422 = vmatpush.bf16.msra.mxu0 0
        %3423 = vmatpush.bf16.msra.mxu0 0
        %3424 = vmatpush.bf16.msra.mxu0 0
        %3425 = vmatpush.bf16.msra.mxu0 %v3341
        %3426 = vmatmul.bf16.gmra.mxu0 %v3356
        %v3427 = vpop.f32.mrf.mxu0
        %v3428 = vadd.f32 0.0, %v3427
        %v3429 = vpop.f32.mrf.mxu0
        %v3430 = vadd.f32 0.0, %v3429
        %3431 = vmatmul.bf16.gmra.mxu0 %v3359
        %v3432 = vpop.f32.mrf.mxu0
        %v3433 = vadd.f32 0.0, %v3432
        %v3434 = vpop.f32.mrf.mxu0
        %v3435 = vadd.f32 0.0, %v3434
        %3436 = vdwg.mxu0
        %3437 = vmatpush.bf16.msra.mxu0 0
        %3438 = vmatpush.bf16.msra.mxu0 0
        %3439 = vmatpush.bf16.msra.mxu0 0
        %3440 = vmatpush.bf16.msra.mxu0 0
        %3441 = vmatpush.bf16.msra.mxu0 0
        %3442 = vmatpush.bf16.msra.mxu0 0
        %3443 = vmatpush.bf16.msra.mxu0 0
        %3444 = vmatpush.bf16.msra.mxu0 %v3342
        %3445 = vmatmul.bf16.gmra.mxu0 %v3356
        %v3446 = vpop.f32.mrf.mxu0
        %v3447 = vadd.f32 0.0, %v3446
        %v3448 = vpop.f32.mrf.mxu0
        %v3449 = vadd.f32 0.0, %v3448
        %3450 = vmatmul.bf16.gmra.mxu0 %v3359
        %v3451 = vpop.f32.mrf.mxu0
        %v3452 = vadd.f32 0.0, %v3451
        %v3453 = vpop.f32.mrf.mxu0
        %v3454 = vadd.f32 0.0, %v3453
        %3455 = vdwg.mxu0
        %3456 = vmatpush.bf16.msra.mxu0 0
        %3457 = vmatpush.bf16.msra.mxu0 0
        %3458 = vmatpush.bf16.msra.mxu0 0
        %3459 = vmatpush.bf16.msra.mxu0 0
        %3460 = vmatpush.bf16.msra.mxu0 0
        %3461 = vmatpush.bf16.msra.mxu0 0
        %3462 = vmatpush.bf16.msra.mxu0 0
        %3463 = vmatpush.bf16.msra.mxu0 %v3343
        %3464 = vmatmul.bf16.gmra.mxu0 %v3356
        %v3465 = vpop.f32.mrf.mxu0
        %v3466 = vadd.f32 0.0, %v3465
        %v3467 = vpop.f32.mrf.mxu0
        %v3468 = vadd.f32 0.0, %v3467
        %3469 = vmatmul.bf16.gmra.mxu0 %v3359
        %v3470 = vpop.f32.mrf.mxu0
        %v3471 = vadd.f32 0.0, %v3470
        %v3472 = vpop.f32.mrf.mxu0
        %v3473 = vadd.f32 0.0, %v3472
        %3474 = vdwg.mxu0
        %3475 = vmatpush.bf16.msra.mxu0 0
        %3476 = vmatpush.bf16.msra.mxu0 0
        %3477 = vmatpush.bf16.msra.mxu0 0
        %3478 = vmatpush.bf16.msra.mxu0 0
        %3479 = vmatpush.bf16.msra.mxu0 0
        %3480 = vmatpush.bf16.msra.mxu0 0
        %3481 = vmatpush.bf16.msra.mxu0 0
        %3482 = vmatpush.bf16.msra.mxu0 %v3344
        %3483 = vmatmul.bf16.gmra.mxu0 %v3356
        %v3484 = vpop.f32.mrf.mxu0
        %v3485 = vadd.f32 0.0, %v3484
        %v3486 = vpop.f32.mrf.mxu0
        %v3487 = vadd.f32 0.0, %v3486
        %3488 = vmatmul.bf16.gmra.mxu0 %v3359
        %v3489 = vpop.f32.mrf.mxu0
        %v3490 = vadd.f32 0.0, %v3489
        %v3491 = vpop.f32.mrf.mxu0
        %v3492 = vadd.f32 0.0, %v3491
        %3493 = vdwg.mxu0
        %3494 = vmatpush.bf16.msra.mxu0 0
        %3495 = vmatpush.bf16.msra.mxu0 0
        %3496 = vmatpush.bf16.msra.mxu0 0
        %3497 = vmatpush.bf16.msra.mxu0 0
        %3498 = vmatpush.bf16.msra.mxu0 0
        %3499 = vmatpush.bf16.msra.mxu0 0
        %3500 = vmatpush.bf16.msra.mxu0 0
        %3501 = vmatpush.bf16.msra.mxu0 %v3345
        %3502 = vmatmul.bf16.gmra.mxu0 %v3356
        %v3503 = vpop.f32.mrf.mxu0
        %v3504 = vadd.f32 0.0, %v3503
        %v3505 = vpop.f32.mrf.mxu0
        %v3506 = vadd.f32 0.0, %v3505
        %3507 = vmatmul.bf16.gmra.mxu0 %v3359
        %v3508 = vpop.f32.mrf.mxu0
        %v3509 = vadd.f32 0.0, %v3508
        %v3510 = vpop.f32.mrf.mxu0
        %v3511 = vadd.f32 0.0, %v3510
        %3512 = vdwg.mxu0
        %v3513 = vstv %s274
        %v3514 = vmul.f32 %v3513, %v3371
        %v3515 = vmul.f32 %v3513, %v3390
        %v3516 = vmul.f32 %v3513, %v3409
        %v3517 = vmul.f32 %v3513, %v3428
        %v3518 = vmul.f32 %v3513, %v3447
        %v3519 = vmul.f32 %v3513, %v3466
        %v3520 = vmul.f32 %v3513, %v3485
        %v3521 = vmul.f32 %v3513, %v3504
        %v3522 = vmul.f32 %v3513, %v3373
        %v3523 = vmul.f32 %v3513, %v3392
        %v3524 = vmul.f32 %v3513, %v3411
        %v3525 = vmul.f32 %v3513, %v3430
        %v3526 = vmul.f32 %v3513, %v3449
        %v3527 = vmul.f32 %v3513, %v3468
        %v3528 = vmul.f32 %v3513, %v3487
        %v3529 = vmul.f32 %v3513, %v3506
        %v3530 = vmul.f32 %v3513, %v3376
        %v3531 = vmul.f32 %v3513, %v3395
        %v3532 = vmul.f32 %v3513, %v3414
        %v3533 = vmul.f32 %v3513, %v3433
        %v3534 = vmul.f32 %v3513, %v3452
        %v3535 = vmul.f32 %v3513, %v3471
        %v3536 = vmul.f32 %v3513, %v3490
        %v3537 = vmul.f32 %v3513, %v3509
        %v3538 = vmul.f32 %v3513, %v3378
        %v3539 = vmul.f32 %v3513, %v3397
        %v3540 = vmul.f32 %v3513, %v3416
        %v3541 = vmul.f32 %v3513, %v3435
        %v3542 = vmul.f32 %v3513, %v3454
        %v3543 = vmul.f32 %v3513, %v3473
        %v3544 = vmul.f32 %v3513, %v3492
        %v3545 = vmul.f32 %v3513, %v3511
        %v3546 = vld [vmem:[%s193] sm:$0xff]
        %v3547 = vld [vmem:[%s193 + $0x8] sm:$0xff]
        %v3548 = vld [vmem:[%s193 + $0x10] sm:$0xff]
        %v3549 = vld [vmem:[%s193 + $0x18] sm:$0xff]
        %v3550 = vld [vmem:[%s193 + $0x20] sm:$0xff]
        %v3551 = vld [vmem:[%s193 + $0x28] sm:$0xff]
        %v3552 = vld [vmem:[%s193 + $0x30] sm:$0xff]
        %v3553 = vld [vmem:[%s193 + $0x38] sm:$0xff]
        %v3554 = vld [vmem:[%s193 + $0x40] sm:$0xff]
        %v3555 = vld [vmem:[%s193 + $0x48] sm:$0xff]
        %v3556 = vld [vmem:[%s193 + $0x50] sm:$0xff]
        %v3557 = vld [vmem:[%s193 + $0x58] sm:$0xff]
        %v3558 = vld [vmem:[%s193 + $0x60] sm:$0xff]
        %v3559 = vld [vmem:[%s193 + $0x68] sm:$0xff]
        %v3560 = vld [vmem:[%s193 + $0x70] sm:$0xff]
        %v3561 = vld [vmem:[%s193 + $0x78] sm:$0xff]
        %v3562 = vld [vmem:[%s193 + $0x80] sm:$0xff]
        %v3563 = vld [vmem:[%s193 + $0x88] sm:$0xff]
        %v3564 = vld [vmem:[%s193 + $0x90] sm:$0xff]
        %v3565 = vld [vmem:[%s193 + $0x98] sm:$0xff]
        %v3566 = vld [vmem:[%s193 + $0xa0] sm:$0xff]
        %v3567 = vld [vmem:[%s193 + $0xa8] sm:$0xff]
        %v3568 = vld [vmem:[%s193 + $0xb0] sm:$0xff]
        %v3569 = vld [vmem:[%s193 + $0xb8] sm:$0xff]
        %v3570 = vld [vmem:[%s193 + $0xc0] sm:$0xff]
        %v3571 = vld [vmem:[%s193 + $0xc8] sm:$0xff]
        %v3572 = vld [vmem:[%s193 + $0xd0] sm:$0xff]
        %v3573 = vld [vmem:[%s193 + $0xd8] sm:$0xff]
        %v3574 = vld [vmem:[%s193 + $0xe0] sm:$0xff]
        %v3575 = vld [vmem:[%s193 + $0xe8] sm:$0xff]
        %v3576 = vld [vmem:[%s193 + $0xf0] sm:$0xff]
        %v3577 = vld [vmem:[%s193 + $0xf8] sm:$0xff]
        %v3578 = vadd.f32 %v3514, %v3546
        %v3579 = vadd.f32 %v3515, %v3547
        %v3580 = vadd.f32 %v3516, %v3548
        %v3581 = vadd.f32 %v3517, %v3549
        %v3582 = vadd.f32 %v3518, %v3550
        %v3583 = vadd.f32 %v3519, %v3551
        %v3584 = vadd.f32 %v3520, %v3552
        %v3585 = vadd.f32 %v3521, %v3553
        %v3586 = vadd.f32 %v3522, %v3554
        %v3587 = vadd.f32 %v3523, %v3555
        %v3588 = vadd.f32 %v3524, %v3556
        %v3589 = vadd.f32 %v3525, %v3557
        %v3590 = vadd.f32 %v3526, %v3558
        %v3591 = vadd.f32 %v3527, %v3559
        %v3592 = vadd.f32 %v3528, %v3560
        %v3593 = vadd.f32 %v3529, %v3561
        %v3594 = vadd.f32 %v3530, %v3562
        %v3595 = vadd.f32 %v3531, %v3563
        %v3596 = vadd.f32 %v3532, %v3564
        %v3597 = vadd.f32 %v3533, %v3565
        %v3598 = vadd.f32 %v3534, %v3566
        %v3599 = vadd.f32 %v3535, %v3567
        %v3600 = vadd.f32 %v3536, %v3568
        %v3601 = vadd.f32 %v3537, %v3569
        %v3602 = vadd.f32 %v3538, %v3570
        %v3603 = vadd.f32 %v3539, %v3571
        %v3604 = vadd.f32 %v3540, %v3572
        %v3605 = vadd.f32 %v3541, %v3573
        %v3606 = vadd.f32 %v3542, %v3574
        %v3607 = vadd.f32 %v3543, %v3575
        %v3608 = vadd.f32 %v3544, %v3576
        %v3609 = vadd.f32 %v3545, %v3577
        %3610 = vst [vmem:[%s218] sm:$0xff] %v3578
        %3611 = vst [vmem:[%s218 + $0x8] sm:$0xff] %v3579
        %3612 = vst [vmem:[%s218 + $0x10] sm:$0xff] %v3580
        %3613 = vst [vmem:[%s218 + $0x18] sm:$0xff] %v3581
        %3614 = vst [vmem:[%s218 + $0x20] sm:$0xff] %v3582
        %3615 = vst [vmem:[%s218 + $0x28] sm:$0xff] %v3583
        %3616 = vst [vmem:[%s218 + $0x30] sm:$0xff] %v3584
        %3617 = vst [vmem:[%s218 + $0x38] sm:$0xff] %v3585
        %3618 = vst [vmem:[%s218 + $0x40] sm:$0xff] %v3586
        %3619 = vst [vmem:[%s218 + $0x48] sm:$0xff] %v3587
        %3620 = vst [vmem:[%s218 + $0x50] sm:$0xff] %v3588
        %3621 = vst [vmem:[%s218 + $0x58] sm:$0xff] %v3589
        %3622 = vst [vmem:[%s218 + $0x60] sm:$0xff] %v3590
        %3623 = vst [vmem:[%s218 + $0x68] sm:$0xff] %v3591
        %3624 = vst [vmem:[%s218 + $0x70] sm:$0xff] %v3592
        %3625 = vst [vmem:[%s218 + $0x78] sm:$0xff] %v3593
        %3626 = vst [vmem:[%s218 + $0x80] sm:$0xff] %v3594
        %3627 = vst [vmem:[%s218 + $0x88] sm:$0xff] %v3595
        %3628 = vst [vmem:[%s218 + $0x90] sm:$0xff] %v3596
        %3629 = vst [vmem:[%s218 + $0x98] sm:$0xff] %v3597
        %3630 = vst [vmem:[%s218 + $0xa0] sm:$0xff] %v3598
        %3631 = vst [vmem:[%s218 + $0xa8] sm:$0xff] %v3599
        %3632 = vst [vmem:[%s218 + $0xb0] sm:$0xff] %v3600
        %3633 = vst [vmem:[%s218 + $0xb8] sm:$0xff] %v3601
        %3634 = vst [vmem:[%s218 + $0xc0] sm:$0xff] %v3602
        %3635 = vst [vmem:[%s218 + $0xc8] sm:$0xff] %v3603
        %3636 = vst [vmem:[%s218 + $0xd0] sm:$0xff] %v3604
        %3637 = vst [vmem:[%s218 + $0xd8] sm:$0xff] %v3605
        %3638 = vst [vmem:[%s218 + $0xe0] sm:$0xff] %v3606
        %3639 = vst [vmem:[%s218 + $0xe8] sm:$0xff] %v3607
        %3640 = vst [vmem:[%s218 + $0xf0] sm:$0xff] %v3608
        %3641 = vst [vmem:[%s218 + $0xf8] sm:$0xff] %v3609
        %s3642 = sand.u32 %s119, 1
        %s3643 = scalar_lea.sflag [#allocation6], %s3642
        %s3644 = sand.u32 %s119, 1
        %s3645 = smul.addr %s3644, 256
        %s3646 = scalar_lea.vmem [#allocation7], %s3645
        // Predicated region
        $region41: #{tpu_custom_call.1} parent=35 // pred_check
          %p3647 = pneg %p129
        $region42: #{tpu_custom_call.1} parent=35 // pred_check_branch
          %3649 = sbr.rel (%p3647) target = $region44
        $region43: #{tpu_custom_call.1} parent=35 // pred_region
          %s3650 = smul.u32 8, %s22
          %3652 = vsyncadd %s3643, 0
          %s3653 = smul.addr %s3650, 8
          %s3654 = scalar_lea.hbm %s4, %s3653
          %s3655 = sshll.u32 %s3646, 4
          %s3656 = int_to_ptr.vmem [resolvable:$true] %s3655
          %s3657 = sshll.u32 %s3654, 4
          %s3658 = int_to_ptr.hbm [resolvable:$true] %s3657
          %3663 = dma.vmem_to_hbm [thread:$0]  %s3656, 4096, %s3658, %s3643, 1024, 2048, 64
        $region44: #{tpu_custom_call.1} parent=35 // pred_fallthru
          _
      $region36: #{tpu_custom_call.1} parent=5 // pred_fallthru
        _
      %p3664 = scmp.le.s32.totalorder 2, %s17
      // Predicated region
      $region45: #{tpu_custom_call.1} parent=5 // pred_check
        %p3665 = pneg %p3664
      $region46: #{tpu_custom_call.1} parent=5 // pred_check_branch
        %3667 = sbr.rel (%p3665) target = $region48
      $region47: #{tpu_custom_call.1} parent=5 // pred_region
        %s3668 = ssub.s32 %s17, 2
        // Predicated region
        $region49: #{tpu_custom_call.1} parent=47 // pred_check
          %p3669 = pneg %p135
        $region50: #{tpu_custom_call.1} parent=47 // pred_check_branch
          %3671 = sbr.rel (%p3669) target = $region52
        $region51: #{tpu_custom_call.1} parent=47 // pred_region
          %s3672 = sand.u32 %s120, 1
          %s3673 = scalar_lea.sflag [#allocation6], %s3672
          %s3674 = sand.u32 %s120, 1
          %s3675 = smul.addr %s3674, 256
          %s3676 = scalar_lea.vmem [#allocation7], %s3675
          %3678 = dma.done %s3673, 4096
        $region52: #{tpu_custom_call.1} parent=47 // pred_fallthru
          _
      $region48: #{tpu_custom_call.1} parent=5 // pred_fallthru
        _
    $region6: #{tpu_custom_call.1} parent=1 // loop_footer
      %s21 = sadd.s32 1, %s17
    $region7: #{tpu_custom_call.1} parent=1 // loop_footer_branch
      %16 = sbr.rel target = $region3
    $region8: #{tpu_custom_call.1} parent=1 // loop_exit
      _
    %3679 = vsyncpa [#allocation5], 1
    %s3680 = scalar_lea.sflag [#allocation5], 1
    %3681 = vsyncpa %s3680, 1
    %3682 = vsyncpa [#allocation6], 1
    %s3683 = scalar_lea.sflag [#allocation6], 1
    %3684 = vsyncpa %s3683, 1

</llo_original>
